<compile_context>
chip_gen: v5e
topology: v5e:2x2
jax: 0.10.0
libtpu: 0.0.40
codegen_flags: <defaults>
</compile_context>

<pallas_src>
import functools

import numpy as np

import jax
import jax.numpy as jnp
from jax.experimental import pallas as pl
from jax.experimental.pallas import tpu as pltpu

EPS = 1e-5
K = 4  # all transposed convs use 4x4 kernels

_CHANNELS = [(1024, 64), (64, 32), (32, 16), (16, 1)]
_CFG = [(1, 0), (2, 1), (2, 1), (2, 1)]  # (stride, padding) per layer


# ----------------------------- Pallas kernels -------------------------------

def _gemm_bn_relu_kernel(inv_ref, p_ref, w_ref, s_ref, st_ref, g_ref, b_ref,
                         o_ref):
    inv_n = inv_ref[0]
    # Main GEMM on the MXU: bf16 operands, f32 accumulation.
    y = jnp.dot(p_ref[...], w_ref[...], preferred_element_type=jnp.float32)
    # Reduce-then-group BatchNorm statistics (training mode, biased variance):
    # per-column sums first (padded zero rows of P contribute exactly 0), then
    # tiny selector matmuls fold the g columns of each channel together.
    colsum = jnp.sum(y, axis=0, keepdims=True)                    # (1, tn)
    colsq = jnp.sum(y * y, axis=0, keepdims=True)                 # (1, tn)
    ch_sum = jnp.dot(colsum, s_ref[...], preferred_element_type=jnp.float32)
    ch_sq = jnp.dot(colsq, s_ref[...], preferred_element_type=jnp.float32)
    mean = ch_sum * inv_n                                         # (1, co)
    var = jnp.maximum(ch_sq * inv_n - mean * mean, 0.0)           # clamp >= 0
    scale = jax.lax.rsqrt(var + EPS) * g_ref[...]                 # (1, co)
    shift = b_ref[...] - mean * scale                             # (1, co)
    # Broadcast per-channel affine back to per-column via transposed selector.
    scale_full = jnp.dot(scale, st_ref[...], preferred_element_type=jnp.float32)
    shift_full = jnp.dot(shift, st_ref[...], preferred_element_type=jnp.float32)
    o_ref[...] = jnp.maximum(y * scale_full + shift_full, 0.0).astype(o_ref.dtype)


def _gemm_tanh_kernel(w_ref, p_ref, o_ref):
    y = jnp.dot(w_ref[...], p_ref[...], preferred_element_type=jnp.float32)
    o_ref[...] = jnp.tanh(y)


def gemm_bn_relu(p, w, s, st, gamma, beta, count):
    """Fused GEMM + training-mode BatchNorm + ReLU, tiled over output channels."""
    m, kd = p.shape
    n = w.shape[1]
    co = s.shape[1]
    # Column tile: multiple of 128 and of the per-channel group width (channel
    # groups are contiguous and tile-aligned), >= 2 grid steps when possible.
    tn = 256 if (n > 256 and n % 256 == 0) else n
    inv_n = jnp.full((1,), 1.0 / float(count), jnp.float32)
    return pl.pallas_call(
        _gemm_bn_relu_kernel,
        out_shape=jax.ShapeDtypeStruct((m, n), jnp.bfloat16),
        grid=(n // tn,),
        in_specs=[
            pl.BlockSpec(memory_space=pltpu.MemorySpace.SMEM),    # 1/count
            pl.BlockSpec((m, kd), lambda i: (0, 0)),              # P (resident)
            pl.BlockSpec((kd, tn), lambda i: (0, i)),             # W column tile
            pl.BlockSpec((tn, co), lambda i: (i, 0)),             # group selector
            pl.BlockSpec((co, tn), lambda i: (0, i)),             # selector^T
            pl.BlockSpec((1, co), lambda i: (0, 0)),              # gamma
            pl.BlockSpec((1, co), lambda i: (0, 0)),              # beta
        ],
        out_specs=pl.BlockSpec((m, tn), lambda i: (0, i)),
        compiler_params=pltpu.CompilerParams(
            dimension_semantics=("parallel",),
            vmem_limit_bytes=32 << 20),
    )(inv_n, p, w, s, st, gamma, beta)


def gemm_tanh_t(w_t, p_t):
    """Transposed GEMM + tanh, tiled over the lane-dense M axis (tn <= 256)."""
    r, kd = w_t.shape            # (8, 144)  -- 4 phase rows padded to 8
    m = p_t.shape[1]             # B * H * W (always a multiple of 256 here)
    tn = m
    for t in (256, 128):
        if m % t == 0:
            tn = t
            break
    return pl.pallas_call(
        _gemm_tanh_kernel,
        out_shape=jax.ShapeDtypeStruct((r, m), jnp.float32),
        grid=(m // tn,),
        in_specs=[
            pl.BlockSpec((r, kd), lambda i: (0, 0)),
            pl.BlockSpec((kd, tn), lambda i: (0, i)),
        ],
        out_specs=pl.BlockSpec((r, tn), lambda i: (0, i)),
        compiler_params=pltpu.CompilerParams(
            dimension_semantics=("parallel",),
            vmem_limit_bytes=32 << 20),
    )(w_t, p_t)


# ------------------------- host-side glue (layout) --------------------------

def _pad_rows(x, mult=16):
    pad = (-x.shape[0]) % mult
    if pad:
        x = jnp.pad(x, ((0, pad), (0, 0)))
    return x


def _phase_im2col_nhwc(x_nhwc, transposed=False):
    """Zero-free im2col for ConvT(k=4,s=2,p=1): 3x3 padded patches per pixel.

    Row m = b*H*W + i*W + j; column k = (dy*3+dx)*Ci + ci.  With `transposed`
    returns the (9*Ci, B*H*W) layout instead.  Input/outputs are bf16.
    """
    x_nhwc = x_nhwc.astype(jnp.bfloat16)
    b, h, w, ci = x_nhwc.shape
    xp = jnp.pad(x_nhwc, ((0, 0), (1, 1), (1, 1), (0, 0)))
    cols = [xp[:, dy:dy + h, dx:dx + w, :]
            for dy in range(3) for dx in range(3)]
    p = jnp.stack(cols, axis=0)                                # (9, B, H, W, Ci)
    if transposed:
        p = jnp.transpose(p, (0, 4, 1, 2, 3)).reshape(9 * ci, b * h * w)
    else:
        p = jnp.transpose(p, (1, 2, 3, 0, 4)).reshape(b * h * w, 9 * ci)
    return p


def _dephase_to_nhwc(y, b, h, w, co):
    """(b*h*w, co*4) phase-GEMM output -> (b, 2h, 2w, co) NHWC image."""
    t = y.reshape(b, h, w, co, 2, 2)
    t = jnp.transpose(t, (0, 1, 4, 2, 5, 3))                   # (b, h, r, w, c, co)
    return t.reshape(b, 2 * h, 2 * w, co)


# (output parity r/c, padded patch offset dy/dx) -> kernel tap ky/kx
_KTAP = {(0, 0): 3, (0, 1): 1, (1, 1): 2, (1, 2): 0}


def _phase_weight(w):
    """ConvT(k=4,s=2,p=1) weights (Ci,Co,4,4) -> (9*Ci, 4*Co) phase GEMM matrix.

    Row    index: (dy*3+dx)*Ci + ci          (patch offset major, channel minor)
    Column index: co*4 + r*2 + c             (channel major, output parity minor)
    """
    w = np.asarray(jax.device_get(w), dtype=np.float32)
    ci_n, co_n = w.shape[0], w.shape[1]
    out = np.zeros((9, ci_n, co_n, 4), np.float32)
    for r in (0, 1):
        for c in (0, 1):
            for dy in (0, 1, 2):
                for dx in (0, 1, 2):
                    if (r, dy) in _KTAP and (c, dx) in _KTAP:
                        out[dy * 3 + dx, :, :, r * 2 + c] = \
                            w[:, :, _KTAP[(r, dy)], _KTAP[(c, dx)]]
    return jnp.asarray(out.reshape(9 * ci_n, co_n * 4))


# ------------------------------- parameters --------------------------------

def init_params(key):
    params = {}
    keys = jax.random.split(key, 2 * len(_CHANNELS))
    for i, (cin, cout) in enumerate(_CHANNELS):
        # torch.nn.init.normal_(conv.weight, 0.0, 0.02); weight shape (Cin,Cout,4,4)
        params[f"w{i}"] = 0.02 * jax.random.normal(
            keys[2 * i], (cin, cout, K, K), jnp.float32)
        if i < len(_CHANNELS) - 1:
            # BatchNorm: weight ~ N(1, 0.02), bias = 0
            params[f"gamma{i}"] = 1.0 + 0.02 * jax.random.normal(
                keys[2 * i + 1], (cout,), jnp.float32)
            params[f"beta{i}"] = jnp.zeros((cout,), jnp.float32)
    return params


def prepare_kernel_params(params):
    """Precompute kernel-ready bf16 weights and per-channel BN auxiliaries once."""
    kp = {}
    # Layer 0: ConvT on a 1x1 input == dense GEMM; columns = co*16 + ky*4 + kx.
    kp["w0"] = params["w0"].reshape(1024, 64 * K * K).astype(jnp.bfloat16)
    # Layers 1, 2: phase-decomposed weights; columns = co*4 + phase.
    kp["w1"] = _phase_weight(params["w1"]).astype(jnp.bfloat16)      # (576, 128)
    kp["w2"] = _phase_weight(params["w2"]).astype(jnp.bfloat16)      # (288,  64)
    # Layer 3: transposed for a lane-dense output; pad phase rows 4 -> 8.
    w3t = _phase_weight(params["w3"]).T                               # (4, 144)
    kp["w3t"] = jnp.pad(w3t, ((0, 4), (0, 0))).astype(jnp.bfloat16)   # (8, 144)

    groups = {0: 16, 1: 4, 2: 4}   # columns per channel in each BN layer's GEMM
    for i, g in groups.items():
        co = _CHANNELS[i][1]
        # Contiguous-group selector (n, co): S[col, ch] = 1 iff col // g == ch.
        s_np = np.kron(np.eye(co, dtype=np.float32), np.ones((g, 1), np.float32))
        kp[f"s{i}"] = jnp.asarray(s_np)                               # (co*g, co)
        kp[f"st{i}"] = jnp.asarray(s_np.T)                            # (co, co*g)
        kp[f"g{i}"] = params[f"gamma{i}"][None, :].astype(jnp.float32)  # (1, co)
        kp[f"b{i}"] = params[f"beta{i}"][None, :].astype(jnp.float32)   # (1, co)
    return kp


# --------------------------------- model -----------------------------------

def facegen_gan_forward(kp, features):
    """FaceGenGAN.forward == Generator.forward.  features: (B, 1024, 1, 1) NCHW."""
    b = features.shape[0]

    # Layer 0: ConvT(1024->64,k4,s1,p0) on 1x1 input == (B,1024)x(1024,1024) GEMM.
    x = _pad_rows(features.reshape(b, 1024).astype(jnp.bfloat16))
    y = gemm_bn_relu(x, kp["w0"], kp["s0"], kp["st0"], kp["g0"], kp["b0"],
                     count=b * 4 * 4)[:b]
    h = y.reshape(b, 64, 4, 4).transpose(0, 2, 3, 1)              # NHWC (b,4,4,64)

    # Layer 1: ConvT(64->32,k4,s2,p1): 4x4 -> 8x8 (phase-decomposed GEMM).
    p = _pad_rows(_phase_im2col_nhwc(h))
    y = gemm_bn_relu(p, kp["w1"], kp["s1"], kp["st1"], kp["g1"], kp["b1"],
                     count=b * 8 * 8)[:b * 16]
    h = _dephase_to_nhwc(y, b, 4, 4, 32)                          # (b,8,8,32)

    # Layer 2: ConvT(32->16,k4,s2,p1): 8x8 -> 16x16.
    p = _pad_rows(_phase_im2col_nhwc(h))
    y = gemm_bn_relu(p, kp["w2"], kp["s2"], kp["st2"], kp["g2"], kp["b2"],
                     count=b * 16 * 16)[:b * 64]
    h = _dephase_to_nhwc(y, b, 8, 8, 16)                          # (b,16,16,16)

    # Layer 3: ConvT(16->1,k4,s2,p1) + tanh: 16x16 -> 32x32, transposed + M-tiled.
    pt = _phase_im2col_nhwc(h, transposed=True)                   # (144, B*256)
    yt = gemm_tanh_t(kp["w3t"], pt)[:4]                           # (4, B*256)
    out = yt.reshape(2, 2, b, 16, 16).transpose(2, 3, 0, 4, 1).reshape(b, 1, 32, 32)
    return out


# ------------------------------ pure-XLA reference ---------------------------

def _reference_forward(params, features):
    """Same inferred generator via lax.conv_general_dilated (f32), for checking."""
    h = features.astype(jnp.float32)
    for i in range(4):
        w = params[f"w{i}"]
        s, p = _CFG[i]
        q = K - 1 - p
        wc = jnp.flip(w, (2, 3)).transpose(1, 0, 2, 3)           # (Co, Ci, 4, 4)
        h = jax.lax.conv_general_dilated(
            h, wc, window_strides=(1, 1), padding=[(q, q), (q, q)],
            lhs_dilation=(s, s),
            dimension_numbers=("NCHW", "OIHW", "NCHW"))
        if i < 3:
            mean = jnp.mean(h, axis=(0, 2, 3), keepdims=True)
            var = jnp.mean((h - mean) ** 2, axis=(0, 2, 3), keepdims=True)
            g = params[f"gamma{i}"].reshape(1, -1, 1, 1)
            bb = params[f"beta{i}"].reshape(1, -1, 1, 1)
            h = jnp.maximum((h - mean) * jax.lax.rsqrt(var + EPS) * g + bb, 0.0)
        else:
            h = jnp.tanh(h)
    return h


if __name__ == "__main__":
    key = jax.random.PRNGKey(0)
    pkey, xkey = jax.random.split(key)
    params = init_params(pkey)
    kparams = prepare_kernel_params(params)

    B = 2
    # Module feeds the generator noise of shape (batch, 32*32, 1, 1)
    features = jax.random.uniform(xkey, (B, 32 * 32, 1, 1), jnp.float32)

    fwd = jax.jit(functools.partial(facegen_gan_forward, kparams))
    out = jax.block_until_ready(fwd(features))

    assert out.shape == (B, 1, 32, 32), out.shape
    assert out.dtype == jnp.float32
    assert bool(jnp.all(jnp.isfinite(out)))

    # Sanity check against the pure-XLA f32 reference (bf16 MXU operands and
    # bf16 inter-layer activations -> loose tolerance).
    ref = jax.block_until_ready(_reference_forward(params, features))
    max_err = float(jnp.max(jnp.abs(out - ref)))
    assert max_err < 0.25, f"max abs err vs reference: {max_err}"

    print("KERNEL_OK")
</pallas_src>

<mosaic_0001>
module attributes {stable_mosaic.version = 11 : i64} {
  func.func @_gemm_bn_relu_kernel(%arg0: i32, %arg1: memref<1xf32, #tpu.memory_space<smem>>, %arg2: memref<16x1024xbf16, #tpu.memory_space<vmem>>, %arg3: memref<1024x256xbf16, #tpu.memory_space<vmem>>, %arg4: memref<256x64xf32, #tpu.memory_space<vmem>>, %arg5: memref<64x256xf32, #tpu.memory_space<vmem>>, %arg6: memref<1x64xf32, #tpu.memory_space<vmem>>, %arg7: memref<1x64xf32, #tpu.memory_space<vmem>>, %arg8: memref<16x256xbf16, #tpu.memory_space<vmem>>) attributes {dimension_semantics = [#tpu.dimension_semantics<parallel>], iteration_bounds = array<i64: 4>, scalar_prefetch = 0 : i64, scratch_operands = 0 : i64, tpu.core_type = #tpu.core_type<tc>, window_params = [{transform_indices = @transform_0, window_bounds = array<i64: 1>}, {pipeline_mode = #tpu.pipeline_mode<synchronous>, transform_indices = @transform_1, window_bounds = array<i64: 16, 1024>}, {transform_indices = @transform_2, window_bounds = array<i64: 1024, 256>}, {transform_indices = @transform_3, window_bounds = array<i64: 256, 64>}, {transform_indices = @transform_4, window_bounds = array<i64: 64, 256>}, {pipeline_mode = #tpu.pipeline_mode<synchronous>, transform_indices = @transform_5, window_bounds = array<i64: 1, 64>}, {pipeline_mode = #tpu.pipeline_mode<synchronous>, transform_indices = @transform_6, window_bounds = array<i64: 1, 64>}, {transform_indices = @transform_7, window_bounds = array<i64: 16, 256>}]} {
    %c0 = arith.constant 0 : index
    %0 = memref.load %arg1[%c0] : memref<1xf32, #tpu.memory_space<smem>>
    %c0_0 = arith.constant 0 : index
    %c0_1 = arith.constant 0 : index
    %1 = vector.load %arg2[%c0_0, %c0_1] : memref<16x1024xbf16, #tpu.memory_space<vmem>>, vector<16x1024xbf16>
    %c0_2 = arith.constant 0 : index
    %c0_3 = arith.constant 0 : index
    %2 = vector.load %arg3[%c0_2, %c0_3] : memref<1024x256xbf16, #tpu.memory_space<vmem>>, vector<1024x256xbf16>
    %cst = arith.constant dense<0.000000e+00> : vector<16x256xf32>
    %3 = tpu.matmul %1, %2, %cst {dimension_numbers = #tpu.dot_dimension_numbers<[1], [0], [0], [1], [0, 0, 1, 1], [], []>} : vector<16x1024xbf16>, vector<1024x256xbf16>, vector<16x256xf32> -> vector<16x256xf32>
    %cst_4 = arith.constant dense<0.000000e+00> : vector<256xf32>
    %4 = vector.multi_reduction <add>, %3, %cst_4 [0] : vector<16x256xf32> to vector<256xf32>
    %5 = vector.shape_cast %4 : vector<256xf32> to vector<1x256xf32>
    %6 = arith.mulf %3, %3 : vector<16x256xf32>
    %cst_5 = arith.constant dense<0.000000e+00> : vector<256xf32>
    %7 = vector.multi_reduction <add>, %6, %cst_5 [0] : vector<16x256xf32> to vector<256xf32>
    %8 = vector.shape_cast %7 : vector<256xf32> to vector<1x256xf32>
    %c0_6 = arith.constant 0 : index
    %c0_7 = arith.constant 0 : index
    %9 = vector.load %arg4[%c0_6, %c0_7] : memref<256x64xf32, #tpu.memory_space<vmem>>, vector<256x64xf32>
    %cst_8 = arith.constant dense<0.000000e+00> : vector<1x64xf32>
    %10 = tpu.matmul %5, %9, %cst_8 {dimension_numbers = #tpu.dot_dimension_numbers<[1], [0], [0], [1], [0, 0, 1, 1], [], []>} : vector<1x256xf32>, vector<256x64xf32>, vector<1x64xf32> -> vector<1x64xf32>
    %c0_9 = arith.constant 0 : index
    %c0_10 = arith.constant 0 : index
    %11 = vector.load %arg4[%c0_9, %c0_10] : memref<256x64xf32, #tpu.memory_space<vmem>>, vector<256x64xf32>
    %cst_11 = arith.constant dense<0.000000e+00> : vector<1x64xf32>
    %12 = tpu.matmul %8, %11, %cst_11 {dimension_numbers = #tpu.dot_dimension_numbers<[1], [0], [0], [1], [0, 0, 1, 1], [], []>} : vector<1x256xf32>, vector<256x64xf32>, vector<1x64xf32> -> vector<1x64xf32>
    %13 = vector.broadcast %0 : f32 to vector<1x64xf32>
    %14 = arith.mulf %10, %13 : vector<1x64xf32>
    %15 = vector.broadcast %0 : f32 to vector<1x64xf32>
    %16 = arith.mulf %12, %15 : vector<1x64xf32>
    %17 = arith.mulf %14, %14 : vector<1x64xf32>
    %18 = arith.subf %16, %17 : vector<1x64xf32>
    %cst_12 = arith.constant 0.000000e+00 : f32
    %19 = vector.broadcast %cst_12 : f32 to vector<1x64xf32>
    %20 = arith.maximumf %18, %19 : vector<1x64xf32>
    %cst_13 = arith.constant 9.99999974E-6 : f32
    %21 = vector.broadcast %cst_13 : f32 to vector<1x64xf32>
    %22 = arith.addf %20, %21 : vector<1x64xf32>
    %23 = math.rsqrt %22 : vector<1x64xf32>
    %c0_14 = arith.constant 0 : index
    %c0_15 = arith.constant 0 : index
    %24 = vector.load %arg6[%c0_14, %c0_15] : memref<1x64xf32, #tpu.memory_space<vmem>>, vector<1x64xf32>
    %25 = arith.mulf %23, %24 : vector<1x64xf32>
    %c0_16 = arith.constant 0 : index
    %c0_17 = arith.constant 0 : index
    %26 = vector.load %arg7[%c0_16, %c0_17] : memref<1x64xf32, #tpu.memory_space<vmem>>, vector<1x64xf32>
    %27 = arith.mulf %14, %25 : vector<1x64xf32>
    %28 = arith.subf %26, %27 : vector<1x64xf32>
    %c0_18 = arith.constant 0 : index
    %c0_19 = arith.constant 0 : index
    %29 = vector.load %arg5[%c0_18, %c0_19] : memref<64x256xf32, #tpu.memory_space<vmem>>, vector<64x256xf32>
    %cst_20 = arith.constant dense<0.000000e+00> : vector<1x256xf32>
    %30 = tpu.matmul %25, %29, %cst_20 {dimension_numbers = #tpu.dot_dimension_numbers<[1], [0], [0], [1], [0, 0, 1, 1], [], []>} : vector<1x64xf32>, vector<64x256xf32>, vector<1x256xf32> -> vector<1x256xf32>
    %c0_21 = arith.constant 0 : index
    %c0_22 = arith.constant 0 : index
    %31 = vector.load %arg5[%c0_21, %c0_22] : memref<64x256xf32, #tpu.memory_space<vmem>>, vector<64x256xf32>
    %cst_23 = arith.constant dense<0.000000e+00> : vector<1x256xf32>
    %32 = tpu.matmul %28, %31, %cst_23 {dimension_numbers = #tpu.dot_dimension_numbers<[1], [0], [0], [1], [0, 0, 1, 1], [], []>} : vector<1x64xf32>, vector<64x256xf32>, vector<1x256xf32> -> vector<1x256xf32>
    %33 = vector.broadcast %30 : vector<1x256xf32> to vector<16x256xf32>
    %34 = arith.mulf %3, %33 : vector<16x256xf32>
    %35 = vector.broadcast %32 : vector<1x256xf32> to vector<16x256xf32>
    %36 = arith.addf %34, %35 : vector<16x256xf32>
    %cst_24 = arith.constant 0.000000e+00 : f32
    %37 = vector.broadcast %cst_24 : f32 to vector<16x256xf32>
    %38 = arith.maximumf %36, %37 : vector<16x256xf32>
    %39 = arith.truncf %38 : vector<16x256xf32> to vector<16x256xbf16>
    %c0_25 = arith.constant 0 : index
    %c0_26 = arith.constant 0 : index
    %40 = vector.load %arg8[%c0_25, %c0_26] : memref<16x256xbf16, #tpu.memory_space<vmem>>, vector<16x256xbf16>
    tpu.vector_store %arg8[%c0_25, %c0_26], %39 {strides = array<i32>} : memref<16x256xbf16, #tpu.memory_space<vmem>>, vector<16x256xbf16>,
    return
  }
  func.func @transform_0(%arg0: i32) -> i32 {
    %c0_i32 = arith.constant 0 : i32
    %c0_i32_0 = arith.constant 0 : i32
    return %c0_i32 : i32
  }
  func.func @transform_1(%arg0: i32) -> (i32, i32) {
    %c0_i32 = arith.constant 0 : i32
    %c0_i32_0 = arith.constant 0 : i32
    %c0_i32_1 = arith.constant 0 : i32
    return %c0_i32, %c0_i32_0 : i32, i32
  }
  func.func @transform_2(%arg0: i32) -> (i32, i32) {
    %c0_i32 = arith.constant 0 : i32
    %c0_i32_0 = arith.constant 0 : i32
    return %c0_i32, %arg0 : i32, i32
  }
  func.func @transform_3(%arg0: i32) -> (i32, i32) {
    %c0_i32 = arith.constant 0 : i32
    %c0_i32_0 = arith.constant 0 : i32
    return %arg0, %c0_i32 : i32, i32
  }
  func.func @transform_4(%arg0: i32) -> (i32, i32) {
    %c0_i32 = arith.constant 0 : i32
    %c0_i32_0 = arith.constant 0 : i32
    return %c0_i32, %arg0 : i32, i32
  }
  func.func @transform_5(%arg0: i32) -> (i32, i32) {
    %c0_i32 = arith.constant 0 : i32
    %c0_i32_0 = arith.constant 0 : i32
    %c0_i32_1 = arith.constant 0 : i32
    return %c0_i32, %c0_i32_0 : i32, i32
  }
  func.func @transform_6(%arg0: i32) -> (i32, i32) {
    %c0_i32 = arith.constant 0 : i32
    %c0_i32_0 = arith.constant 0 : i32
    %c0_i32_1 = arith.constant 0 : i32
    return %c0_i32, %c0_i32_0 : i32, i32
  }
  func.func @transform_7(%arg0: i32) -> (i32, i32) {
    %c0_i32 = arith.constant 0 : i32
    %c0_i32_0 = arith.constant 0 : i32
    return %c0_i32, %arg0 : i32, i32
  }
}

module attributes {stable_mosaic.version = 11 : i64} {
  func.func @_gemm_bn_relu_kernel(%arg0: i32, %arg1: memref<1xf32, #tpu.memory_space<smem>>, %arg2: memref<32x576xbf16, #tpu.memory_space<vmem>>, %arg3: memref<576x128xbf16, #tpu.memory_space<vmem>>, %arg4: memref<128x32xf32, #tpu.memory_space<vmem>>, %arg5: memref<32x128xf32, #tpu.memory_space<vmem>>, %arg6: memref<1x32xf32, #tpu.memory_space<vmem>>, %arg7: memref<1x32xf32, #tpu.memory_space<vmem>>, %arg8: memref<32x128xbf16, #tpu.memory_space<vmem>>) attributes {dimension_semantics = [#tpu.dimension_semantics<parallel>], iteration_bounds = array<i64: 1>, scalar_prefetch = 0 : i64, scratch_operands = 0 : i64, tpu.core_type = #tpu.core_type<tc>, window_params = [{transform_indices = @transform_0, window_bounds = array<i64: 1>}, {pipeline_mode = #tpu.pipeline_mode<synchronous>, transform_indices = @transform_1, window_bounds = array<i64: 32, 576>}, {transform_indices = @transform_2, window_bounds = array<i64: 576, 128>}, {transform_indices = @transform_3, window_bounds = array<i64: 128, 32>}, {transform_indices = @transform_4, window_bounds = array<i64: 32, 128>}, {pipeline_mode = #tpu.pipeline_mode<synchronous>, transform_indices = @transform_5, window_bounds = array<i64: 1, 32>}, {pipeline_mode = #tpu.pipeline_mode<synchronous>, transform_indices = @transform_6, window_bounds = array<i64: 1, 32>}, {transform_indices = @transform_7, window_bounds = array<i64: 32, 128>}]} {
    %c0 = arith.constant 0 : index
    %0 = memref.load %arg1[%c0] : memref<1xf32, #tpu.memory_space<smem>>
    %c0_0 = arith.constant 0 : index
    %c0_1 = arith.constant 0 : index
    %1 = vector.load %arg2[%c0_0, %c0_1] : memref<32x576xbf16, #tpu.memory_space<vmem>>, vector<32x576xbf16>
    %c0_2 = arith.constant 0 : index
    %c0_3 = arith.constant 0 : index
    %2 = vector.load %arg3[%c0_2, %c0_3] : memref<576x128xbf16, #tpu.memory_space<vmem>>, vector<576x128xbf16>
    %cst = arith.constant dense<0.000000e+00> : vector<32x128xf32>
    %3 = tpu.matmul %1, %2, %cst {dimension_numbers = #tpu.dot_dimension_numbers<[1], [0], [0], [1], [0, 0, 1, 1], [], []>} : vector<32x576xbf16>, vector<576x128xbf16>, vector<32x128xf32> -> vector<32x128xf32>
    %cst_4 = arith.constant dense<0.000000e+00> : vector<128xf32>
    %4 = vector.multi_reduction <add>, %3, %cst_4 [0] : vector<32x128xf32> to vector<128xf32>
    %5 = vector.shape_cast %4 : vector<128xf32> to vector<1x128xf32>
    %6 = arith.mulf %3, %3 : vector<32x128xf32>
    %cst_5 = arith.constant dense<0.000000e+00> : vector<128xf32>
    %7 = vector.multi_reduction <add>, %6, %cst_5 [0] : vector<32x128xf32> to vector<128xf32>
    %8 = vector.shape_cast %7 : vector<128xf32> to vector<1x128xf32>
    %c0_6 = arith.constant 0 : index
    %c0_7 = arith.constant 0 : index
    %9 = vector.load %arg4[%c0_6, %c0_7] : memref<128x32xf32, #tpu.memory_space<vmem>>, vector<128x32xf32>
    %cst_8 = arith.constant dense<0.000000e+00> : vector<1x32xf32>
    %10 = tpu.matmul %5, %9, %cst_8 {dimension_numbers = #tpu.dot_dimension_numbers<[1], [0], [0], [1], [0, 0, 1, 1], [], []>} : vector<1x128xf32>, vector<128x32xf32>, vector<1x32xf32> -> vector<1x32xf32>
    %c0_9 = arith.constant 0 : index
    %c0_10 = arith.constant 0 : index
    %11 = vector.load %arg4[%c0_9, %c0_10] : memref<128x32xf32, #tpu.memory_space<vmem>>, vector<128x32xf32>
    %cst_11 = arith.constant dense<0.000000e+00> : vector<1x32xf32>
    %12 = tpu.matmul %8, %11, %cst_11 {dimension_numbers = #tpu.dot_dimension_numbers<[1], [0], [0], [1], [0, 0, 1, 1], [], []>} : vector<1x128xf32>, vector<128x32xf32>, vector<1x32xf32> -> vector<1x32xf32>
    %13 = vector.broadcast %0 : f32 to vector<1x32xf32>
    %14 = arith.mulf %10, %13 : vector<1x32xf32>
    %15 = vector.broadcast %0 : f32 to vector<1x32xf32>
    %16 = arith.mulf %12, %15 : vector<1x32xf32>
    %17 = arith.mulf %14, %14 : vector<1x32xf32>
    %18 = arith.subf %16, %17 : vector<1x32xf32>
    %cst_12 = arith.constant 0.000000e+00 : f32
    %19 = vector.broadcast %cst_12 : f32 to vector<1x32xf32>
    %20 = arith.maximumf %18, %19 : vector<1x32xf32>
    %cst_13 = arith.constant 9.99999974E-6 : f32
    %21 = vector.broadcast %cst_13 : f32 to vector<1x32xf32>
    %22 = arith.addf %20, %21 : vector<1x32xf32>
    %23 = math.rsqrt %22 : vector<1x32xf32>
    %c0_14 = arith.constant 0 : index
    %c0_15 = arith.constant 0 : index
    %24 = vector.load %arg6[%c0_14, %c0_15] : memref<1x32xf32, #tpu.memory_space<vmem>>, vector<1x32xf32>
    %25 = arith.mulf %23, %24 : vector<1x32xf32>
    %c0_16 = arith.constant 0 : index
    %c0_17 = arith.constant 0 : index
    %26 = vector.load %arg7[%c0_16, %c0_17] : memref<1x32xf32, #tpu.memory_space<vmem>>, vector<1x32xf32>
    %27 = arith.mulf %14, %25 : vector<1x32xf32>
    %28 = arith.subf %26, %27 : vector<1x32xf32>
    %c0_18 = arith.constant 0 : index
    %c0_19 = arith.constant 0 : index
    %29 = vector.load %arg5[%c0_18, %c0_19] : memref<32x128xf32, #tpu.memory_space<vmem>>, vector<32x128xf32>
    %cst_20 = arith.constant dense<0.000000e+00> : vector<1x128xf32>
    %30 = tpu.matmul %25, %29, %cst_20 {dimension_numbers = #tpu.dot_dimension_numbers<[1], [0], [0], [1], [0, 0, 1, 1], [], []>} : vector<1x32xf32>, vector<32x128xf32>, vector<1x128xf32> -> vector<1x128xf32>
    %c0_21 = arith.constant 0 : index
    %c0_22 = arith.constant 0 : index
    %31 = vector.load %arg5[%c0_21, %c0_22] : memref<32x128xf32, #tpu.memory_space<vmem>>, vector<32x128xf32>
    %cst_23 = arith.constant dense<0.000000e+00> : vector<1x128xf32>
    %32 = tpu.matmul %28, %31, %cst_23 {dimension_numbers = #tpu.dot_dimension_numbers<[1], [0], [0], [1], [0, 0, 1, 1], [], []>} : vector<1x32xf32>, vector<32x128xf32>, vector<1x128xf32> -> vector<1x128xf32>
    %33 = vector.broadcast %30 : vector<1x128xf32> to vector<32x128xf32>
    %34 = arith.mulf %3, %33 : vector<32x128xf32>
    %35 = vector.broadcast %32 : vector<1x128xf32> to vector<32x128xf32>
    %36 = arith.addf %34, %35 : vector<32x128xf32>
    %cst_24 = arith.constant 0.000000e+00 : f32
    %37 = vector.broadcast %cst_24 : f32 to vector<32x128xf32>
    %38 = arith.maximumf %36, %37 : vector<32x128xf32>
    %39 = arith.truncf %38 : vector<32x128xf32> to vector<32x128xbf16>
    %c0_25 = arith.constant 0 : index
    %c0_26 = arith.constant 0 : index
    %40 = vector.load %arg8[%c0_25, %c0_26] : memref<32x128xbf16, #tpu.memory_space<vmem>>, vector<32x128xbf16>
    tpu.vector_store %arg8[%c0_25, %c0_26], %39 {strides = array<i32>} : memref<32x128xbf16, #tpu.memory_space<vmem>>, vector<32x128xbf16>,
    return
  }
  func.func @transform_0(%arg0: i32) -> i32 {
    %c0_i32 = arith.constant 0 : i32
    %c0_i32_0 = arith.constant 0 : i32
    return %c0_i32 : i32
  }
  func.func @transform_1(%arg0: i32) -> (i32, i32) {
    %c0_i32 = arith.constant 0 : i32
    %c0_i32_0 = arith.constant 0 : i32
    %c0_i32_1 = arith.constant 0 : i32
    return %c0_i32, %c0_i32_0 : i32, i32
  }
  func.func @transform_2(%arg0: i32) -> (i32, i32) {
    %c0_i32 = arith.constant 0 : i32
    %c0_i32_0 = arith.constant 0 : i32
    return %c0_i32, %arg0 : i32, i32
  }
  func.func @transform_3(%arg0: i32) -> (i32, i32) {
    %c0_i32 = arith.constant 0 : i32
    %c0_i32_0 = arith.constant 0 : i32
    return %arg0, %c0_i32 : i32, i32
  }
  func.func @transform_4(%arg0: i32) -> (i32, i32) {
    %c0_i32 = arith.constant 0 : i32
    %c0_i32_0 = arith.constant 0 : i32
    return %c0_i32, %arg0 : i32, i32
  }
  func.func @transform_5(%arg0: i32) -> (i32, i32) {
    %c0_i32 = arith.constant 0 : i32
    %c0_i32_0 = arith.constant 0 : i32
    %c0_i32_1 = arith.constant 0 : i32
    return %c0_i32, %c0_i32_0 : i32, i32
  }
  func.func @transform_6(%arg0: i32) -> (i32, i32) {
    %c0_i32 = arith.constant 0 : i32
    %c0_i32_0 = arith.constant 0 : i32
    %c0_i32_1 = arith.constant 0 : i32
    return %c0_i32, %c0_i32_0 : i32, i32
  }
  func.func @transform_7(%arg0: i32) -> (i32, i32) {
    %c0_i32 = arith.constant 0 : i32
    %c0_i32_0 = arith.constant 0 : i32
    return %c0_i32, %arg0 : i32, i32
  }
}

module attributes {stable_mosaic.version = 11 : i64} {
  func.func @_gemm_bn_relu_kernel(%arg0: i32, %arg1: memref<1xf32, #tpu.memory_space<smem>>, %arg2: memref<128x288xbf16, #tpu.memory_space<vmem>>, %arg3: memref<288x64xbf16, #tpu.memory_space<vmem>>, %arg4: memref<64x16xf32, #tpu.memory_space<vmem>>, %arg5: memref<16x64xf32, #tpu.memory_space<vmem>>, %arg6: memref<1x16xf32, #tpu.memory_space<vmem>>, %arg7: memref<1x16xf32, #tpu.memory_space<vmem>>, %arg8: memref<128x64xbf16, #tpu.memory_space<vmem>>) attributes {dimension_semantics = [#tpu.dimension_semantics<parallel>], iteration_bounds = array<i64: 1>, scalar_prefetch = 0 : i64, scratch_operands = 0 : i64, tpu.core_type = #tpu.core_type<tc>, window_params = [{transform_indices = @transform_0, window_bounds = array<i64: 1>}, {pipeline_mode = #tpu.pipeline_mode<synchronous>, transform_indices = @transform_1, window_bounds = array<i64: 128, 288>}, {transform_indices = @transform_2, window_bounds = array<i64: 288, 64>}, {transform_indices = @transform_3, window_bounds = array<i64: 64, 16>}, {transform_indices = @transform_4, window_bounds = array<i64: 16, 64>}, {pipeline_mode = #tpu.pipeline_mode<synchronous>, transform_indices = @transform_5, window_bounds = array<i64: 1, 16>}, {pipeline_mode = #tpu.pipeline_mode<synchronous>, transform_indices = @transform_6, window_bounds = array<i64: 1, 16>}, {transform_indices = @transform_7, window_bounds = array<i64: 128, 64>}]} {
    %c0 = arith.constant 0 : index
    %0 = memref.load %arg1[%c0] : memref<1xf32, #tpu.memory_space<smem>>
    %c0_0 = arith.constant 0 : index
    %c0_1 = arith.constant 0 : index
    %1 = vector.load %arg2[%c0_0, %c0_1] : memref<128x288xbf16, #tpu.memory_space<vmem>>, vector<128x288xbf16>
    %c0_2 = arith.constant 0 : index
    %c0_3 = arith.constant 0 : index
    %2 = vector.load %arg3[%c0_2, %c0_3] : memref<288x64xbf16, #tpu.memory_space<vmem>>, vector<288x64xbf16>
    %cst = arith.constant dense<0.000000e+00> : vector<128x64xf32>
    %3 = tpu.matmul %1, %2, %cst {dimension_numbers = #tpu.dot_dimension_numbers<[1], [0], [0], [1], [0, 0, 1, 1], [], []>} : vector<128x288xbf16>, vector<288x64xbf16>, vector<128x64xf32> -> vector<128x64xf32>
    %cst_4 = arith.constant dense<0.000000e+00> : vector<64xf32>
    %4 = vector.multi_reduction <add>, %3, %cst_4 [0] : vector<128x64xf32> to vector<64xf32>
    %5 = vector.shape_cast %4 : vector<64xf32> to vector<1x64xf32>
    %6 = arith.mulf %3, %3 : vector<128x64xf32>
    %cst_5 = arith.constant dense<0.000000e+00> : vector<64xf32>
    %7 = vector.multi_reduction <add>, %6, %cst_5 [0] : vector<128x64xf32> to vector<64xf32>
    %8 = vector.shape_cast %7 : vector<64xf32> to vector<1x64xf32>
    %c0_6 = arith.constant 0 : index
    %c0_7 = arith.constant 0 : index
    %9 = vector.load %arg4[%c0_6, %c0_7] : memref<64x16xf32, #tpu.memory_space<vmem>>, vector<64x16xf32>
    %cst_8 = arith.constant dense<0.000000e+00> : vector<1x16xf32>
    %10 = tpu.matmul %5, %9, %cst_8 {dimension_numbers = #tpu.dot_dimension_numbers<[1], [0], [0], [1], [0, 0, 1, 1], [], []>} : vector<1x64xf32>, vector<64x16xf32>, vector<1x16xf32> -> vector<1x16xf32>
    %c0_9 = arith.constant 0 : index
    %c0_10 = arith.constant 0 : index
    %11 = vector.load %arg4[%c0_9, %c0_10] : memref<64x16xf32, #tpu.memory_space<vmem>>, vector<64x16xf32>
    %cst_11 = arith.constant dense<0.000000e+00> : vector<1x16xf32>
    %12 = tpu.matmul %8, %11, %cst_11 {dimension_numbers = #tpu.dot_dimension_numbers<[1], [0], [0], [1], [0, 0, 1, 1], [], []>} : vector<1x64xf32>, vector<64x16xf32>, vector<1x16xf32> -> vector<1x16xf32>
    %13 = vector.broadcast %0 : f32 to vector<1x16xf32>
    %14 = arith.mulf %10, %13 : vector<1x16xf32>
    %15 = vector.broadcast %0 : f32 to vector<1x16xf32>
    %16 = arith.mulf %12, %15 : vector<1x16xf32>
    %17 = arith.mulf %14, %14 : vector<1x16xf32>
    %18 = arith.subf %16, %17 : vector<1x16xf32>
    %cst_12 = arith.constant 0.000000e+00 : f32
    %19 = vector.broadcast %cst_12 : f32 to vector<1x16xf32>
    %20 = arith.maximumf %18, %19 : vector<1x16xf32>
    %cst_13 = arith.constant 9.99999974E-6 : f32
    %21 = vector.broadcast %cst_13 : f32 to vector<1x16xf32>
    %22 = arith.addf %20, %21 : vector<1x16xf32>
    %23 = math.rsqrt %22 : vector<1x16xf32>
    %c0_14 = arith.constant 0 : index
    %c0_15 = arith.constant 0 : index
    %24 = vector.load %arg6[%c0_14, %c0_15] : memref<1x16xf32, #tpu.memory_space<vmem>>, vector<1x16xf32>
    %25 = arith.mulf %23, %24 : vector<1x16xf32>
    %c0_16 = arith.constant 0 : index
    %c0_17 = arith.constant 0 : index
    %26 = vector.load %arg7[%c0_16, %c0_17] : memref<1x16xf32, #tpu.memory_space<vmem>>, vector<1x16xf32>
    %27 = arith.mulf %14, %25 : vector<1x16xf32>
    %28 = arith.subf %26, %27 : vector<1x16xf32>
    %c0_18 = arith.constant 0 : index
    %c0_19 = arith.constant 0 : index
    %29 = vector.load %arg5[%c0_18, %c0_19] : memref<16x64xf32, #tpu.memory_space<vmem>>, vector<16x64xf32>
    %cst_20 = arith.constant dense<0.000000e+00> : vector<1x64xf32>
    %30 = tpu.matmul %25, %29, %cst_20 {dimension_numbers = #tpu.dot_dimension_numbers<[1], [0], [0], [1], [0, 0, 1, 1], [], []>} : vector<1x16xf32>, vector<16x64xf32>, vector<1x64xf32> -> vector<1x64xf32>
    %c0_21 = arith.constant 0 : index
    %c0_22 = arith.constant 0 : index
    %31 = vector.load %arg5[%c0_21, %c0_22] : memref<16x64xf32, #tpu.memory_space<vmem>>, vector<16x64xf32>
    %cst_23 = arith.constant dense<0.000000e+00> : vector<1x64xf32>
    %32 = tpu.matmul %28, %31, %cst_23 {dimension_numbers = #tpu.dot_dimension_numbers<[1], [0], [0], [1], [0, 0, 1, 1], [], []>} : vector<1x16xf32>, vector<16x64xf32>, vector<1x64xf32> -> vector<1x64xf32>
    %33 = vector.broadcast %30 : vector<1x64xf32> to vector<128x64xf32>
    %34 = arith.mulf %3, %33 : vector<128x64xf32>
    %35 = vector.broadcast %32 : vector<1x64xf32> to vector<128x64xf32>
    %36 = arith.addf %34, %35 : vector<128x64xf32>
    %cst_24 = arith.constant 0.000000e+00 : f32
    %37 = vector.broadcast %cst_24 : f32 to vector<128x64xf32>
    %38 = arith.maximumf %36, %37 : vector<128x64xf32>
    %39 = arith.truncf %38 : vector<128x64xf32> to vector<128x64xbf16>
    %c0_25 = arith.constant 0 : index
    %c0_26 = arith.constant 0 : index
    %40 = vector.load %arg8[%c0_25, %c0_26] : memref<128x64xbf16, #tpu.memory_space<vmem>>, vector<128x64xbf16>
    tpu.vector_store %arg8[%c0_25, %c0_26], %39 {strides = array<i32>} : memref<128x64xbf16, #tpu.memory_space<vmem>>, vector<128x64xbf16>,
    return
  }
  func.func @transform_0(%arg0: i32) -> i32 {
    %c0_i32 = arith.constant 0 : i32
    %c0_i32_0 = arith.constant 0 : i32
    return %c0_i32 : i32
  }
  func.func @transform_1(%arg0: i32) -> (i32, i32) {
    %c0_i32 = arith.constant 0 : i32
    %c0_i32_0 = arith.constant 0 : i32
    %c0_i32_1 = arith.constant 0 : i32
    return %c0_i32, %c0_i32_0 : i32, i32
  }
  func.func @transform_2(%arg0: i32) -> (i32, i32) {
    %c0_i32 = arith.constant 0 : i32
    %c0_i32_0 = arith.constant 0 : i32
    return %c0_i32, %arg0 : i32, i32
  }
  func.func @transform_3(%arg0: i32) -> (i32, i32) {
    %c0_i32 = arith.constant 0 : i32
    %c0_i32_0 = arith.constant 0 : i32
    return %arg0, %c0_i32 : i32, i32
  }
  func.func @transform_4(%arg0: i32) -> (i32, i32) {
    %c0_i32 = arith.constant 0 : i32
    %c0_i32_0 = arith.constant 0 : i32
    return %c0_i32, %arg0 : i32, i32
  }
  func.func @transform_5(%arg0: i32) -> (i32, i32) {
    %c0_i32 = arith.constant 0 : i32
    %c0_i32_0 = arith.constant 0 : i32
    %c0_i32_1 = arith.constant 0 : i32
    return %c0_i32, %c0_i32_0 : i32, i32
  }
  func.func @transform_6(%arg0: i32) -> (i32, i32) {
    %c0_i32 = arith.constant 0 : i32
    %c0_i32_0 = arith.constant 0 : i32
    %c0_i32_1 = arith.constant 0 : i32
    return %c0_i32, %c0_i32_0 : i32, i32
  }
  func.func @transform_7(%arg0: i32) -> (i32, i32) {
    %c0_i32 = arith.constant 0 : i32
    %c0_i32_0 = arith.constant 0 : i32
    return %c0_i32, %arg0 : i32, i32
  }
}

module attributes {stable_mosaic.version = 11 : i64} {
  func.func @_gemm_tanh_kernel(%arg0: i32, %arg1: memref<8x144xbf16, #tpu.memory_space<vmem>>, %arg2: memref<144x256xbf16, #tpu.memory_space<vmem>>, %arg3: memref<8x256xf32, #tpu.memory_space<vmem>>) attributes {dimension_semantics = [#tpu.dimension_semantics<parallel>], iteration_bounds = array<i64: 2>, scalar_prefetch = 0 : i64, scratch_operands = 0 : i64, tpu.core_type = #tpu.core_type<tc>, window_params = [{pipeline_mode = #tpu.pipeline_mode<synchronous>, transform_indices = @transform_0, window_bounds = array<i64: 8, 144>}, {transform_indices = @transform_1, window_bounds = array<i64: 144, 256>}, {transform_indices = @transform_2, window_bounds = array<i64: 8, 256>}]} {
    %c0 = arith.constant 0 : index
    %c0_0 = arith.constant 0 : index
    %0 = vector.load %arg1[%c0, %c0_0] : memref<8x144xbf16, #tpu.memory_space<vmem>>, vector<8x144xbf16>
    %c0_1 = arith.constant 0 : index
    %c0_2 = arith.constant 0 : index
    %1 = vector.load %arg2[%c0_1, %c0_2] : memref<144x256xbf16, #tpu.memory_space<vmem>>, vector<144x256xbf16>
    %cst = arith.constant dense<0.000000e+00> : vector<8x256xf32>
    %2 = tpu.matmul %0, %1, %cst {dimension_numbers = #tpu.dot_dimension_numbers<[1], [0], [0], [1], [0, 0, 1, 1], [], []>} : vector<8x144xbf16>, vector<144x256xbf16>, vector<8x256xf32> -> vector<8x256xf32>
    %3 = math.tanh %2 : vector<8x256xf32>
    %c0_3 = arith.constant 0 : index
    %c0_4 = arith.constant 0 : index
    %4 = vector.load %arg3[%c0_3, %c0_4] : memref<8x256xf32, #tpu.memory_space<vmem>>, vector<8x256xf32>
    tpu.vector_store %arg3[%c0_3, %c0_4], %3 {strides = array<i32>} : memref<8x256xf32, #tpu.memory_space<vmem>>, vector<8x256xf32>,
    return
  }
  func.func @transform_0(%arg0: i32) -> (i32, i32) {
    %c0_i32 = arith.constant 0 : i32
    %c0_i32_0 = arith.constant 0 : i32
    %c0_i32_1 = arith.constant 0 : i32
    return %c0_i32, %c0_i32_0 : i32, i32
  }
  func.func @transform_1(%arg0: i32) -> (i32, i32) {
    %c0_i32 = arith.constant 0 : i32
    %c0_i32_0 = arith.constant 0 : i32
    return %c0_i32, %arg0 : i32, i32
  }
  func.func @transform_2(%arg0: i32) -> (i32, i32) {
    %c0_i32 = arith.constant 0 : i32
    %c0_i32_0 = arith.constant 0 : i32
    return %c0_i32, %arg0 : i32, i32
  }
}

</mosaic_0001>

<llo_original>
// kernel: facegen_gan_forward.4
$region0: #{facegen_gan_forward.4}
  #allocation0 [shape = 'u32[]', space=smem, size = 0x4, offset = 0x4, fixed_abs, tag = 'smem constant byte address 0x4 - core index']
  #allocation1 [shape = 'u32[72,128]{1,0:T(1,128)}', space=vmem, size = 0x9000, scoped, tag = 'internal scratch']
  #allocation2 [shape = 'f32[1]{0:T(128)S(6)}', space=smem, size = 0x200, scoped, tag = 'scoped memory for facegen_gan_forward.4']
  %s0 = inlined_call_operand.<no memory space> [shape: f32[1], index: 0, kind: input, shape index: {}]
  %s1 = inlined_call_operand.vmem [shape: bf16[16,1024], index: 1, kind: input, shape index: {}]
  %s2 = inlined_call_operand.hbm [shape: bf16[1024,1024], index: 2, kind: input, shape index: {}]
  %s3 = inlined_call_operand.hbm [shape: f32[1024,64], index: 3, kind: input, shape index: {}]
  %s4 = inlined_call_operand.hbm [shape: f32[64,1024], index: 4, kind: input, shape index: {}]
  %s5 = inlined_call_operand.hbm [shape: f32[1,64], index: 5, kind: input, shape index: {}]
  %s6 = inlined_call_operand.vmem [shape: f32[1,64], index: 6, kind: input, shape index: {}]
  %s7 = inlined_call_operand.vmem [shape: bf16[16,1024], index: 7, kind: output, shape index: {}]
  %s8 = sld [smem:[#allocation0]]
  $region111: #{facegen_gan_forward.4} parent=0
    _
  %s10 = ssub.s32 1, %s8
  %s11 = scalar_select 0, %s10, %s8
  %12 = sst [smem:[#allocation2]] %s0
  $region1: #{facegen_gan_forward.4} parent=0
    #allocation3 [shape = 'u8[1048576]{0}', space=vmem, size = 0x100000, scoped, tag = 'input window, operand 2']
    #allocation4 [shape = 's32[2]{0}', space=sflag, size = 0x8, scoped, tag = 'scoped memory for facegen_gan_forward.4']
    #allocation5 [shape = 'u8[262144]{0}', space=vmem, size = 0x40000, scoped, tag = 'input window, operand 3']
    #allocation6 [shape = 's32[2]{0}', space=sflag, size = 0x8, scoped, tag = 'scoped memory for facegen_gan_forward.4']
    #allocation7 [shape = 'u8[131072]{0}', space=vmem, size = 0x20000, scoped, tag = 'input window, operand 4']
    #allocation8 [shape = 'u8[512]{0}', space=vmem, size = 0x400, scoped, tag = 'input window, operand 5, single buffered']
    #allocation9 [shape = 's32[1]{0}', space=sflag, size = 0x4, scoped, tag = 'scoped memory for facegen_gan_forward.4']
    #allocation10 [shape = 'u8[16384]{0}', space=vmem, size = 0x4000, scoped, tag = 'output window, operand 0']
    %13 = vsyncpa [#allocation4], 0
    %s14 = scalar_lea.sflag [#allocation4], 1
    %15 = vsyncpa %s14, 0
    %16 = vsyncpa [#allocation6], 0
    %s17 = scalar_lea.sflag [#allocation6], 1
    %18 = vsyncpa %s17, 0
    %19 = vsyncpa [#allocation9], 0
    loop: start=0, step=1, limit=6
    $region2: #{facegen_gan_forward.4} parent=1 // loop_pre_header
      _
    $region3: #{facegen_gan_forward.4} parent=1 // loop_header
      %s21 = sphi 0, %s25
      %p22 = scmp.ge.s32.totalorder %s21, 6
      %s29 = sphi 0, %s29
      %s31 = sphi 0, %s29
      %s32 = sphi 0, %s31
      %s46 = sphi 0, %s32
      %s50 = sphi 0, %s50
      %s52 = sphi 0, %s50
      %s53 = sphi 0, %s52
      %s67 = sphi 0, %s53
      %s73 = sphi 0, %s75
      %s76 = sphi 0, %s73
      %s77 = sphi 0, %s76
      %s93 = sphi 0, %s77
      %s99 = sphi 0, %s101
      %s102 = sphi 0, %s99
      %s103 = sphi 0, %s102
      %s119 = sphi 0, %s103
      %s125 = sphi 0, %s127
      %s128 = sphi 0, %s125
      %s129 = sphi 0, %s128
      %s145 = sphi 0, %s129
      %s149 = sphi 0, %s149
      %s151 = sphi 0, %s149
      %s152 = sphi 0, %s151
      %s166 = sphi 0, %s152
      %s170 = sphi 0, %s170
      %s172 = sphi 0, %s170
      %s173 = sphi 0, %s172
      %s187 = sphi 0, %s173
      %s193 = sphi 0, %s195
      %s196 = sphi 0, %s193
      %s197 = sphi 0, %s196
      %s213 = sphi 0, %s197
    $region4: #{facegen_gan_forward.4} parent=1 // loop_header_branch
      %24 = sbr.rel (%p22) target = $region8
    $region5: #{facegen_gan_forward.4} parent=1 // loop_body
      %s26 = ssub.s32 %s21, 1
      %s27 = ssub.s32 %s21, 2
      %s28 = sadd.s32 %s21, 1
      %s30 = sadd.s32 %s29, 1
      %p33 = scmp.eq.s32.totalorder %s21, 3
      %p34 = scmp.ne.s32.totalorder %s29, %s31
      %p35 = scmp.eq.s32.totalorder %s21, 0
      %p36 = por %p34, %p35
      %p37 = scmp.ne.s32.totalorder %s29, %s31
      %p38 = scmp.eq.s32.totalorder %s26, 3
      %p39 = por %p37, %p38
      %p40 = scmp.ne.s32.totalorder %s31, %s32
      %p41 = scmp.eq.s32.totalorder %s26, 0
      %p42 = por %p40, %p41
      %p43 = scmp.ne.s32.totalorder %s31, %s32
      %p44 = scmp.eq.s32.totalorder %s27, 3
      %p45 = por %p43, %p44
      %p47 = scmp.ne.s32.totalorder %s32, %s46
      %p48 = scmp.eq.s32.totalorder %s27, 0
      %p49 = por %p47, %p48
      %s51 = sadd.s32 %s50, 1
      %p54 = scmp.eq.s32.totalorder %s21, 3
      %p55 = scmp.ne.s32.totalorder %s50, %s52
      %p56 = scmp.eq.s32.totalorder %s21, 0
      %p57 = por %p55, %p56
      %p58 = scmp.ne.s32.totalorder %s50, %s52
      %p59 = scmp.eq.s32.totalorder %s26, 3
      %p60 = por %p58, %p59
      %p61 = scmp.ne.s32.totalorder %s52, %s53
      %p62 = scmp.eq.s32.totalorder %s26, 0
      %p63 = por %p61, %p62
      %p64 = scmp.ne.s32.totalorder %s52, %s53
      %p65 = scmp.eq.s32.totalorder %s27, 3
      %p66 = por %p64, %p65
      %p68 = scmp.ne.s32.totalorder %s53, %s67
      %p69 = scmp.eq.s32.totalorder %s27, 0
      %p70 = por %p68, %p69
      %s71 = ssub.s32 %s21, %s28
      %p72 = scmp.eq.s32.totalorder %s71, 0
      %s74 = sadd.s32 %s73, 1
      %s75 = scalar_select %p72, %s73, %s74
      %p78 = pneg %p72
      %p79 = scmp.eq.s32.totalorder %s21, 3
      %p80 = por %p78, %p79
      %p81 = scmp.ne.s32.totalorder %s73, %s76
      %p82 = scmp.eq.s32.totalorder %s21, 0
      %p83 = por %p81, %p82
      %p84 = scmp.ne.s32.totalorder %s73, %s76
      %p85 = scmp.eq.s32.totalorder %s26, 3
      %p86 = por %p84, %p85
      %p87 = scmp.ne.s32.totalorder %s76, %s77
      %p88 = scmp.eq.s32.totalorder %s26, 0
      %p89 = por %p87, %p88
      %p90 = scmp.ne.s32.totalorder %s76, %s77
      %p91 = scmp.eq.s32.totalorder %s27, 3
      %p92 = por %p90, %p91
      %p94 = scmp.ne.s32.totalorder %s77, %s93
      %p95 = scmp.eq.s32.totalorder %s27, 0
      %p96 = por %p94, %p95
      %s97 = ssub.s32 %s21, %s28
      %p98 = scmp.eq.s32.totalorder %s97, 0
      %s100 = sadd.s32 %s99, 1
      %s101 = scalar_select %p98, %s99, %s100
      %p104 = pneg %p98
      %p105 = scmp.eq.s32.totalorder %s21, 3
      %p106 = por %p104, %p105
      %p107 = scmp.ne.s32.totalorder %s99, %s102
      %p108 = scmp.eq.s32.totalorder %s21, 0
      %p109 = por %p107, %p108
      %p110 = scmp.ne.s32.totalorder %s99, %s102
      %p111 = scmp.eq.s32.totalorder %s26, 3
      %p112 = por %p110, %p111
      %p113 = scmp.ne.s32.totalorder %s102, %s103
      %p114 = scmp.eq.s32.totalorder %s26, 0
      %p115 = por %p113, %p114
      %p116 = scmp.ne.s32.totalorder %s102, %s103
      %p117 = scmp.eq.s32.totalorder %s27, 3
      %p118 = por %p116, %p117
      %p120 = scmp.ne.s32.totalorder %s103, %s119
      %p121 = scmp.eq.s32.totalorder %s27, 0
      %p122 = por %p120, %p121
      %s123 = ssub.s32 %s21, %s28
      %p124 = scmp.eq.s32.totalorder %s123, 0
      %s126 = sadd.s32 %s125, 1
      %s127 = scalar_select %p124, %s125, %s126
      %p130 = pneg %p124
      %p131 = scmp.eq.s32.totalorder %s21, 3
      %p132 = por %p130, %p131
      %p133 = scmp.ne.s32.totalorder %s125, %s128
      %p134 = scmp.eq.s32.totalorder %s21, 0
      %p135 = por %p133, %p134
      %p136 = scmp.ne.s32.totalorder %s125, %s128
      %p137 = scmp.eq.s32.totalorder %s26, 3
      %p138 = por %p136, %p137
      %p139 = scmp.ne.s32.totalorder %s128, %s129
      %p140 = scmp.eq.s32.totalorder %s26, 0
      %p141 = por %p139, %p140
      %p142 = scmp.ne.s32.totalorder %s128, %s129
      %p143 = scmp.eq.s32.totalorder %s27, 3
      %p144 = por %p142, %p143
      %p146 = scmp.ne.s32.totalorder %s129, %s145
      %p147 = scmp.eq.s32.totalorder %s27, 0
      %p148 = por %p146, %p147
      %s150 = sadd.s32 %s149, 1
      %p153 = scmp.eq.s32.totalorder %s21, 3
      %p154 = scmp.ne.s32.totalorder %s149, %s151
      %p155 = scmp.eq.s32.totalorder %s21, 0
      %p156 = por %p154, %p155
      %p157 = scmp.ne.s32.totalorder %s149, %s151
      %p158 = scmp.eq.s32.totalorder %s26, 3
      %p159 = por %p157, %p158
      %p160 = scmp.ne.s32.totalorder %s151, %s152
      %p161 = scmp.eq.s32.totalorder %s26, 0
      %p162 = por %p160, %p161
      %p163 = scmp.ne.s32.totalorder %s151, %s152
      %p164 = scmp.eq.s32.totalorder %s27, 3
      %p165 = por %p163, %p164
      %p167 = scmp.ne.s32.totalorder %s152, %s166
      %p168 = scmp.eq.s32.totalorder %s27, 0
      %p169 = por %p167, %p168
      %s171 = sadd.s32 %s170, 1
      %p174 = scmp.eq.s32.totalorder %s21, 3
      %p175 = scmp.ne.s32.totalorder %s170, %s172
      %p176 = scmp.eq.s32.totalorder %s21, 0
      %p177 = por %p175, %p176
      %p178 = scmp.ne.s32.totalorder %s170, %s172
      %p179 = scmp.eq.s32.totalorder %s26, 3
      %p180 = por %p178, %p179
      %p181 = scmp.ne.s32.totalorder %s172, %s173
      %p182 = scmp.eq.s32.totalorder %s26, 0
      %p183 = por %p181, %p182
      %p184 = scmp.ne.s32.totalorder %s172, %s173
      %p185 = scmp.eq.s32.totalorder %s27, 3
      %p186 = por %p184, %p185
      %p188 = scmp.ne.s32.totalorder %s173, %s187
      %p189 = scmp.eq.s32.totalorder %s27, 0
      %p190 = por %p188, %p189
      %s191 = ssub.s32 %s21, %s28
      %p192 = scmp.eq.s32.totalorder %s191, 0
      %s194 = sadd.s32 %s193, 1
      %s195 = scalar_select %p192, %s193, %s194
      %p198 = pneg %p192
      %p199 = scmp.eq.s32.totalorder %s21, 3
      %p200 = por %p198, %p199
      %p201 = scmp.ne.s32.totalorder %s193, %s196
      %p202 = scmp.eq.s32.totalorder %s21, 0
      %p203 = por %p201, %p202
      %p204 = scmp.ne.s32.totalorder %s193, %s196
      %p205 = scmp.eq.s32.totalorder %s26, 3
      %p206 = por %p204, %p205
      %p207 = scmp.ne.s32.totalorder %s196, %s197
      %p208 = scmp.eq.s32.totalorder %s26, 0
      %p209 = por %p207, %p208
      %p210 = scmp.ne.s32.totalorder %s196, %s197
      %p211 = scmp.eq.s32.totalorder %s27, 3
      %p212 = por %p210, %p211
      %p214 = scmp.ne.s32.totalorder %s197, %s213
      %p215 = scmp.eq.s32.totalorder %s27, 0
      %p216 = por %p214, %p215
      %p217 = scmp.le.s32.totalorder 1, %s21
      %p218 = scmp.lt.s32.totalorder %s21, 5
      %p219 = pnand %p217, %p218
      %p220 = pneg %p219
      // Predicated region
      $region9: #{facegen_gan_forward.4} parent=5 // pred_check
        _
      $region10: #{facegen_gan_forward.4} parent=5 // pred_check_branch
        %222 = sbr.rel (%p219) target = $region12
      $region11: #{facegen_gan_forward.4} parent=5 // pred_region
        %s223 = ssub.s32 %s21, 1
        // Predicated region
        $region13: #{facegen_gan_forward.4} parent=11 // pred_check
          %p224 = pneg %p42
        $region14: #{facegen_gan_forward.4} parent=11 // pred_check_branch
          %226 = sbr.rel (%p224) target = $region16
        $region15: #{facegen_gan_forward.4} parent=11 // pred_region
          _
        $region16: #{facegen_gan_forward.4} parent=11 // pred_fallthru
          _
        // Predicated region
        $region17: #{facegen_gan_forward.4} parent=11 // pred_check
          %p227 = pneg %p63
        $region18: #{facegen_gan_forward.4} parent=11 // pred_check_branch
          %229 = sbr.rel (%p227) target = $region20
        $region19: #{facegen_gan_forward.4} parent=11 // pred_region
          _
        $region20: #{facegen_gan_forward.4} parent=11 // pred_fallthru
          _
        // Predicated region
        $region21: #{facegen_gan_forward.4} parent=11 // pred_check
          %p230 = pneg %p162
        $region22: #{facegen_gan_forward.4} parent=11 // pred_check_branch
          %232 = sbr.rel (%p230) target = $region24
        $region23: #{facegen_gan_forward.4} parent=11 // pred_region
          %234 = vsyncadd [#allocation9], 0
          %s236 = sshll.u32 %s5, 4
          %s237 = int_to_ptr.hbm [resolvable:$true] %s236
          %s238 = sshll.u32 [#allocation8], 4
          %s239 = int_to_ptr.vmem [resolvable:$true] %s238
          %241 = dma.hbm_to_vmem [thread:$0]  %s237, 16, %s239, [#allocation9]
        $region24: #{facegen_gan_forward.4} parent=11 // pred_fallthru
          _
        // Predicated region
        $region25: #{facegen_gan_forward.4} parent=11 // pred_check
          %p242 = pneg %p183
        $region26: #{facegen_gan_forward.4} parent=11 // pred_check_branch
          %244 = sbr.rel (%p242) target = $region28
        $region27: #{facegen_gan_forward.4} parent=11 // pred_region
          _
        $region28: #{facegen_gan_forward.4} parent=11 // pred_fallthru
          _
      $region12: #{facegen_gan_forward.4} parent=5 // pred_fallthru
        _
      %p245 = scmp.lt.s32.totalorder %s21, 4
      // Predicated region
      $region29: #{facegen_gan_forward.4} parent=5 // pred_check
        %p246 = pneg %p245
      $region30: #{facegen_gan_forward.4} parent=5 // pred_check_branch
        %248 = sbr.rel (%p246) target = $region32
      $region31: #{facegen_gan_forward.4} parent=5 // pred_region
        // Predicated region
        $region33: #{facegen_gan_forward.4} parent=31 // pred_check
          %p249 = pneg %p83
        $region34: #{facegen_gan_forward.4} parent=31 // pred_check_branch
          %251 = sbr.rel (%p249) target = $region36
        $region35: #{facegen_gan_forward.4} parent=31 // pred_region
          %s252 = sand.u32 %s73, 1
          %s253 = scalar_lea.sflag [#allocation4], %s252
          %s254 = sand.u32 %s73, 1
          %s255 = smul.addr %s254, 1024
          %s256 = scalar_lea.vmem [#allocation3], %s255
          %s257 = smul.u32 2, %s21
          %259 = vsyncadd %s253, 0
          %s260 = smul.addr %s257, 4
          %s261 = scalar_lea.hbm %s2, %s260
          %s262 = sshll.u32 %s261, 4
          %s263 = int_to_ptr.hbm [resolvable:$true] %s262
          %s264 = sshll.u32 %s256, 4
          %s265 = int_to_ptr.vmem [resolvable:$true] %s264
          %270 = dma.hbm_to_vmem [thread:$0]  %s263, 16384, %s265, %s253, 512, 128, 8
        $region36: #{facegen_gan_forward.4} parent=31 // pred_fallthru
          _
        // Predicated region
        $region37: #{facegen_gan_forward.4} parent=31 // pred_check
          %p271 = pneg %p109
        $region38: #{facegen_gan_forward.4} parent=31 // pred_check_branch
          %273 = sbr.rel (%p271) target = $region40
        $region39: #{facegen_gan_forward.4} parent=31 // pred_region
          %s274 = sand.u32 %s21, 1
          %s275 = scalar_lea.sflag [#allocation6], %s274
          %s276 = sand.u32 %s99, 1
          %s277 = smul.addr %s276, 256
          %s278 = scalar_lea.vmem [#allocation5], %s277
          %s279 = smul.u32 32, %s21
          %281 = vsyncadd %s275, 0
          %s282 = smul.addr %s279, 8
          %s283 = scalar_lea.hbm %s3, %s282
          %s284 = sshll.u32 %s283, 4
          %s285 = int_to_ptr.hbm [resolvable:$true] %s284
          %s286 = sshll.u32 %s278, 4
          %s287 = int_to_ptr.vmem [resolvable:$true] %s286
          %292 = dma.hbm_to_vmem [thread:$0]  %s285, 4096, %s287, %s275, 128, 128, 8
        $region40: #{facegen_gan_forward.4} parent=31 // pred_fallthru
          _
        // Predicated region
        $region41: #{facegen_gan_forward.4} parent=31 // pred_check
          %p293 = pneg %p135
        $region42: #{facegen_gan_forward.4} parent=31 // pred_check_branch
          %295 = sbr.rel (%p293) target = $region44
        $region43: #{facegen_gan_forward.4} parent=31 // pred_region
          %s296 = sand.u32 %s21, 1
          %s297 = scalar_lea.sflag [#allocation6], %s296
          %s298 = sand.u32 %s125, 1
          %s299 = smul.addr %s298, 128
          %s300 = scalar_lea.vmem [#allocation7], %s299
          %s301 = smul.u32 2, %s21
          %303 = vsyncadd %s297, 0
          %s304 = smul.addr %s301, 8
          %s305 = scalar_lea.hbm %s4, %s304
          %s306 = sshll.u32 %s305, 4
          %s307 = int_to_ptr.hbm [resolvable:$true] %s306
          %s308 = sshll.u32 %s300, 4
          %s309 = int_to_ptr.vmem [resolvable:$true] %s308
          %314 = dma.hbm_to_vmem [thread:$0]  %s307, 2048, %s309, %s297, 1024, 256, 16
        $region44: #{facegen_gan_forward.4} parent=31 // pred_fallthru
          _
      $region32: #{facegen_gan_forward.4} parent=5 // pred_fallthru
        _
      %p315 = scmp.le.s32.totalorder 1, %s21
      %p316 = scmp.lt.s32.totalorder %s21, 5
      %p317 = pnand %p315, %p316
      %p318 = pneg %p317
      // Predicated region
      $region45: #{facegen_gan_forward.4} parent=5 // pred_check
        _
      $region46: #{facegen_gan_forward.4} parent=5 // pred_check_branch
        %320 = sbr.rel (%p317) target = $region48
      $region47: #{facegen_gan_forward.4} parent=5 // pred_region
        %s321 = ssub.s32 %s21, 1
        %s322 = sand.u32 %s76, 1
        %s323 = scalar_lea.sflag [#allocation4], %s322
        %s324 = sand.u32 %s76, 1
        %s325 = smul.addr %s324, 1024
        %s326 = scalar_lea.vmem [#allocation3], %s325
        // Predicated region
        $region49: #{facegen_gan_forward.4} parent=47 // pred_check
          %p327 = pneg %p89
        $region50: #{facegen_gan_forward.4} parent=47 // pred_check_branch
          %329 = sbr.rel (%p327) target = $region52
        $region51: #{facegen_gan_forward.4} parent=47 // pred_region
          %331 = dma.done %s323, 16384
        $region52: #{facegen_gan_forward.4} parent=47 // pred_fallthru
          _
        %s332 = sand.u32 %s26, 1
        %s333 = scalar_lea.sflag [#allocation6], %s332
        %s334 = sand.u32 %s102, 1
        %s335 = smul.addr %s334, 256
        %s336 = scalar_lea.vmem [#allocation5], %s335
        // Predicated region
        $region53: #{facegen_gan_forward.4} parent=47 // pred_check
          %p337 = pneg %p115
        $region54: #{facegen_gan_forward.4} parent=47 // pred_check_branch
          %339 = sbr.rel (%p337) target = $region56
        $region55: #{facegen_gan_forward.4} parent=47 // pred_region
          %341 = dma.done %s333, 4096
        $region56: #{facegen_gan_forward.4} parent=47 // pred_fallthru
          _
        %s342 = sand.u32 %s26, 1
        %s343 = scalar_lea.sflag [#allocation6], %s342
        %s344 = sand.u32 %s128, 1
        %s345 = smul.addr %s344, 128
        %s346 = scalar_lea.vmem [#allocation7], %s345
        // Predicated region
        $region57: #{facegen_gan_forward.4} parent=47 // pred_check
          %p347 = pneg %p141
        $region58: #{facegen_gan_forward.4} parent=47 // pred_check_branch
          %349 = sbr.rel (%p347) target = $region60
        $region59: #{facegen_gan_forward.4} parent=47 // pred_region
          %351 = dma.done %s343, 2048
        $region60: #{facegen_gan_forward.4} parent=47 // pred_fallthru
          _
        // Predicated region
        $region61: #{facegen_gan_forward.4} parent=47 // pred_check
          %p352 = pneg %p162
        $region62: #{facegen_gan_forward.4} parent=47 // pred_check_branch
          %354 = sbr.rel (%p352) target = $region64
        $region63: #{facegen_gan_forward.4} parent=47 // pred_region
          %356 = dma.done [#allocation9], 16
        $region64: #{facegen_gan_forward.4} parent=47 // pred_fallthru
          _
        %p357 = pneg %p42
        %p358 = pneg %p39
        %p359 = pneg %p63
        %p360 = pneg %p60
        %s361 = sand.u32 %s76, 1
        %s362 = scalar_lea.sflag [#allocation4], %s361
        %s363 = sand.u32 %s76, 1
        %s364 = smul.addr %s363, 1024
        %s365 = scalar_lea.vmem [#allocation3], %s364
        %p366 = pneg %p89
        %p367 = pneg %p86
        %s368 = sand.u32 %s26, 1
        %s369 = scalar_lea.sflag [#allocation6], %s368
        %s370 = sand.u32 %s102, 1
        %s371 = smul.addr %s370, 256
        %s372 = scalar_lea.vmem [#allocation5], %s371
        %p373 = pneg %p115
        %p374 = pneg %p112
        %s375 = sand.u32 %s26, 1
        %s376 = scalar_lea.sflag [#allocation6], %s375
        %s377 = sand.u32 %s128, 1
        %s378 = smul.addr %s377, 128
        %s379 = scalar_lea.vmem [#allocation7], %s378
        %p380 = pneg %p141
        %p381 = pneg %p138
        %p382 = pneg %p162
        %p383 = pneg %p159
        %p384 = pneg %p183
        %p385 = pneg %p180
        %p386 = pneg %p209
        %p387 = pneg %p206
        %s388 = sand.u32 %s196, 1
        %s389 = sand.u32 %s196, 1
        %s390 = smul.addr %s389, 16
        %s391 = scalar_lea.vmem [#allocation10], %s390
        %s392 = smul.u32 2, %s26
        %s393 = smul.u32 32, %s26
        %s394 = smul.u32 2, %s26
        %s395 = smul.u32 2, %s26
        %s396 = sld [smem:[#allocation2]]
        %v397 = vld [vmem:[%s1] sm:$0xff]
        %v398 = vld [vmem:[%s1 + $0x8] sm:$0xff]
        %v399 = vld [vmem:[%s1 + $0x10] sm:$0xff]
        %v400 = vld [vmem:[%s1 + $0x18] sm:$0xff]
        %v401 = vld [vmem:[%s1 + $0x20] sm:$0xff]
        %v402 = vld [vmem:[%s1 + $0x28] sm:$0xff]
        %v403 = vld [vmem:[%s1 + $0x30] sm:$0xff]
        %v404 = vld [vmem:[%s1 + $0x38] sm:$0xff]
        %v405 = vld [vmem:[%s326] sm:$0xff]
        %v406 = vld [vmem:[%s326 + $0x8] sm:$0xff]
        %v407 = vld [vmem:[%s326 + $0x10] sm:$0xff]
        %v408 = vld [vmem:[%s326 + $0x18] sm:$0xff]
        %v409 = vld [vmem:[%s326 + $0x20] sm:$0xff]
        %v410 = vld [vmem:[%s326 + $0x28] sm:$0xff]
        %v411 = vld [vmem:[%s326 + $0x30] sm:$0xff]
        %v412 = vld [vmem:[%s326 + $0x38] sm:$0xff]
        %v413 = vld [vmem:[%s326 + $0x40] sm:$0xff]
        %v414 = vld [vmem:[%s326 + $0x48] sm:$0xff]
        %v415 = vld [vmem:[%s326 + $0x50] sm:$0xff]
        %v416 = vld [vmem:[%s326 + $0x58] sm:$0xff]
        %v417 = vld [vmem:[%s326 + $0x60] sm:$0xff]
        %v418 = vld [vmem:[%s326 + $0x68] sm:$0xff]
        %v419 = vld [vmem:[%s326 + $0x70] sm:$0xff]
        %v420 = vld [vmem:[%s326 + $0x78] sm:$0xff]
        %v421 = vld [vmem:[%s326 + $0x80] sm:$0xff]
        %v422 = vld [vmem:[%s326 + $0x88] sm:$0xff]
        %v423 = vld [vmem:[%s326 + $0x90] sm:$0xff]
        %v424 = vld [vmem:[%s326 + $0x98] sm:$0xff]
        %v425 = vld [vmem:[%s326 + $0xa0] sm:$0xff]
        %v426 = vld [vmem:[%s326 + $0xa8] sm:$0xff]
        %v427 = vld [vmem:[%s326 + $0xb0] sm:$0xff]
        %v428 = vld [vmem:[%s326 + $0xb8] sm:$0xff]
        %v429 = vld [vmem:[%s326 + $0xc0] sm:$0xff]
        %v430 = vld [vmem:[%s326 + $0xc8] sm:$0xff]
        %v431 = vld [vmem:[%s326 + $0xd0] sm:$0xff]
        %v432 = vld [vmem:[%s326 + $0xd8] sm:$0xff]
        %v433 = vld [vmem:[%s326 + $0xe0] sm:$0xff]
        %v434 = vld [vmem:[%s326 + $0xe8] sm:$0xff]
        %v435 = vld [vmem:[%s326 + $0xf0] sm:$0xff]
        %v436 = vld [vmem:[%s326 + $0xf8] sm:$0xff]
        %v437 = vld [vmem:[%s326 + $0x100] sm:$0xff]
        %v438 = vld [vmem:[%s326 + $0x108] sm:$0xff]
        %v439 = vld [vmem:[%s326 + $0x110] sm:$0xff]
        %v440 = vld [vmem:[%s326 + $0x118] sm:$0xff]
        %v441 = vld [vmem:[%s326 + $0x120] sm:$0xff]
        %v442 = vld [vmem:[%s326 + $0x128] sm:$0xff]
        %v443 = vld [vmem:[%s326 + $0x130] sm:$0xff]
        %v444 = vld [vmem:[%s326 + $0x138] sm:$0xff]
        %v445 = vld [vmem:[%s326 + $0x140] sm:$0xff]
        %v446 = vld [vmem:[%s326 + $0x148] sm:$0xff]
        %v447 = vld [vmem:[%s326 + $0x150] sm:$0xff]
        %v448 = vld [vmem:[%s326 + $0x158] sm:$0xff]
        %v449 = vld [vmem:[%s326 + $0x160] sm:$0xff]
        %v450 = vld [vmem:[%s326 + $0x168] sm:$0xff]
        %v451 = vld [vmem:[%s326 + $0x170] sm:$0xff]
        %v452 = vld [vmem:[%s326 + $0x178] sm:$0xff]
        %v453 = vld [vmem:[%s326 + $0x180] sm:$0xff]
        %v454 = vld [vmem:[%s326 + $0x188] sm:$0xff]
        %v455 = vld [vmem:[%s326 + $0x190] sm:$0xff]
        %v456 = vld [vmem:[%s326 + $0x198] sm:$0xff]
        %v457 = vld [vmem:[%s326 + $0x1a0] sm:$0xff]
        %v458 = vld [vmem:[%s326 + $0x1a8] sm:$0xff]
        %v459 = vld [vmem:[%s326 + $0x1b0] sm:$0xff]
        %v460 = vld [vmem:[%s326 + $0x1b8] sm:$0xff]
        %v461 = vld [vmem:[%s326 + $0x1c0] sm:$0xff]
        %v462 = vld [vmem:[%s326 + $0x1c8] sm:$0xff]
        %v463 = vld [vmem:[%s326 + $0x1d0] sm:$0xff]
        %v464 = vld [vmem:[%s326 + $0x1d8] sm:$0xff]
        %v465 = vld [vmem:[%s326 + $0x1e0] sm:$0xff]
        %v466 = vld [vmem:[%s326 + $0x1e8] sm:$0xff]
        %v467 = vld [vmem:[%s326 + $0x1f0] sm:$0xff]
        %v468 = vld [vmem:[%s326 + $0x1f8] sm:$0xff]
        %v469 = vld [vmem:[%s326 + $0x200] sm:$0xff]
        %v470 = vld [vmem:[%s326 + $0x208] sm:$0xff]
        %v471 = vld [vmem:[%s326 + $0x210] sm:$0xff]
        %v472 = vld [vmem:[%s326 + $0x218] sm:$0xff]
        %v473 = vld [vmem:[%s326 + $0x220] sm:$0xff]
        %v474 = vld [vmem:[%s326 + $0x228] sm:$0xff]
        %v475 = vld [vmem:[%s326 + $0x230] sm:$0xff]
        %v476 = vld [vmem:[%s326 + $0x238] sm:$0xff]
        %v477 = vld [vmem:[%s326 + $0x240] sm:$0xff]
        %v478 = vld [vmem:[%s326 + $0x248] sm:$0xff]
        %v479 = vld [vmem:[%s326 + $0x250] sm:$0xff]
        %v480 = vld [vmem:[%s326 + $0x258] sm:$0xff]
        %v481 = vld [vmem:[%s326 + $0x260] sm:$0xff]
        %v482 = vld [vmem:[%s326 + $0x268] sm:$0xff]
        %v483 = vld [vmem:[%s326 + $0x270] sm:$0xff]
        %v484 = vld [vmem:[%s326 + $0x278] sm:$0xff]
        %v485 = vld [vmem:[%s326 + $0x280] sm:$0xff]
        %v486 = vld [vmem:[%s326 + $0x288] sm:$0xff]
        %v487 = vld [vmem:[%s326 + $0x290] sm:$0xff]
        %v488 = vld [vmem:[%s326 + $0x298] sm:$0xff]
        %v489 = vld [vmem:[%s326 + $0x2a0] sm:$0xff]
        %v490 = vld [vmem:[%s326 + $0x2a8] sm:$0xff]
        %v491 = vld [vmem:[%s326 + $0x2b0] sm:$0xff]
        %v492 = vld [vmem:[%s326 + $0x2b8] sm:$0xff]
        %v493 = vld [vmem:[%s326 + $0x2c0] sm:$0xff]
        %v494 = vld [vmem:[%s326 + $0x2c8] sm:$0xff]
        %v495 = vld [vmem:[%s326 + $0x2d0] sm:$0xff]
        %v496 = vld [vmem:[%s326 + $0x2d8] sm:$0xff]
        %v497 = vld [vmem:[%s326 + $0x2e0] sm:$0xff]
        %v498 = vld [vmem:[%s326 + $0x2e8] sm:$0xff]
        %v499 = vld [vmem:[%s326 + $0x2f0] sm:$0xff]
        %v500 = vld [vmem:[%s326 + $0x2f8] sm:$0xff]
        %v501 = vld [vmem:[%s326 + $0x300] sm:$0xff]
        %v502 = vld [vmem:[%s326 + $0x308] sm:$0xff]
        %v503 = vld [vmem:[%s326 + $0x310] sm:$0xff]
        %v504 = vld [vmem:[%s326 + $0x318] sm:$0xff]
        %v505 = vld [vmem:[%s326 + $0x320] sm:$0xff]
        %v506 = vld [vmem:[%s326 + $0x328] sm:$0xff]
        %v507 = vld [vmem:[%s326 + $0x330] sm:$0xff]
        %v508 = vld [vmem:[%s326 + $0x338] sm:$0xff]
        %v509 = vld [vmem:[%s326 + $0x340] sm:$0xff]
        %v510 = vld [vmem:[%s326 + $0x348] sm:$0xff]
        %v511 = vld [vmem:[%s326 + $0x350] sm:$0xff]
        %v512 = vld [vmem:[%s326 + $0x358] sm:$0xff]
        %v513 = vld [vmem:[%s326 + $0x360] sm:$0xff]
        %v514 = vld [vmem:[%s326 + $0x368] sm:$0xff]
        %v515 = vld [vmem:[%s326 + $0x370] sm:$0xff]
        %v516 = vld [vmem:[%s326 + $0x378] sm:$0xff]
        %v517 = vld [vmem:[%s326 + $0x380] sm:$0xff]
        %v518 = vld [vmem:[%s326 + $0x388] sm:$0xff]
        %v519 = vld [vmem:[%s326 + $0x390] sm:$0xff]
        %v520 = vld [vmem:[%s326 + $0x398] sm:$0xff]
        %v521 = vld [vmem:[%s326 + $0x3a0] sm:$0xff]
        %v522 = vld [vmem:[%s326 + $0x3a8] sm:$0xff]
        %v523 = vld [vmem:[%s326 + $0x3b0] sm:$0xff]
        %v524 = vld [vmem:[%s326 + $0x3b8] sm:$0xff]
        %v525 = vld [vmem:[%s326 + $0x3c0] sm:$0xff]
        %v526 = vld [vmem:[%s326 + $0x3c8] sm:$0xff]
        %v527 = vld [vmem:[%s326 + $0x3d0] sm:$0xff]
        %v528 = vld [vmem:[%s326 + $0x3d8] sm:$0xff]
        %v529 = vld [vmem:[%s326 + $0x3e0] sm:$0xff]
        %v530 = vld [vmem:[%s326 + $0x3e8] sm:$0xff]
        %v531 = vld [vmem:[%s326 + $0x3f0] sm:$0xff]
        %v532 = vld [vmem:[%s326 + $0x3f8] sm:$0xff]
        %v541 = vunpack.c.l.b16 %v397
        %v542 = vunpack.c.h.b16 %v397
        %v543 = vunpack.c.l.b16 %v398
        %v544 = vunpack.c.h.b16 %v398
        %v545 = vunpack.c.l.b16 %v399
        %v546 = vunpack.c.h.b16 %v399
        %v547 = vunpack.c.l.b16 %v400
        %v548 = vunpack.c.h.b16 %v400
        %v549 = vunpack.c.l.b16 %v401
        %v550 = vunpack.c.h.b16 %v401
        %v551 = vunpack.c.l.b16 %v402
        %v552 = vunpack.c.h.b16 %v402
        %v553 = vunpack.c.l.b16 %v403
        %v554 = vunpack.c.h.b16 %v403
        %v555 = vunpack.c.l.b16 %v404
        %v556 = vunpack.c.h.b16 %v404
        %v557 = vpack.c.b16 %v549, %v541
        %v558 = vpack.c.b16 %v550, %v542
        %v559 = vpack.c.b16 %v551, %v543
        %v560 = vpack.c.b16 %v552, %v544
        %v561 = vpack.c.b16 %v553, %v545
        %v562 = vpack.c.b16 %v554, %v546
        %v563 = vpack.c.b16 %v555, %v547
        %v564 = vpack.c.b16 %v556, %v548
        %v701 = vunpack.c.l.b16 %v405
        %v702 = vunpack.c.h.b16 %v405
        %v703 = vunpack.c.l.b16 %v406
        %v704 = vunpack.c.h.b16 %v406
        %v705 = vunpack.c.l.b16 %v407
        %v706 = vunpack.c.h.b16 %v407
        %v707 = vunpack.c.l.b16 %v408
        %v708 = vunpack.c.h.b16 %v408
        %v709 = vunpack.c.l.b16 %v409
        %v710 = vunpack.c.h.b16 %v409
        %v711 = vunpack.c.l.b16 %v410
        %v712 = vunpack.c.h.b16 %v410
        %v713 = vunpack.c.l.b16 %v411
        %v714 = vunpack.c.h.b16 %v411
        %v715 = vunpack.c.l.b16 %v412
        %v716 = vunpack.c.h.b16 %v412
        %v717 = vunpack.c.l.b16 %v413
        %v718 = vunpack.c.h.b16 %v413
        %v719 = vunpack.c.l.b16 %v414
        %v720 = vunpack.c.h.b16 %v414
        %v721 = vunpack.c.l.b16 %v415
        %v722 = vunpack.c.h.b16 %v415
        %v723 = vunpack.c.l.b16 %v416
        %v724 = vunpack.c.h.b16 %v416
        %v725 = vunpack.c.l.b16 %v417
        %v726 = vunpack.c.h.b16 %v417
        %v727 = vunpack.c.l.b16 %v418
        %v728 = vunpack.c.h.b16 %v418
        %v729 = vunpack.c.l.b16 %v419
        %v730 = vunpack.c.h.b16 %v419
        %v731 = vunpack.c.l.b16 %v420
        %v732 = vunpack.c.h.b16 %v420
        %v733 = vunpack.c.l.b16 %v421
        %v734 = vunpack.c.h.b16 %v421
        %v735 = vunpack.c.l.b16 %v422
        %v736 = vunpack.c.h.b16 %v422
        %v737 = vunpack.c.l.b16 %v423
        %v738 = vunpack.c.h.b16 %v423
        %v739 = vunpack.c.l.b16 %v424
        %v740 = vunpack.c.h.b16 %v424
        %v741 = vunpack.c.l.b16 %v425
        %v742 = vunpack.c.h.b16 %v425
        %v743 = vunpack.c.l.b16 %v426
        %v744 = vunpack.c.h.b16 %v426
        %v745 = vunpack.c.l.b16 %v427
        %v746 = vunpack.c.h.b16 %v427
        %v747 = vunpack.c.l.b16 %v428
        %v748 = vunpack.c.h.b16 %v428
        %v749 = vunpack.c.l.b16 %v429
        %v750 = vunpack.c.h.b16 %v429
        %v751 = vunpack.c.l.b16 %v430
        %v752 = vunpack.c.h.b16 %v430
        %v753 = vunpack.c.l.b16 %v431
        %v754 = vunpack.c.h.b16 %v431
        %v755 = vunpack.c.l.b16 %v432
        %v756 = vunpack.c.h.b16 %v432
        %v757 = vunpack.c.l.b16 %v433
        %v758 = vunpack.c.h.b16 %v433
        %v759 = vunpack.c.l.b16 %v434
        %v760 = vunpack.c.h.b16 %v434
        %v761 = vunpack.c.l.b16 %v435
        %v762 = vunpack.c.h.b16 %v435
        %v763 = vunpack.c.l.b16 %v436
        %v764 = vunpack.c.h.b16 %v436
        %v765 = vunpack.c.l.b16 %v437
        %v766 = vunpack.c.h.b16 %v437
        %v767 = vunpack.c.l.b16 %v438
        %v768 = vunpack.c.h.b16 %v438
        %v769 = vunpack.c.l.b16 %v439
        %v770 = vunpack.c.h.b16 %v439
        %v771 = vunpack.c.l.b16 %v440
        %v772 = vunpack.c.h.b16 %v440
        %v773 = vunpack.c.l.b16 %v441
        %v774 = vunpack.c.h.b16 %v441
        %v775 = vunpack.c.l.b16 %v442
        %v776 = vunpack.c.h.b16 %v442
        %v777 = vunpack.c.l.b16 %v443
        %v778 = vunpack.c.h.b16 %v443
        %v779 = vunpack.c.l.b16 %v444
        %v780 = vunpack.c.h.b16 %v444
        %v781 = vunpack.c.l.b16 %v445
        %v782 = vunpack.c.h.b16 %v445
        %v783 = vunpack.c.l.b16 %v446
        %v784 = vunpack.c.h.b16 %v446
        %v785 = vunpack.c.l.b16 %v447
        %v786 = vunpack.c.h.b16 %v447
        %v787 = vunpack.c.l.b16 %v448
        %v788 = vunpack.c.h.b16 %v448
        %v789 = vunpack.c.l.b16 %v449
        %v790 = vunpack.c.h.b16 %v449
        %v791 = vunpack.c.l.b16 %v450
        %v792 = vunpack.c.h.b16 %v450
        %v793 = vunpack.c.l.b16 %v451
        %v794 = vunpack.c.h.b16 %v451
        %v795 = vunpack.c.l.b16 %v452
        %v796 = vunpack.c.h.b16 %v452
        %v797 = vunpack.c.l.b16 %v453
        %v798 = vunpack.c.h.b16 %v453
        %v799 = vunpack.c.l.b16 %v454
        %v800 = vunpack.c.h.b16 %v454
        %v801 = vunpack.c.l.b16 %v455
        %v802 = vunpack.c.h.b16 %v455
        %v803 = vunpack.c.l.b16 %v456
        %v804 = vunpack.c.h.b16 %v456
        %v805 = vunpack.c.l.b16 %v457
        %v806 = vunpack.c.h.b16 %v457
        %v807 = vunpack.c.l.b16 %v458
        %v808 = vunpack.c.h.b16 %v458
        %v809 = vunpack.c.l.b16 %v459
        %v810 = vunpack.c.h.b16 %v459
        %v811 = vunpack.c.l.b16 %v460
        %v812 = vunpack.c.h.b16 %v460
        %v813 = vunpack.c.l.b16 %v461
        %v814 = vunpack.c.h.b16 %v461
        %v815 = vunpack.c.l.b16 %v462
        %v816 = vunpack.c.h.b16 %v462
        %v817 = vunpack.c.l.b16 %v463
        %v818 = vunpack.c.h.b16 %v463
        %v819 = vunpack.c.l.b16 %v464
        %v820 = vunpack.c.h.b16 %v464
        %v821 = vunpack.c.l.b16 %v465
        %v822 = vunpack.c.h.b16 %v465
        %v823 = vunpack.c.l.b16 %v466
        %v824 = vunpack.c.h.b16 %v466
        %v825 = vunpack.c.l.b16 %v467
        %v826 = vunpack.c.h.b16 %v467
        %v827 = vunpack.c.l.b16 %v468
        %v828 = vunpack.c.h.b16 %v468
        %v829 = vunpack.c.l.b16 %v469
        %v830 = vunpack.c.h.b16 %v469
        %v831 = vunpack.c.l.b16 %v470
        %v832 = vunpack.c.h.b16 %v470
        %v833 = vunpack.c.l.b16 %v471
        %v834 = vunpack.c.h.b16 %v471
        %v835 = vunpack.c.l.b16 %v472
        %v836 = vunpack.c.h.b16 %v472
        %v837 = vunpack.c.l.b16 %v473
        %v838 = vunpack.c.h.b16 %v473
        %v839 = vunpack.c.l.b16 %v474
        %v840 = vunpack.c.h.b16 %v474
        %v841 = vunpack.c.l.b16 %v475
        %v842 = vunpack.c.h.b16 %v475
        %v843 = vunpack.c.l.b16 %v476
        %v844 = vunpack.c.h.b16 %v476
        %v845 = vunpack.c.l.b16 %v477
        %v846 = vunpack.c.h.b16 %v477
        %v847 = vunpack.c.l.b16 %v478
        %v848 = vunpack.c.h.b16 %v478
        %v849 = vunpack.c.l.b16 %v479
        %v850 = vunpack.c.h.b16 %v479
        %v851 = vunpack.c.l.b16 %v480
        %v852 = vunpack.c.h.b16 %v480
        %v853 = vunpack.c.l.b16 %v481
        %v854 = vunpack.c.h.b16 %v481
        %v855 = vunpack.c.l.b16 %v482
        %v856 = vunpack.c.h.b16 %v482
        %v857 = vunpack.c.l.b16 %v483
        %v858 = vunpack.c.h.b16 %v483
        %v859 = vunpack.c.l.b16 %v484
        %v860 = vunpack.c.h.b16 %v484
        %v861 = vunpack.c.l.b16 %v485
        %v862 = vunpack.c.h.b16 %v485
        %v863 = vunpack.c.l.b16 %v486
        %v864 = vunpack.c.h.b16 %v486
        %v865 = vunpack.c.l.b16 %v487
        %v866 = vunpack.c.h.b16 %v487
        %v867 = vunpack.c.l.b16 %v488
        %v868 = vunpack.c.h.b16 %v488
        %v869 = vunpack.c.l.b16 %v489
        %v870 = vunpack.c.h.b16 %v489
        %v871 = vunpack.c.l.b16 %v490
        %v872 = vunpack.c.h.b16 %v490
        %v873 = vunpack.c.l.b16 %v491
        %v874 = vunpack.c.h.b16 %v491
        %v875 = vunpack.c.l.b16 %v492
        %v876 = vunpack.c.h.b16 %v492
        %v877 = vunpack.c.l.b16 %v493
        %v878 = vunpack.c.h.b16 %v493
        %v879 = vunpack.c.l.b16 %v494
        %v880 = vunpack.c.h.b16 %v494
        %v881 = vunpack.c.l.b16 %v495
        %v882 = vunpack.c.h.b16 %v495
        %v883 = vunpack.c.l.b16 %v496
        %v884 = vunpack.c.h.b16 %v496
        %v885 = vunpack.c.l.b16 %v497
        %v886 = vunpack.c.h.b16 %v497
        %v887 = vunpack.c.l.b16 %v498
        %v888 = vunpack.c.h.b16 %v498
        %v889 = vunpack.c.l.b16 %v499
        %v890 = vunpack.c.h.b16 %v499
        %v891 = vunpack.c.l.b16 %v500
        %v892 = vunpack.c.h.b16 %v500
        %v893 = vunpack.c.l.b16 %v501
        %v894 = vunpack.c.h.b16 %v501
        %v895 = vunpack.c.l.b16 %v502
        %v896 = vunpack.c.h.b16 %v502
        %v897 = vunpack.c.l.b16 %v503
        %v898 = vunpack.c.h.b16 %v503
        %v899 = vunpack.c.l.b16 %v504
        %v900 = vunpack.c.h.b16 %v504
        %v901 = vunpack.c.l.b16 %v505
        %v902 = vunpack.c.h.b16 %v505
        %v903 = vunpack.c.l.b16 %v506
        %v904 = vunpack.c.h.b16 %v506
        %v905 = vunpack.c.l.b16 %v507
        %v906 = vunpack.c.h.b16 %v507
        %v907 = vunpack.c.l.b16 %v508
        %v908 = vunpack.c.h.b16 %v508
        %v909 = vunpack.c.l.b16 %v509
        %v910 = vunpack.c.h.b16 %v509
        %v911 = vunpack.c.l.b16 %v510
        %v912 = vunpack.c.h.b16 %v510
        %v913 = vunpack.c.l.b16 %v511
        %v914 = vunpack.c.h.b16 %v511
        %v915 = vunpack.c.l.b16 %v512
        %v916 = vunpack.c.h.b16 %v512
        %v917 = vunpack.c.l.b16 %v513
        %v918 = vunpack.c.h.b16 %v513
        %v919 = vunpack.c.l.b16 %v514
        %v920 = vunpack.c.h.b16 %v514
        %v921 = vunpack.c.l.b16 %v515
        %v922 = vunpack.c.h.b16 %v515
        %v923 = vunpack.c.l.b16 %v516
        %v924 = vunpack.c.h.b16 %v516
        %v925 = vunpack.c.l.b16 %v517
        %v926 = vunpack.c.h.b16 %v517
        %v927 = vunpack.c.l.b16 %v518
        %v928 = vunpack.c.h.b16 %v518
        %v929 = vunpack.c.l.b16 %v519
        %v930 = vunpack.c.h.b16 %v519
        %v931 = vunpack.c.l.b16 %v520
        %v932 = vunpack.c.h.b16 %v520
        %v933 = vunpack.c.l.b16 %v521
        %v934 = vunpack.c.h.b16 %v521
        %v935 = vunpack.c.l.b16 %v522
        %v936 = vunpack.c.h.b16 %v522
        %v937 = vunpack.c.l.b16 %v523
        %v938 = vunpack.c.h.b16 %v523
        %v939 = vunpack.c.l.b16 %v524
        %v940 = vunpack.c.h.b16 %v524
        %v941 = vunpack.c.l.b16 %v525
        %v942 = vunpack.c.h.b16 %v525
        %v943 = vunpack.c.l.b16 %v526
        %v944 = vunpack.c.h.b16 %v526
        %v945 = vunpack.c.l.b16 %v527
        %v946 = vunpack.c.h.b16 %v527
        %v947 = vunpack.c.l.b16 %v528
        %v948 = vunpack.c.h.b16 %v528
        %v949 = vunpack.c.l.b16 %v529
        %v950 = vunpack.c.h.b16 %v529
        %v951 = vunpack.c.l.b16 %v530
        %v952 = vunpack.c.h.b16 %v530
        %v953 = vunpack.c.l.b16 %v531
        %v954 = vunpack.c.h.b16 %v531
        %v955 = vunpack.c.l.b16 %v532
        %v956 = vunpack.c.h.b16 %v532
        %v957 = vpack.c.b16 %v703, %v701
        %v958 = vpack.c.b16 %v704, %v702
        %v959 = vpack.c.b16 %v707, %v705
        %v960 = vpack.c.b16 %v708, %v706
        %v961 = vpack.c.b16 %v711, %v709
        %v962 = vpack.c.b16 %v712, %v710
        %v963 = vpack.c.b16 %v715, %v713
        %v964 = vpack.c.b16 %v716, %v714
        %v965 = vpack.c.b16 %v719, %v717
        %v966 = vpack.c.b16 %v720, %v718
        %v967 = vpack.c.b16 %v723, %v721
        %v968 = vpack.c.b16 %v724, %v722
        %v969 = vpack.c.b16 %v727, %v725
        %v970 = vpack.c.b16 %v728, %v726
        %v971 = vpack.c.b16 %v731, %v729
        %v972 = vpack.c.b16 %v732, %v730
        %v973 = vpack.c.b16 %v735, %v733
        %v974 = vpack.c.b16 %v736, %v734
        %v975 = vpack.c.b16 %v739, %v737
        %v976 = vpack.c.b16 %v740, %v738
        %v977 = vpack.c.b16 %v743, %v741
        %v978 = vpack.c.b16 %v744, %v742
        %v979 = vpack.c.b16 %v747, %v745
        %v980 = vpack.c.b16 %v748, %v746
        %v981 = vpack.c.b16 %v751, %v749
        %v982 = vpack.c.b16 %v752, %v750
        %v983 = vpack.c.b16 %v755, %v753
        %v984 = vpack.c.b16 %v756, %v754
        %v985 = vpack.c.b16 %v759, %v757
        %v986 = vpack.c.b16 %v760, %v758
        %v987 = vpack.c.b16 %v763, %v761
        %v988 = vpack.c.b16 %v764, %v762
        %v989 = vpack.c.b16 %v767, %v765
        %v990 = vpack.c.b16 %v768, %v766
        %v991 = vpack.c.b16 %v771, %v769
        %v992 = vpack.c.b16 %v772, %v770
        %v993 = vpack.c.b16 %v775, %v773
        %v994 = vpack.c.b16 %v776, %v774
        %v995 = vpack.c.b16 %v779, %v777
        %v996 = vpack.c.b16 %v780, %v778
        %v997 = vpack.c.b16 %v783, %v781
        %v998 = vpack.c.b16 %v784, %v782
        %v999 = vpack.c.b16 %v787, %v785
        %v1000 = vpack.c.b16 %v788, %v786
        %v1001 = vpack.c.b16 %v791, %v789
        %v1002 = vpack.c.b16 %v792, %v790
        %v1003 = vpack.c.b16 %v795, %v793
        %v1004 = vpack.c.b16 %v796, %v794
        %v1005 = vpack.c.b16 %v799, %v797
        %v1006 = vpack.c.b16 %v800, %v798
        %v1007 = vpack.c.b16 %v803, %v801
        %v1008 = vpack.c.b16 %v804, %v802
        %v1009 = vpack.c.b16 %v807, %v805
        %v1010 = vpack.c.b16 %v808, %v806
        %v1011 = vpack.c.b16 %v811, %v809
        %v1012 = vpack.c.b16 %v812, %v810
        %v1013 = vpack.c.b16 %v815, %v813
        %v1014 = vpack.c.b16 %v816, %v814
        %v1015 = vpack.c.b16 %v819, %v817
        %v1016 = vpack.c.b16 %v820, %v818
        %v1017 = vpack.c.b16 %v823, %v821
        %v1018 = vpack.c.b16 %v824, %v822
        %v1019 = vpack.c.b16 %v827, %v825
        %v1020 = vpack.c.b16 %v828, %v826
        %v1021 = vpack.c.b16 %v831, %v829
        %v1022 = vpack.c.b16 %v832, %v830
        %v1023 = vpack.c.b16 %v835, %v833
        %v1024 = vpack.c.b16 %v836, %v834
        %v1025 = vpack.c.b16 %v839, %v837
        %v1026 = vpack.c.b16 %v840, %v838
        %v1027 = vpack.c.b16 %v843, %v841
        %v1028 = vpack.c.b16 %v844, %v842
        %v1029 = vpack.c.b16 %v847, %v845
        %v1030 = vpack.c.b16 %v848, %v846
        %v1031 = vpack.c.b16 %v851, %v849
        %v1032 = vpack.c.b16 %v852, %v850
        %v1033 = vpack.c.b16 %v855, %v853
        %v1034 = vpack.c.b16 %v856, %v854
        %v1035 = vpack.c.b16 %v859, %v857
        %v1036 = vpack.c.b16 %v860, %v858
        %v1037 = vpack.c.b16 %v863, %v861
        %v1038 = vpack.c.b16 %v864, %v862
        %v1039 = vpack.c.b16 %v867, %v865
        %v1040 = vpack.c.b16 %v868, %v866
        %v1041 = vpack.c.b16 %v871, %v869
        %v1042 = vpack.c.b16 %v872, %v870
        %v1043 = vpack.c.b16 %v875, %v873
        %v1044 = vpack.c.b16 %v876, %v874
        %v1045 = vpack.c.b16 %v879, %v877
        %v1046 = vpack.c.b16 %v880, %v878
        %v1047 = vpack.c.b16 %v883, %v881
        %v1048 = vpack.c.b16 %v884, %v882
        %v1049 = vpack.c.b16 %v887, %v885
        %v1050 = vpack.c.b16 %v888, %v886
        %v1051 = vpack.c.b16 %v891, %v889
        %v1052 = vpack.c.b16 %v892, %v890
        %v1053 = vpack.c.b16 %v895, %v893
        %v1054 = vpack.c.b16 %v896, %v894
        %v1055 = vpack.c.b16 %v899, %v897
        %v1056 = vpack.c.b16 %v900, %v898
        %v1057 = vpack.c.b16 %v903, %v901
        %v1058 = vpack.c.b16 %v904, %v902
        %v1059 = vpack.c.b16 %v907, %v905
        %v1060 = vpack.c.b16 %v908, %v906
        %v1061 = vpack.c.b16 %v911, %v909
        %v1062 = vpack.c.b16 %v912, %v910
        %v1063 = vpack.c.b16 %v915, %v913
        %v1064 = vpack.c.b16 %v916, %v914
        %v1065 = vpack.c.b16 %v919, %v917
        %v1066 = vpack.c.b16 %v920, %v918
        %v1067 = vpack.c.b16 %v923, %v921
        %v1068 = vpack.c.b16 %v924, %v922
        %v1069 = vpack.c.b16 %v927, %v925
        %v1070 = vpack.c.b16 %v928, %v926
        %v1071 = vpack.c.b16 %v931, %v929
        %v1072 = vpack.c.b16 %v932, %v930
        %v1073 = vpack.c.b16 %v935, %v933
        %v1074 = vpack.c.b16 %v936, %v934
        %v1075 = vpack.c.b16 %v939, %v937
        %v1076 = vpack.c.b16 %v940, %v938
        %v1077 = vpack.c.b16 %v943, %v941
        %v1078 = vpack.c.b16 %v944, %v942
        %v1079 = vpack.c.b16 %v947, %v945
        %v1080 = vpack.c.b16 %v948, %v946
        %v1081 = vpack.c.b16 %v951, %v949
        %v1082 = vpack.c.b16 %v952, %v950
        %v1083 = vpack.c.b16 %v955, %v953
        %v1084 = vpack.c.b16 %v956, %v954
        %1213 = vmatpush.bf16.msra.mxu0 %v971
        %1214 = vmatpush.bf16.msra.mxu0 %v969
        %1215 = vmatpush.bf16.msra.mxu0 %v967
        %1216 = vmatpush.bf16.msra.mxu0 %v965
        %1217 = vmatpush.bf16.msra.mxu0 %v963
        %1218 = vmatpush.bf16.msra.mxu0 %v961
        %1219 = vmatpush.bf16.msra.mxu0 %v959
        %1220 = vmatpush.bf16.msra.mxu0 %v957
        %1221 = vmatmul.bf16.gmra.mxu0 %v557
        %v1222 = vpop.f32.mrf.mxu0
        %v1223 = vadd.f32 0.0, %v1222
        %v1224 = vpop.f32.mrf.mxu0
        %v1225 = vadd.f32 0.0, %v1224
        %1226 = vdwg.mxu0
        %1227 = vmatpush.bf16.msra.mxu0 %v987
        %1228 = vmatpush.bf16.msra.mxu0 %v985
        %1229 = vmatpush.bf16.msra.mxu0 %v983
        %1230 = vmatpush.bf16.msra.mxu0 %v981
        %1231 = vmatpush.bf16.msra.mxu0 %v979
        %1232 = vmatpush.bf16.msra.mxu0 %v977
        %1233 = vmatpush.bf16.msra.mxu0 %v975
        %1234 = vmatpush.bf16.msra.mxu0 %v973
        %1235 = vmatmul.bf16.gmra.mxu0 %v558
        %v1236 = vpop.f32.mrf.mxu0
        %v1237 = vadd.f32 %v1223, %v1236
        %v1238 = vpop.f32.mrf.mxu0
        %v1239 = vadd.f32 %v1225, %v1238
        %1240 = vdwg.mxu0
        %1241 = vmatpush.bf16.msra.mxu0 %v1003
        %1242 = vmatpush.bf16.msra.mxu0 %v1001
        %1243 = vmatpush.bf16.msra.mxu0 %v999
        %1244 = vmatpush.bf16.msra.mxu0 %v997
        %1245 = vmatpush.bf16.msra.mxu0 %v995
        %1246 = vmatpush.bf16.msra.mxu0 %v993
        %1247 = vmatpush.bf16.msra.mxu0 %v991
        %1248 = vmatpush.bf16.msra.mxu0 %v989
        %1249 = vmatmul.bf16.gmra.mxu0 %v559
        %v1250 = vpop.f32.mrf.mxu0
        %v1251 = vadd.f32 %v1237, %v1250
        %v1252 = vpop.f32.mrf.mxu0
        %v1253 = vadd.f32 %v1239, %v1252
        %1254 = vdwg.mxu0
        %1255 = vmatpush.bf16.msra.mxu0 %v1019
        %1256 = vmatpush.bf16.msra.mxu0 %v1017
        %1257 = vmatpush.bf16.msra.mxu0 %v1015
        %1258 = vmatpush.bf16.msra.mxu0 %v1013
        %1259 = vmatpush.bf16.msra.mxu0 %v1011
        %1260 = vmatpush.bf16.msra.mxu0 %v1009
        %1261 = vmatpush.bf16.msra.mxu0 %v1007
        %1262 = vmatpush.bf16.msra.mxu0 %v1005
        %1263 = vmatmul.bf16.gmra.mxu0 %v560
        %v1264 = vpop.f32.mrf.mxu0
        %v1265 = vadd.f32 %v1251, %v1264
        %v1266 = vpop.f32.mrf.mxu0
        %v1267 = vadd.f32 %v1253, %v1266
        %1268 = vdwg.mxu0
        %1269 = vmatpush.bf16.msra.mxu0 %v1035
        %1270 = vmatpush.bf16.msra.mxu0 %v1033
        %1271 = vmatpush.bf16.msra.mxu0 %v1031
        %1272 = vmatpush.bf16.msra.mxu0 %v1029
        %1273 = vmatpush.bf16.msra.mxu0 %v1027
        %1274 = vmatpush.bf16.msra.mxu0 %v1025
        %1275 = vmatpush.bf16.msra.mxu0 %v1023
        %1276 = vmatpush.bf16.msra.mxu0 %v1021
        %1277 = vmatmul.bf16.gmra.mxu0 %v561
        %v1278 = vpop.f32.mrf.mxu0
        %v1279 = vadd.f32 %v1265, %v1278
        %v1280 = vpop.f32.mrf.mxu0
        %v1281 = vadd.f32 %v1267, %v1280
        %1282 = vdwg.mxu0
        %1283 = vmatpush.bf16.msra.mxu0 %v1051
        %1284 = vmatpush.bf16.msra.mxu0 %v1049
        %1285 = vmatpush.bf16.msra.mxu0 %v1047
        %1286 = vmatpush.bf16.msra.mxu0 %v1045
        %1287 = vmatpush.bf16.msra.mxu0 %v1043
        %1288 = vmatpush.bf16.msra.mxu0 %v1041
        %1289 = vmatpush.bf16.msra.mxu0 %v1039
        %1290 = vmatpush.bf16.msra.mxu0 %v1037
        %1291 = vmatmul.bf16.gmra.mxu0 %v562
        %v1292 = vpop.f32.mrf.mxu0
        %v1293 = vadd.f32 %v1279, %v1292
        %v1294 = vpop.f32.mrf.mxu0
        %v1295 = vadd.f32 %v1281, %v1294
        %1296 = vdwg.mxu0
        %1297 = vmatpush.bf16.msra.mxu0 %v1067
        %1298 = vmatpush.bf16.msra.mxu0 %v1065
        %1299 = vmatpush.bf16.msra.mxu0 %v1063
        %1300 = vmatpush.bf16.msra.mxu0 %v1061
        %1301 = vmatpush.bf16.msra.mxu0 %v1059
        %1302 = vmatpush.bf16.msra.mxu0 %v1057
        %1303 = vmatpush.bf16.msra.mxu0 %v1055
        %1304 = vmatpush.bf16.msra.mxu0 %v1053
        %1305 = vmatmul.bf16.gmra.mxu0 %v563
        %v1306 = vpop.f32.mrf.mxu0
        %v1307 = vadd.f32 %v1293, %v1306
        %v1308 = vpop.f32.mrf.mxu0
        %v1309 = vadd.f32 %v1295, %v1308
        %1310 = vdwg.mxu0
        %1311 = vmatpush.bf16.msra.mxu0 %v1083
        %1312 = vmatpush.bf16.msra.mxu0 %v1081
        %1313 = vmatpush.bf16.msra.mxu0 %v1079
        %1314 = vmatpush.bf16.msra.mxu0 %v1077
        %1315 = vmatpush.bf16.msra.mxu0 %v1075
        %1316 = vmatpush.bf16.msra.mxu0 %v1073
        %1317 = vmatpush.bf16.msra.mxu0 %v1071
        %1318 = vmatpush.bf16.msra.mxu0 %v1069
        %1319 = vmatmul.bf16.gmra.mxu0 %v564
        %v1320 = vpop.f32.mrf.mxu0
        %v1321 = vadd.f32 %v1307, %v1320
        %v1322 = vpop.f32.mrf.mxu0
        %v1323 = vadd.f32 %v1309, %v1322
        %1324 = vdwg.mxu0
        %1325 = vmatpush.bf16.msra.mxu0 %v972
        %1326 = vmatpush.bf16.msra.mxu0 %v970
        %1327 = vmatpush.bf16.msra.mxu0 %v968
        %1328 = vmatpush.bf16.msra.mxu0 %v966
        %1329 = vmatpush.bf16.msra.mxu0 %v964
        %1330 = vmatpush.bf16.msra.mxu0 %v962
        %1331 = vmatpush.bf16.msra.mxu0 %v960
        %1332 = vmatpush.bf16.msra.mxu0 %v958
        %1333 = vmatmul.bf16.gmra.mxu0 %v557
        %v1334 = vpop.f32.mrf.mxu0
        %v1335 = vadd.f32 0.0, %v1334
        %v1336 = vpop.f32.mrf.mxu0
        %v1337 = vadd.f32 0.0, %v1336
        %1338 = vdwg.mxu0
        %1339 = vmatpush.bf16.msra.mxu0 %v988
        %1340 = vmatpush.bf16.msra.mxu0 %v986
        %1341 = vmatpush.bf16.msra.mxu0 %v984
        %1342 = vmatpush.bf16.msra.mxu0 %v982
        %1343 = vmatpush.bf16.msra.mxu0 %v980
        %1344 = vmatpush.bf16.msra.mxu0 %v978
        %1345 = vmatpush.bf16.msra.mxu0 %v976
        %1346 = vmatpush.bf16.msra.mxu0 %v974
        %1347 = vmatmul.bf16.gmra.mxu0 %v558
        %v1348 = vpop.f32.mrf.mxu0
        %v1349 = vadd.f32 %v1335, %v1348
        %v1350 = vpop.f32.mrf.mxu0
        %v1351 = vadd.f32 %v1337, %v1350
        %1352 = vdwg.mxu0
        %1353 = vmatpush.bf16.msra.mxu0 %v1004
        %1354 = vmatpush.bf16.msra.mxu0 %v1002
        %1355 = vmatpush.bf16.msra.mxu0 %v1000
        %1356 = vmatpush.bf16.msra.mxu0 %v998
        %1357 = vmatpush.bf16.msra.mxu0 %v996
        %1358 = vmatpush.bf16.msra.mxu0 %v994
        %1359 = vmatpush.bf16.msra.mxu0 %v992
        %1360 = vmatpush.bf16.msra.mxu0 %v990
        %1361 = vmatmul.bf16.gmra.mxu0 %v559
        %v1362 = vpop.f32.mrf.mxu0
        %v1363 = vadd.f32 %v1349, %v1362
        %v1364 = vpop.f32.mrf.mxu0
        %v1365 = vadd.f32 %v1351, %v1364
        %1366 = vdwg.mxu0
        %1367 = vmatpush.bf16.msra.mxu0 %v1020
        %1368 = vmatpush.bf16.msra.mxu0 %v1018
        %1369 = vmatpush.bf16.msra.mxu0 %v1016
        %1370 = vmatpush.bf16.msra.mxu0 %v1014
        %1371 = vmatpush.bf16.msra.mxu0 %v1012
        %1372 = vmatpush.bf16.msra.mxu0 %v1010
        %1373 = vmatpush.bf16.msra.mxu0 %v1008
        %1374 = vmatpush.bf16.msra.mxu0 %v1006
        %1375 = vmatmul.bf16.gmra.mxu0 %v560
        %v1376 = vpop.f32.mrf.mxu0
        %v1377 = vadd.f32 %v1363, %v1376
        %v1378 = vpop.f32.mrf.mxu0
        %v1379 = vadd.f32 %v1365, %v1378
        %1380 = vdwg.mxu0
        %1381 = vmatpush.bf16.msra.mxu0 %v1036
        %1382 = vmatpush.bf16.msra.mxu0 %v1034
        %1383 = vmatpush.bf16.msra.mxu0 %v1032
        %1384 = vmatpush.bf16.msra.mxu0 %v1030
        %1385 = vmatpush.bf16.msra.mxu0 %v1028
        %1386 = vmatpush.bf16.msra.mxu0 %v1026
        %1387 = vmatpush.bf16.msra.mxu0 %v1024
        %1388 = vmatpush.bf16.msra.mxu0 %v1022
        %1389 = vmatmul.bf16.gmra.mxu0 %v561
        %v1390 = vpop.f32.mrf.mxu0
        %v1391 = vadd.f32 %v1377, %v1390
        %v1392 = vpop.f32.mrf.mxu0
        %v1393 = vadd.f32 %v1379, %v1392
        %1394 = vdwg.mxu0
        %1395 = vmatpush.bf16.msra.mxu0 %v1052
        %1396 = vmatpush.bf16.msra.mxu0 %v1050
        %1397 = vmatpush.bf16.msra.mxu0 %v1048
        %1398 = vmatpush.bf16.msra.mxu0 %v1046
        %1399 = vmatpush.bf16.msra.mxu0 %v1044
        %1400 = vmatpush.bf16.msra.mxu0 %v1042
        %1401 = vmatpush.bf16.msra.mxu0 %v1040
        %1402 = vmatpush.bf16.msra.mxu0 %v1038
        %1403 = vmatmul.bf16.gmra.mxu0 %v562
        %v1404 = vpop.f32.mrf.mxu0
        %v1405 = vadd.f32 %v1391, %v1404
        %v1406 = vpop.f32.mrf.mxu0
        %v1407 = vadd.f32 %v1393, %v1406
        %1408 = vdwg.mxu0
        %1409 = vmatpush.bf16.msra.mxu0 %v1068
        %1410 = vmatpush.bf16.msra.mxu0 %v1066
        %1411 = vmatpush.bf16.msra.mxu0 %v1064
        %1412 = vmatpush.bf16.msra.mxu0 %v1062
        %1413 = vmatpush.bf16.msra.mxu0 %v1060
        %1414 = vmatpush.bf16.msra.mxu0 %v1058
        %1415 = vmatpush.bf16.msra.mxu0 %v1056
        %1416 = vmatpush.bf16.msra.mxu0 %v1054
        %1417 = vmatmul.bf16.gmra.mxu0 %v563
        %v1418 = vpop.f32.mrf.mxu0
        %v1419 = vadd.f32 %v1405, %v1418
        %v1420 = vpop.f32.mrf.mxu0
        %v1421 = vadd.f32 %v1407, %v1420
        %1422 = vdwg.mxu0
        %1423 = vmatpush.bf16.msra.mxu0 %v1084
        %1424 = vmatpush.bf16.msra.mxu0 %v1082
        %1425 = vmatpush.bf16.msra.mxu0 %v1080
        %1426 = vmatpush.bf16.msra.mxu0 %v1078
        %1427 = vmatpush.bf16.msra.mxu0 %v1076
        %1428 = vmatpush.bf16.msra.mxu0 %v1074
        %1429 = vmatpush.bf16.msra.mxu0 %v1072
        %1430 = vmatpush.bf16.msra.mxu0 %v1070
        %1431 = vmatmul.bf16.gmra.mxu0 %v564
        %v1432 = vpop.f32.mrf.mxu0
        %v1433 = vadd.f32 %v1419, %v1432
        %v1434 = vpop.f32.mrf.mxu0
        %v1435 = vadd.f32 %v1421, %v1434
        %1436 = vdwg.mxu0
        %v1437 = vadd.f32 %v1321, %v1323
        %v1438 = vrot.slane %v1437, 4
        %v1439 = vadd.f32 %v1437, %v1438
        %v1440 = vrot.slane %v1439, 2
        %v1441 = vadd.f32 %v1439, %v1440
        %v1442 = vrot.slane %v1441, 1
        %v1443 = vadd.f32 %v1441, %v1442
        %v1444 = vadd.f32 %v1433, %v1435
        %v1445 = vrot.slane %v1444, 4
        %v1446 = vadd.f32 %v1444, %v1445
        %v1447 = vrot.slane %v1446, 2
        %v1448 = vadd.f32 %v1446, %v1447
        %v1449 = vrot.slane %v1448, 1
        %v1450 = vadd.f32 %v1448, %v1449
        %v1451 = vmul.f32 %v1321, %v1321
        %v1452 = vmul.f32 %v1433, %v1433
        %v1453 = vmul.f32 %v1323, %v1323
        %v1454 = vmul.f32 %v1435, %v1435
        %v1455 = vadd.f32 %v1451, %v1453
        %v1456 = vrot.slane %v1455, 4
        %v1457 = vadd.f32 %v1455, %v1456
        %v1458 = vrot.slane %v1457, 2
        %v1459 = vadd.f32 %v1457, %v1458
        %v1460 = vrot.slane %v1459, 1
        %v1461 = vadd.f32 %v1459, %v1460
        %v1462 = vadd.f32 %v1452, %v1454
        %v1463 = vrot.slane %v1462, 4
        %v1464 = vadd.f32 %v1462, %v1463
        %v1465 = vrot.slane %v1464, 2
        %v1466 = vadd.f32 %v1464, %v1465
        %v1467 = vrot.slane %v1466, 1
        %v1468 = vadd.f32 %v1466, %v1467
        %v1469 = vld [vmem:[%s336] sm:$0xff]
        %v1470 = vld [vmem:[%s336 + $0x8] sm:$0xff]
        %v1471 = vld [vmem:[%s336 + $0x10] sm:$0xff]
        %v1472 = vld [vmem:[%s336 + $0x18] sm:$0xff]
        %v1473 = vld [vmem:[%s336 + $0x20] sm:$0xff]
        %v1474 = vld [vmem:[%s336 + $0x28] sm:$0xff]
        %v1475 = vld [vmem:[%s336 + $0x30] sm:$0xff]
        %v1476 = vld [vmem:[%s336 + $0x38] sm:$0xff]
        %v1477 = vld [vmem:[%s336 + $0x40] sm:$0xff]
        %v1478 = vld [vmem:[%s336 + $0x48] sm:$0xff]
        %v1479 = vld [vmem:[%s336 + $0x50] sm:$0xff]
        %v1480 = vld [vmem:[%s336 + $0x58] sm:$0xff]
        %v1481 = vld [vmem:[%s336 + $0x60] sm:$0xff]
        %v1482 = vld [vmem:[%s336 + $0x68] sm:$0xff]
        %v1483 = vld [vmem:[%s336 + $0x70] sm:$0xff]
        %v1484 = vld [vmem:[%s336 + $0x78] sm:$0xff]
        %v1485 = vld [vmem:[%s336 + $0x80] sm:$0xff]
        %v1486 = vld [vmem:[%s336 + $0x88] sm:$0xff]
        %v1487 = vld [vmem:[%s336 + $0x90] sm:$0xff]
        %v1488 = vld [vmem:[%s336 + $0x98] sm:$0xff]
        %v1489 = vld [vmem:[%s336 + $0xa0] sm:$0xff]
        %v1490 = vld [vmem:[%s336 + $0xa8] sm:$0xff]
        %v1491 = vld [vmem:[%s336 + $0xb0] sm:$0xff]
        %v1492 = vld [vmem:[%s336 + $0xb8] sm:$0xff]
        %v1493 = vld [vmem:[%s336 + $0xc0] sm:$0xff]
        %v1494 = vld [vmem:[%s336 + $0xc8] sm:$0xff]
        %v1495 = vld [vmem:[%s336 + $0xd0] sm:$0xff]
        %v1496 = vld [vmem:[%s336 + $0xd8] sm:$0xff]
        %v1497 = vld [vmem:[%s336 + $0xe0] sm:$0xff]
        %v1498 = vld [vmem:[%s336 + $0xe8] sm:$0xff]
        %v1499 = vld [vmem:[%s336 + $0xf0] sm:$0xff]
        %v1500 = vld [vmem:[%s336 + $0xf8] sm:$0xff]
        %1501 = vmatpush.msra.mxu0 %v1484
        %1502 = vmatpush.msra.mxu0 %v1483
        %1503 = vmatpush.msra.mxu0 %v1482
        %1504 = vmatpush.msra.mxu0 %v1481
        %1505 = vmatpush.msra.mxu0 %v1480
        %1506 = vmatpush.msra.mxu0 %v1479
        %1507 = vmatpush.msra.mxu0 %v1478
        %1508 = vmatpush.msra.mxu0 %v1477
        %1509 = vmatpush.msra.mxu0 %v1476
        %1510 = vmatpush.msra.mxu0 %v1475
        %1511 = vmatpush.msra.mxu0 %v1474
        %1512 = vmatpush.msra.mxu0 %v1473
        %1513 = vmatpush.msra.mxu0 %v1472
        %1514 = vmatpush.msra.mxu0 %v1471
        %1515 = vmatpush.msra.mxu0 %v1470
        %1516 = vmatpush.msra.mxu0 %v1469
        %1517 = vmatmul.f32.gmra.mxu0 %v1443
        %v1518 = vpop.f32.mrf.mxu0
        %v1519 = vadd.f32 0.0, %v1518
        %1520 = vdwg.mxu0
        %1521 = vmatpush.msra.mxu0 %v1500
        %1522 = vmatpush.msra.mxu0 %v1499
        %1523 = vmatpush.msra.mxu0 %v1498
        %1524 = vmatpush.msra.mxu0 %v1497
        %1525 = vmatpush.msra.mxu0 %v1496
        %1526 = vmatpush.msra.mxu0 %v1495
        %1527 = vmatpush.msra.mxu0 %v1494
        %1528 = vmatpush.msra.mxu0 %v1493
        %1529 = vmatpush.msra.mxu0 %v1492
        %1530 = vmatpush.msra.mxu0 %v1491
        %1531 = vmatpush.msra.mxu0 %v1490
        %1532 = vmatpush.msra.mxu0 %v1489
        %1533 = vmatpush.msra.mxu0 %v1488
        %1534 = vmatpush.msra.mxu0 %v1487
        %1535 = vmatpush.msra.mxu0 %v1486
        %1536 = vmatpush.msra.mxu0 %v1485
        %1537 = vmatmul.f32.gmra.mxu0 %v1450
        %v1538 = vpop.f32.mrf.mxu0
        %v1539 = vadd.f32 %v1519, %v1538
        %1540 = vdwg.mxu0
        %1541 = vmatpush.msra.mxu0 %v1484
        %1542 = vmatpush.msra.mxu0 %v1483
        %1543 = vmatpush.msra.mxu0 %v1482
        %1544 = vmatpush.msra.mxu0 %v1481
        %1545 = vmatpush.msra.mxu0 %v1480
        %1546 = vmatpush.msra.mxu0 %v1479
        %1547 = vmatpush.msra.mxu0 %v1478
        %1548 = vmatpush.msra.mxu0 %v1477
        %1549 = vmatpush.msra.mxu0 %v1476
        %1550 = vmatpush.msra.mxu0 %v1475
        %1551 = vmatpush.msra.mxu0 %v1474
        %1552 = vmatpush.msra.mxu0 %v1473
        %1553 = vmatpush.msra.mxu0 %v1472
        %1554 = vmatpush.msra.mxu0 %v1471
        %1555 = vmatpush.msra.mxu0 %v1470
        %1556 = vmatpush.msra.mxu0 %v1469
        %1557 = vmatmul.f32.gmra.mxu0 %v1461
        %v1558 = vpop.f32.mrf.mxu0
        %v1559 = vadd.f32 0.0, %v1558
        %1560 = vdwg.mxu0
        %1561 = vmatpush.msra.mxu0 %v1500
        %1562 = vmatpush.msra.mxu0 %v1499
        %1563 = vmatpush.msra.mxu0 %v1498
        %1564 = vmatpush.msra.mxu0 %v1497
        %1565 = vmatpush.msra.mxu0 %v1496
        %1566 = vmatpush.msra.mxu0 %v1495
        %1567 = vmatpush.msra.mxu0 %v1494
        %1568 = vmatpush.msra.mxu0 %v1493
        %1569 = vmatpush.msra.mxu0 %v1492
        %1570 = vmatpush.msra.mxu0 %v1491
        %1571 = vmatpush.msra.mxu0 %v1490
        %1572 = vmatpush.msra.mxu0 %v1489
        %1573 = vmatpush.msra.mxu0 %v1488
        %1574 = vmatpush.msra.mxu0 %v1487
        %1575 = vmatpush.msra.mxu0 %v1486
        %1576 = vmatpush.msra.mxu0 %v1485
        %1577 = vmatmul.f32.gmra.mxu0 %v1468
        %v1578 = vpop.f32.mrf.mxu0
        %v1579 = vadd.f32 %v1559, %v1578
        %1580 = vdwg.mxu0
        %v1581 = vstv %s396
        %v1582 = vmul.f32 %v1539, %v1581
        %v1583 = vmul.f32 %v1579, %v1581
        %v1584 = vmul.f32 %v1582, %v1582
        %v1585 = vsub.f32 %v1583, %v1584
        %v1586 = vmax.f32 %v1585, 0.0
        %v1587 = vadd.f32 %v1586, 1e-05
        %v1588 = vrsqrt.pop %v1587
        %v1589 = vmul.f32 %v1588, %v1587
        %v1590 = vmul.f32 %v1589, %v1588
        %v1591 = vmul.f32 0.5, %v1590
        %v1592 = vsub.f32 1.5, %v1591
        %v1593 = vmul.f32 %v1588, %v1592
        %vm1594 = vweird.f32 %v1587
        %vm1595 = vweird.f32 %v1588
        %vm1596 = vmor %vm1594, %vm1595
        %v1597 = vsel %vm1596, %v1588, %v1593
        %v1598 = vld [vmem:[#allocation8] sm:$0x1]
        %v1599 = vmul.f32 %v1597, %v1598
        %v1600 = vld [vmem:[%s6] sm:$0x1]
        %v1601 = vmul.f32 %v1582, %v1599
        %v1602 = vsub.f32 %v1600, %v1601
        %v1603 = vld [vmem:[%s346] sm:$0xff]
        %v1604 = vld [vmem:[%s346 + $0x8] sm:$0xff]
        %v1605 = vld [vmem:[%s346 + $0x10] sm:$0xff]
        %v1606 = vld [vmem:[%s346 + $0x18] sm:$0xff]
        %v1607 = vld [vmem:[%s346 + $0x20] sm:$0xff]
        %v1608 = vld [vmem:[%s346 + $0x28] sm:$0xff]
        %v1609 = vld [vmem:[%s346 + $0x30] sm:$0xff]
        %v1610 = vld [vmem:[%s346 + $0x38] sm:$0xff]
        %v1611 = vld [vmem:[%s346 + $0x40] sm:$0xff]
        %v1612 = vld [vmem:[%s346 + $0x48] sm:$0xff]
        %v1613 = vld [vmem:[%s346 + $0x50] sm:$0xff]
        %v1614 = vld [vmem:[%s346 + $0x58] sm:$0xff]
        %v1615 = vld [vmem:[%s346 + $0x60] sm:$0xff]
        %v1616 = vld [vmem:[%s346 + $0x68] sm:$0xff]
        %v1617 = vld [vmem:[%s346 + $0x70] sm:$0xff]
        %v1618 = vld [vmem:[%s346 + $0x78] sm:$0xff]
        %vm1619 = vcmask 523264
        %v1621 = vsel %vm1619, %v1599, 0
        %1623 = vmatpush.msra.mxu0 0.0
        %1624 = vmatpush.msra.mxu0 0.0
        %1625 = vmatpush.msra.mxu0 0.0
        %1626 = vmatpush.msra.mxu0 0.0
        %1627 = vmatpush.msra.mxu0 0.0
        %1628 = vmatpush.msra.mxu0 0.0
        %1629 = vmatpush.msra.mxu0 0.0
        %1630 = vmatpush.msra.mxu0 0.0
        %1631 = vmatpush.msra.mxu0 %v1617
        %1632 = vmatpush.msra.mxu0 %v1615
        %1633 = vmatpush.msra.mxu0 %v1613
        %1634 = vmatpush.msra.mxu0 %v1611
        %1635 = vmatpush.msra.mxu0 %v1609
        %1636 = vmatpush.msra.mxu0 %v1607
        %1637 = vmatpush.msra.mxu0 %v1605
        %1638 = vmatpush.msra.mxu0 %v1603
        %1639 = vmatmul.f32.gmra.mxu0 %v1621
        %v1640 = vpop.f32.mrf.mxu0
        %v1641 = vadd.f32 0.0, %v1640
        %1642 = vdwg.mxu0
        %1643 = vmatpush.msra.mxu0 0.0
        %1644 = vmatpush.msra.mxu0 0.0
        %1645 = vmatpush.msra.mxu0 0.0
        %1646 = vmatpush.msra.mxu0 0.0
        %1647 = vmatpush.msra.mxu0 0.0
        %1648 = vmatpush.msra.mxu0 0.0
        %1649 = vmatpush.msra.mxu0 0.0
        %1650 = vmatpush.msra.mxu0 0.0
        %1651 = vmatpush.msra.mxu0 %v1618
        %1652 = vmatpush.msra.mxu0 %v1616
        %1653 = vmatpush.msra.mxu0 %v1614
        %1654 = vmatpush.msra.mxu0 %v1612
        %1655 = vmatpush.msra.mxu0 %v1610
        %1656 = vmatpush.msra.mxu0 %v1608
        %1657 = vmatpush.msra.mxu0 %v1606
        %1658 = vmatpush.msra.mxu0 %v1604
        %1659 = vmatmul.f32.gmra.mxu0 %v1621
        %v1660 = vpop.f32.mrf.mxu0
        %v1661 = vadd.f32 0.0, %v1660
        %1662 = vdwg.mxu0
        %v1664 = vsel %vm1619, %v1602, 0
        %1666 = vmatpush.msra.mxu0 0.0
        %1667 = vmatpush.msra.mxu0 0.0
        %1668 = vmatpush.msra.mxu0 0.0
        %1669 = vmatpush.msra.mxu0 0.0
        %1670 = vmatpush.msra.mxu0 0.0
        %1671 = vmatpush.msra.mxu0 0.0
        %1672 = vmatpush.msra.mxu0 0.0
        %1673 = vmatpush.msra.mxu0 0.0
        %1674 = vmatpush.msra.mxu0 %v1617
        %1675 = vmatpush.msra.mxu0 %v1615
        %1676 = vmatpush.msra.mxu0 %v1613
        %1677 = vmatpush.msra.mxu0 %v1611
        %1678 = vmatpush.msra.mxu0 %v1609
        %1679 = vmatpush.msra.mxu0 %v1607
        %1680 = vmatpush.msra.mxu0 %v1605
        %1681 = vmatpush.msra.mxu0 %v1603
        %1682 = vmatmul.f32.gmra.mxu0 %v1664
        %v1683 = vpop.f32.mrf.mxu0
        %v1684 = vadd.f32 0.0, %v1683
        %1685 = vdwg.mxu0
        %1686 = vmatpush.msra.mxu0 0.0
        %1687 = vmatpush.msra.mxu0 0.0
        %1688 = vmatpush.msra.mxu0 0.0
        %1689 = vmatpush.msra.mxu0 0.0
        %1690 = vmatpush.msra.mxu0 0.0
        %1691 = vmatpush.msra.mxu0 0.0
        %1692 = vmatpush.msra.mxu0 0.0
        %1693 = vmatpush.msra.mxu0 0.0
        %1694 = vmatpush.msra.mxu0 %v1618
        %1695 = vmatpush.msra.mxu0 %v1616
        %1696 = vmatpush.msra.mxu0 %v1614
        %1697 = vmatpush.msra.mxu0 %v1612
        %1698 = vmatpush.msra.mxu0 %v1610
        %1699 = vmatpush.msra.mxu0 %v1608
        %1700 = vmatpush.msra.mxu0 %v1606
        %1701 = vmatpush.msra.mxu0 %v1604
        %1702 = vmatmul.f32.gmra.mxu0 %v1664
        %v1703 = vpop.f32.mrf.mxu0
        %v1704 = vadd.f32 0.0, %v1703
        %1705 = vdwg.mxu0
        %v1706 = vperm.slane %v1641, 0
        %v1707 = vperm.slane %v1661, 0
        %v1708 = vmul.f32 %v1321, %v1706
        %v1709 = vmul.f32 %v1433, %v1707
        %v1710 = vmul.f32 %v1323, %v1706
        %v1711 = vmul.f32 %v1435, %v1707
        %v1712 = vperm.slane %v1684, 0
        %v1713 = vperm.slane %v1704, 0
        %v1714 = vadd.f32 %v1708, %v1712
        %v1715 = vadd.f32 %v1709, %v1713
        %v1716 = vadd.f32 %v1710, %v1712
        %v1717 = vadd.f32 %v1711, %v1713
        %v1718 = vmax.f32 %v1714, 0.0
        %v1719 = vmax.f32 %v1715, 0.0
        %v1720 = vmax.f32 %v1716, 0.0
        %v1721 = vmax.f32 %v1717, 0.0
        %v1722 = vpack.c.bf16 %v1719, %v1718
        %v1723 = vpack.c.bf16 %v1721, %v1720
        %1724 = vst [vmem:[%s391] sm:$0xff] %v1722
        %1725 = vst [vmem:[%s391 + $0x8] sm:$0xff] %v1723
        %s1726 = sand.u32 %s196, 1
        %s1727 = sand.u32 %s196, 1
        %s1728 = smul.addr %s1727, 16
        %s1729 = scalar_lea.vmem [#allocation10], %s1728
        // Predicated region
        $region65: #{facegen_gan_forward.4} parent=47 // pred_check
          %p1730 = pneg %p206
        $region66: #{facegen_gan_forward.4} parent=47 // pred_check_branch
          %1732 = sbr.rel (%p1730) target = $region68
        $region67: #{facegen_gan_forward.4} parent=47 // pred_region
          %s1733 = smul.u32 2, %s26
          %s1734 = smul.addr %s1733, 4
          %s1735 = scalar_lea.vmem %s7, %s1734
          // Predicated region
          $region69: #{facegen_gan_forward.4} parent=67 // pred_check
            _
          $region70: #{facegen_gan_forward.4} parent=67 // pred_check_branch
            %1737 = sbr.rel (0) target = $region72
          $region71: #{facegen_gan_forward.4} parent=67 // pred_region
            // Predicated region
            $region73: #{facegen_gan_forward.4} parent=71 // pred_check
              _
            $region74: #{facegen_gan_forward.4} parent=71 // pred_check_branch
              %1739 = sbr.rel (0) target = $region76
            $region75: #{facegen_gan_forward.4} parent=71 // pred_region
              // Predicated region
              $region88: #{facegen_gan_forward.4} parent=75 // pred_check
                _
              $region89: #{facegen_gan_forward.4} parent=75 // pred_check_branch
                %1757 = sbr.rel (0) target = $region91
              $region90: #{facegen_gan_forward.4} parent=75 // pred_region
                loop: start=0, step=1, limit=1
                $region92: #{facegen_gan_forward.4} parent=90 // loop_pre_header
                  _
                $region93: #{facegen_gan_forward.4} parent=90 // loop_header
                  %s1759 = sphi 0, %s1763
                  %p1760 = scmp.ge.s32.totalorder %s1759, 1
                  %s1764 = sphi %s1729, %s1729
                  %s1765 = sphi %s1735, %s1735
                $region94: #{facegen_gan_forward.4} parent=90 // loop_header_branch
                  %1762 = sbr.rel (%p1760) target = $region98
                $region95: #{facegen_gan_forward.4} parent=90 // loop_body
                  %v1766 = vld [vmem:[%s1764] sm:$0xff]
                  %1767 = vst [vmem:[%s1765] sm:$0xff] %v1766
                  %v1768 = vld [vmem:[%s1764 + $0x8] sm:$0xff]
                  %1769 = vst [vmem:[%s1765 + $0x20] sm:$0xff] %v1768
                $region96: #{facegen_gan_forward.4} parent=90 // loop_footer
                  %s1763 = sadd.s32 1, %s1759
                $region97: #{facegen_gan_forward.4} parent=90 // loop_footer_branch
                  %1758 = sbr.rel target = $region93
                $region98: #{facegen_gan_forward.4} parent=90 // loop_exit
                  _
              $region91: #{facegen_gan_forward.4} parent=75 // pred_fallthru
                _
              // Predicated region
              $region99: #{facegen_gan_forward.4} parent=75 // pred_check
                _
              $region100: #{facegen_gan_forward.4} parent=75 // pred_check_branch
                %1771 = sbr.rel target = $region102
              $region101: #{facegen_gan_forward.4} parent=75 // pred_region
                _
              $region102: #{facegen_gan_forward.4} parent=75 // pred_fallthru
                _
            $region76: #{facegen_gan_forward.4} parent=71 // pred_fallthru
              _
            // Predicated region
            $region77: #{facegen_gan_forward.4} parent=71 // pred_check
              _
            $region78: #{facegen_gan_forward.4} parent=71 // pred_check_branch
              %1741 = sbr.rel target = $region80
            $region79: #{facegen_gan_forward.4} parent=71 // pred_region
              %s1743 = ssub.s32 256, 1
              loop: start=0, step=1, limit=1
              $region81: #{facegen_gan_forward.4} parent=79 // loop_pre_header
                _
              $region82: #{facegen_gan_forward.4} parent=79 // loop_header
                %s1745 = sphi 0, %s1749
                %p1746 = scmp.ge.s32.totalorder %s1745, 1
                %s1750 = sphi %s1729, %s1729
                %s1751 = sphi %s1735, %s1735
              $region83: #{facegen_gan_forward.4} parent=79 // loop_header_branch
                %1748 = sbr.rel (%p1746) target = $region87
              $region84: #{facegen_gan_forward.4} parent=79 // loop_body
                %v1752 = vld [vmem:[%s1750] sm:%s1743]
                %1753 = vst [vmem:[%s1751] sm:%s1743] %v1752
                %v1754 = vld [vmem:[%s1750 + $0x8] sm:%s1743]
                %1755 = vst [vmem:[%s1751 + $0x20] sm:%s1743] %v1754
              $region85: #{facegen_gan_forward.4} parent=79 // loop_footer
                %s1749 = sadd.s32 1, %s1745
              $region86: #{facegen_gan_forward.4} parent=79 // loop_footer_branch
                %1744 = sbr.rel target = $region82
              $region87: #{facegen_gan_forward.4} parent=79 // loop_exit
                _
            $region80: #{facegen_gan_forward.4} parent=71 // pred_fallthru
              _
          $region72: #{facegen_gan_forward.4} parent=67 // pred_fallthru
            _
          %1772 = vnop
        $region68: #{facegen_gan_forward.4} parent=47 // pred_fallthru
          _
      $region48: #{facegen_gan_forward.4} parent=5 // pred_fallthru
        _
      %p1773 = scmp.le.s32.totalorder 2, %s21
      // Predicated region
      $region103: #{facegen_gan_forward.4} parent=5 // pred_check
        %p1774 = pneg %p1773
      $region104: #{facegen_gan_forward.4} parent=5 // pred_check_branch
        %1776 = sbr.rel (%p1774) target = $region106
      $region105: #{facegen_gan_forward.4} parent=5 // pred_region
        %s1777 = ssub.s32 %s21, 2
        // Predicated region
        $region107: #{facegen_gan_forward.4} parent=105 // pred_check
          %p1778 = pneg %p212
        $region108: #{facegen_gan_forward.4} parent=105 // pred_check_branch
          %1780 = sbr.rel (%p1778) target = $region110
        $region109: #{facegen_gan_forward.4} parent=105 // pred_region
          %s1781 = sand.u32 %s197, 1
          %s1782 = sand.u32 %s197, 1
          %s1783 = smul.addr %s1782, 16
          %s1784 = scalar_lea.vmem [#allocation10], %s1783
        $region110: #{facegen_gan_forward.4} parent=105 // pred_fallthru
          _
      $region106: #{facegen_gan_forward.4} parent=5 // pred_fallthru
        _
    $region6: #{facegen_gan_forward.4} parent=1 // loop_footer
      %s25 = sadd.s32 1, %s21
    $region7: #{facegen_gan_forward.4} parent=1 // loop_footer_branch
      %20 = sbr.rel target = $region3
    $region8: #{facegen_gan_forward.4} parent=1 // loop_exit
      _
    %1785 = vsyncpa [#allocation4], 1
    %s1786 = scalar_lea.sflag [#allocation4], 1
    %1787 = vsyncpa %s1786, 1
    %1788 = vsyncpa [#allocation6], 1
    %s1789 = scalar_lea.sflag [#allocation6], 1
    %1790 = vsyncpa %s1789, 1
    %1791 = vsyncpa [#allocation9], 1

// kernel: facegen_gan_forward.5
$region0: #{facegen_gan_forward.5}
  #allocation0 [shape = 'u32[]', space=smem, size = 0x4, offset = 0x4, fixed_abs, tag = 'smem constant byte address 0x4 - core index']
  #allocation1 [shape = 'u32[72,128]{1,0:T(1,128)}', space=vmem, size = 0x9000, scoped, tag = 'internal scratch']
  #allocation2 [shape = 'f32[1]{0:T(128)S(6)}', space=smem, size = 0x200, scoped, tag = 'scoped memory for facegen_gan_forward.5']
  %s0 = inlined_call_operand.<no memory space> [shape: f32[1], index: 0, kind: input, shape index: {}]
  %s1 = inlined_call_operand.vmem [shape: bf16[32,576], index: 1, kind: input, shape index: {}]
  %s2 = inlined_call_operand.vmem [shape: bf16[576,128], index: 2, kind: input, shape index: {}]
  %s3 = inlined_call_operand.vmem [shape: f32[128,32], index: 3, kind: input, shape index: {}]
  %s4 = inlined_call_operand.vmem [shape: f32[32,128], index: 4, kind: input, shape index: {}]
  %s5 = inlined_call_operand.vmem [shape: f32[1,32], index: 5, kind: input, shape index: {}]
  %s6 = inlined_call_operand.vmem [shape: f32[1,32], index: 6, kind: input, shape index: {}]
  %s7 = inlined_call_operand.vmem [shape: bf16[32,128], index: 7, kind: output, shape index: {}]
  %s8 = sld [smem:[#allocation0]]
  $region38: #{facegen_gan_forward.5} parent=0
    _
  %s10 = ssub.s32 1, %s8
  %s11 = scalar_select 0, %s10, %s8
  %12 = sst [smem:[#allocation2]] %s0
  // Predicated region
  $region2: #{facegen_gan_forward.5} parent=0 // pred_check
    _
  $region3: #{facegen_gan_forward.5} parent=0 // pred_check_branch
    %14 = sbr.rel (0) target = $region5
  $region4: #{facegen_gan_forward.5} parent=0 // pred_region
    _
  $region5: #{facegen_gan_forward.5} parent=0 // pred_fallthru
    _
  // Predicated region
  $region6: #{facegen_gan_forward.5} parent=0 // pred_check
    _
  $region7: #{facegen_gan_forward.5} parent=0 // pred_check_branch
    %16 = sbr.rel (0) target = $region9
  $region8: #{facegen_gan_forward.5} parent=0 // pred_region
    _
  $region9: #{facegen_gan_forward.5} parent=0 // pred_fallthru
    _
  // Predicated region
  $region10: #{facegen_gan_forward.5} parent=0 // pred_check
    _
  $region11: #{facegen_gan_forward.5} parent=0 // pred_check_branch
    %18 = sbr.rel (0) target = $region13
  $region12: #{facegen_gan_forward.5} parent=0 // pred_region
    _
  $region13: #{facegen_gan_forward.5} parent=0 // pred_fallthru
    _
  // Predicated region
  $region14: #{facegen_gan_forward.5} parent=0 // pred_check
    _
  $region15: #{facegen_gan_forward.5} parent=0 // pred_check_branch
    %20 = sbr.rel (0) target = $region17
  $region16: #{facegen_gan_forward.5} parent=0 // pred_region
    _
  $region17: #{facegen_gan_forward.5} parent=0 // pred_fallthru
    _
  // Predicated region
  $region18: #{facegen_gan_forward.5} parent=0 // pred_check
    _
  $region19: #{facegen_gan_forward.5} parent=0 // pred_check_branch
    %22 = sbr.rel (0) target = $region21
  $region20: #{facegen_gan_forward.5} parent=0 // pred_region
    _
  $region21: #{facegen_gan_forward.5} parent=0 // pred_fallthru
    _
  // Predicated region
  $region22: #{facegen_gan_forward.5} parent=0 // pred_check
    _
  $region23: #{facegen_gan_forward.5} parent=0 // pred_check_branch
    %24 = sbr.rel (0) target = $region25
  $region24: #{facegen_gan_forward.5} parent=0 // pred_region
    _
  $region25: #{facegen_gan_forward.5} parent=0 // pred_fallthru
    _
  // Predicated region
  $region26: #{facegen_gan_forward.5} parent=0 // pred_check
    _
  $region27: #{facegen_gan_forward.5} parent=0 // pred_check_branch
    %26 = sbr.rel (0) target = $region29
  $region28: #{facegen_gan_forward.5} parent=0 // pred_region
    _
  $region29: #{facegen_gan_forward.5} parent=0 // pred_fallthru
    _
  %s28 = sld [smem:[#allocation2]]
  %v29 = vld [vmem:[%s1] sm:$0xff]
  %v30 = vld [vmem:[%s1 + $0x8] sm:$0xff]
  %v31 = vld [vmem:[%s1 + $0x10] sm:$0xf]
  %v32 = vld [vmem:[%s1 + $0x14] sm:$0xff]
  %v33 = vld [vmem:[%s1 + $0x1c] sm:$0xff]
  %v34 = vld [vmem:[%s1 + $0x24] sm:$0xf]
  %v35 = vld [vmem:[%s1 + $0x28] sm:$0xff]
  %v36 = vld [vmem:[%s1 + $0x30] sm:$0xff]
  %v37 = vld [vmem:[%s1 + $0x38] sm:$0xf]
  %v38 = vld [vmem:[%s1 + $0x3c] sm:$0xff]
  %v39 = vld [vmem:[%s1 + $0x44] sm:$0xff]
  %v40 = vld [vmem:[%s1 + $0x4c] sm:$0xf]
  %v41 = vld [vmem:[%s2] sm:$0xf]
  %v42 = vld [vmem:[%s2 + $0x4] sm:$0xf]
  %v43 = vld [vmem:[%s2 + $0x8] sm:$0xf]
  %v44 = vld [vmem:[%s2 + $0xc] sm:$0xf]
  %v45 = vld [vmem:[%s2 + $0x10] sm:$0xf]
  %v46 = vld [vmem:[%s2 + $0x14] sm:$0xf]
  %v47 = vld [vmem:[%s2 + $0x18] sm:$0xf]
  %v48 = vld [vmem:[%s2 + $0x1c] sm:$0xf]
  %v49 = vld [vmem:[%s2 + $0x20] sm:$0xf]
  %v50 = vld [vmem:[%s2 + $0x24] sm:$0xf]
  %v51 = vld [vmem:[%s2 + $0x28] sm:$0xf]
  %v52 = vld [vmem:[%s2 + $0x2c] sm:$0xf]
  %v53 = vld [vmem:[%s2 + $0x30] sm:$0xf]
  %v54 = vld [vmem:[%s2 + $0x34] sm:$0xf]
  %v55 = vld [vmem:[%s2 + $0x38] sm:$0xf]
  %v56 = vld [vmem:[%s2 + $0x3c] sm:$0xf]
  %v57 = vld [vmem:[%s2 + $0x40] sm:$0xf]
  %v58 = vld [vmem:[%s2 + $0x44] sm:$0xf]
  %v59 = vld [vmem:[%s2 + $0x48] sm:$0xf]
  %v60 = vld [vmem:[%s2 + $0x4c] sm:$0xf]
  %v61 = vld [vmem:[%s2 + $0x50] sm:$0xf]
  %v62 = vld [vmem:[%s2 + $0x54] sm:$0xf]
  %v63 = vld [vmem:[%s2 + $0x58] sm:$0xf]
  %v64 = vld [vmem:[%s2 + $0x5c] sm:$0xf]
  %v65 = vld [vmem:[%s2 + $0x60] sm:$0xf]
  %v66 = vld [vmem:[%s2 + $0x64] sm:$0xf]
  %v67 = vld [vmem:[%s2 + $0x68] sm:$0xf]
  %v68 = vld [vmem:[%s2 + $0x6c] sm:$0xf]
  %v69 = vld [vmem:[%s2 + $0x70] sm:$0xf]
  %v70 = vld [vmem:[%s2 + $0x74] sm:$0xf]
  %v71 = vld [vmem:[%s2 + $0x78] sm:$0xf]
  %v72 = vld [vmem:[%s2 + $0x7c] sm:$0xf]
  %v73 = vld [vmem:[%s2 + $0x80] sm:$0xf]
  %v74 = vld [vmem:[%s2 + $0x84] sm:$0xf]
  %v75 = vld [vmem:[%s2 + $0x88] sm:$0xf]
  %v76 = vld [vmem:[%s2 + $0x8c] sm:$0xf]
  %v77 = vld [vmem:[%s2 + $0x90] sm:$0xf]
  %v78 = vld [vmem:[%s2 + $0x94] sm:$0xf]
  %v79 = vld [vmem:[%s2 + $0x98] sm:$0xf]
  %v80 = vld [vmem:[%s2 + $0x9c] sm:$0xf]
  %v81 = vld [vmem:[%s2 + $0xa0] sm:$0xf]
  %v82 = vld [vmem:[%s2 + $0xa4] sm:$0xf]
  %v83 = vld [vmem:[%s2 + $0xa8] sm:$0xf]
  %v84 = vld [vmem:[%s2 + $0xac] sm:$0xf]
  %v85 = vld [vmem:[%s2 + $0xb0] sm:$0xf]
  %v86 = vld [vmem:[%s2 + $0xb4] sm:$0xf]
  %v87 = vld [vmem:[%s2 + $0xb8] sm:$0xf]
  %v88 = vld [vmem:[%s2 + $0xbc] sm:$0xf]
  %v89 = vld [vmem:[%s2 + $0xc0] sm:$0xf]
  %v90 = vld [vmem:[%s2 + $0xc4] sm:$0xf]
  %v91 = vld [vmem:[%s2 + $0xc8] sm:$0xf]
  %v92 = vld [vmem:[%s2 + $0xcc] sm:$0xf]
  %v93 = vld [vmem:[%s2 + $0xd0] sm:$0xf]
  %v94 = vld [vmem:[%s2 + $0xd4] sm:$0xf]
  %v95 = vld [vmem:[%s2 + $0xd8] sm:$0xf]
  %v96 = vld [vmem:[%s2 + $0xdc] sm:$0xf]
  %v97 = vld [vmem:[%s2 + $0xe0] sm:$0xf]
  %v98 = vld [vmem:[%s2 + $0xe4] sm:$0xf]
  %v99 = vld [vmem:[%s2 + $0xe8] sm:$0xf]
  %v100 = vld [vmem:[%s2 + $0xec] sm:$0xf]
  %v101 = vld [vmem:[%s2 + $0xf0] sm:$0xf]
  %v102 = vld [vmem:[%s2 + $0xf4] sm:$0xf]
  %v103 = vld [vmem:[%s2 + $0xf8] sm:$0xf]
  %v104 = vld [vmem:[%s2 + $0xfc] sm:$0xf]
  %v105 = vld [vmem:[%s2 + $0x100] sm:$0xf]
  %v106 = vld [vmem:[%s2 + $0x104] sm:$0xf]
  %v107 = vld [vmem:[%s2 + $0x108] sm:$0xf]
  %v108 = vld [vmem:[%s2 + $0x10c] sm:$0xf]
  %v109 = vld [vmem:[%s2 + $0x110] sm:$0xf]
  %v110 = vld [vmem:[%s2 + $0x114] sm:$0xf]
  %v111 = vld [vmem:[%s2 + $0x118] sm:$0xf]
  %v112 = vld [vmem:[%s2 + $0x11c] sm:$0xf]
  %v125 = vunpack.c.l.b16 %v29
  %v126 = vunpack.c.h.b16 %v29
  %v127 = vunpack.c.l.b16 %v30
  %v128 = vunpack.c.h.b16 %v30
  %v129 = vunpack.c.l.b16 %v31
  %v130 = vunpack.c.l.b16 %v32
  %v131 = vunpack.c.h.b16 %v32
  %v132 = vunpack.c.l.b16 %v33
  %v133 = vunpack.c.h.b16 %v33
  %v134 = vunpack.c.l.b16 %v34
  %v135 = vunpack.c.l.b16 %v35
  %v136 = vunpack.c.h.b16 %v35
  %v137 = vunpack.c.l.b16 %v36
  %v138 = vunpack.c.h.b16 %v36
  %v139 = vunpack.c.l.b16 %v37
  %v140 = vunpack.c.l.b16 %v38
  %v141 = vunpack.c.h.b16 %v38
  %v142 = vunpack.c.l.b16 %v39
  %v143 = vunpack.c.h.b16 %v39
  %v144 = vunpack.c.l.b16 %v40
  %v145 = vpack.c.b16 %v130, %v125
  %v146 = vpack.c.b16 %v131, %v126
  %v147 = vpack.c.b16 %v132, %v127
  %v148 = vpack.c.b16 %v133, %v128
  %v149 = vpack.c.b16 %v134, %v129
  %v150 = vpack.c.b16 %v140, %v135
  %v151 = vpack.c.b16 %v141, %v136
  %v152 = vpack.c.b16 %v142, %v137
  %v153 = vpack.c.b16 %v143, %v138
  %v154 = vpack.c.b16 %v144, %v139
  %v235 = vunpack.c.l.b16 %v41
  %v236 = vunpack.c.l.b16 %v42
  %v237 = vunpack.c.l.b16 %v43
  %v238 = vunpack.c.l.b16 %v44
  %v239 = vunpack.c.l.b16 %v45
  %v240 = vunpack.c.l.b16 %v46
  %v241 = vunpack.c.l.b16 %v47
  %v242 = vunpack.c.l.b16 %v48
  %v243 = vunpack.c.l.b16 %v49
  %v244 = vunpack.c.l.b16 %v50
  %v245 = vunpack.c.l.b16 %v51
  %v246 = vunpack.c.l.b16 %v52
  %v247 = vunpack.c.l.b16 %v53
  %v248 = vunpack.c.l.b16 %v54
  %v249 = vunpack.c.l.b16 %v55
  %v250 = vunpack.c.l.b16 %v56
  %v251 = vunpack.c.l.b16 %v57
  %v252 = vunpack.c.l.b16 %v58
  %v253 = vunpack.c.l.b16 %v59
  %v254 = vunpack.c.l.b16 %v60
  %v255 = vunpack.c.l.b16 %v61
  %v256 = vunpack.c.l.b16 %v62
  %v257 = vunpack.c.l.b16 %v63
  %v258 = vunpack.c.l.b16 %v64
  %v259 = vunpack.c.l.b16 %v65
  %v260 = vunpack.c.l.b16 %v66
  %v261 = vunpack.c.l.b16 %v67
  %v262 = vunpack.c.l.b16 %v68
  %v263 = vunpack.c.l.b16 %v69
  %v264 = vunpack.c.l.b16 %v70
  %v265 = vunpack.c.l.b16 %v71
  %v266 = vunpack.c.l.b16 %v72
  %v267 = vunpack.c.l.b16 %v73
  %v268 = vunpack.c.l.b16 %v74
  %v269 = vunpack.c.l.b16 %v75
  %v270 = vunpack.c.l.b16 %v76
  %v271 = vunpack.c.l.b16 %v77
  %v272 = vunpack.c.l.b16 %v78
  %v273 = vunpack.c.l.b16 %v79
  %v274 = vunpack.c.l.b16 %v80
  %v275 = vunpack.c.l.b16 %v81
  %v276 = vunpack.c.l.b16 %v82
  %v277 = vunpack.c.l.b16 %v83
  %v278 = vunpack.c.l.b16 %v84
  %v279 = vunpack.c.l.b16 %v85
  %v280 = vunpack.c.l.b16 %v86
  %v281 = vunpack.c.l.b16 %v87
  %v282 = vunpack.c.l.b16 %v88
  %v283 = vunpack.c.l.b16 %v89
  %v284 = vunpack.c.l.b16 %v90
  %v285 = vunpack.c.l.b16 %v91
  %v286 = vunpack.c.l.b16 %v92
  %v287 = vunpack.c.l.b16 %v93
  %v288 = vunpack.c.l.b16 %v94
  %v289 = vunpack.c.l.b16 %v95
  %v290 = vunpack.c.l.b16 %v96
  %v291 = vunpack.c.l.b16 %v97
  %v292 = vunpack.c.l.b16 %v98
  %v293 = vunpack.c.l.b16 %v99
  %v294 = vunpack.c.l.b16 %v100
  %v295 = vunpack.c.l.b16 %v101
  %v296 = vunpack.c.l.b16 %v102
  %v297 = vunpack.c.l.b16 %v103
  %v298 = vunpack.c.l.b16 %v104
  %v299 = vunpack.c.l.b16 %v105
  %v300 = vunpack.c.l.b16 %v106
  %v301 = vunpack.c.l.b16 %v107
  %v302 = vunpack.c.l.b16 %v108
  %v303 = vunpack.c.l.b16 %v109
  %v304 = vunpack.c.l.b16 %v110
  %v305 = vunpack.c.l.b16 %v111
  %v306 = vunpack.c.l.b16 %v112
  %v307 = vpack.c.b16 %v236, %v235
  %v308 = vpack.c.b16 %v238, %v237
  %v309 = vpack.c.b16 %v240, %v239
  %v310 = vpack.c.b16 %v242, %v241
  %v311 = vpack.c.b16 %v244, %v243
  %v312 = vpack.c.b16 %v246, %v245
  %v313 = vpack.c.b16 %v248, %v247
  %v314 = vpack.c.b16 %v250, %v249
  %v315 = vpack.c.b16 %v252, %v251
  %v316 = vpack.c.b16 %v254, %v253
  %v317 = vpack.c.b16 %v256, %v255
  %v318 = vpack.c.b16 %v258, %v257
  %v319 = vpack.c.b16 %v260, %v259
  %v320 = vpack.c.b16 %v262, %v261
  %v321 = vpack.c.b16 %v264, %v263
  %v322 = vpack.c.b16 %v266, %v265
  %v323 = vpack.c.b16 %v268, %v267
  %v324 = vpack.c.b16 %v270, %v269
  %v325 = vpack.c.b16 %v272, %v271
  %v326 = vpack.c.b16 %v274, %v273
  %v327 = vpack.c.b16 %v276, %v275
  %v328 = vpack.c.b16 %v278, %v277
  %v329 = vpack.c.b16 %v280, %v279
  %v330 = vpack.c.b16 %v282, %v281
  %v331 = vpack.c.b16 %v284, %v283
  %v332 = vpack.c.b16 %v286, %v285
  %v333 = vpack.c.b16 %v288, %v287
  %v334 = vpack.c.b16 %v290, %v289
  %v335 = vpack.c.b16 %v292, %v291
  %v336 = vpack.c.b16 %v294, %v293
  %v337 = vpack.c.b16 %v296, %v295
  %v338 = vpack.c.b16 %v298, %v297
  %v339 = vpack.c.b16 %v300, %v299
  %v340 = vpack.c.b16 %v302, %v301
  %v341 = vpack.c.b16 %v304, %v303
  %v342 = vpack.c.b16 %v306, %v305
  %vm379 = vcmask 523264
  %v381 = vsel %vm379, %v149, 0
  %v384 = vsel %vm379, %v154, 0
  %386 = vmatpush.bf16.msra.mxu0 %v314
  %387 = vmatpush.bf16.msra.mxu0 %v313
  %388 = vmatpush.bf16.msra.mxu0 %v312
  %389 = vmatpush.bf16.msra.mxu0 %v311
  %390 = vmatpush.bf16.msra.mxu0 %v310
  %391 = vmatpush.bf16.msra.mxu0 %v309
  %392 = vmatpush.bf16.msra.mxu0 %v308
  %393 = vmatpush.bf16.msra.mxu0 %v307
  %394 = vmatmul.bf16.gmra.mxu0 %v145
  %v395 = vpop.f32.mrf.mxu0
  %v396 = vadd.f32 0.0, %v395
  %v397 = vpop.f32.mrf.mxu0
  %v398 = vadd.f32 0.0, %v397
  %399 = vmatmul.bf16.gmra.mxu0 %v150
  %v400 = vpop.f32.mrf.mxu0
  %v401 = vadd.f32 0.0, %v400
  %v402 = vpop.f32.mrf.mxu0
  %v403 = vadd.f32 0.0, %v402
  %404 = vdwg.mxu0
  %405 = vmatpush.bf16.msra.mxu0 %v322
  %406 = vmatpush.bf16.msra.mxu0 %v321
  %407 = vmatpush.bf16.msra.mxu0 %v320
  %408 = vmatpush.bf16.msra.mxu0 %v319
  %409 = vmatpush.bf16.msra.mxu0 %v318
  %410 = vmatpush.bf16.msra.mxu0 %v317
  %411 = vmatpush.bf16.msra.mxu0 %v316
  %412 = vmatpush.bf16.msra.mxu0 %v315
  %413 = vmatmul.bf16.gmra.mxu0 %v146
  %v414 = vpop.f32.mrf.mxu0
  %v415 = vadd.f32 %v396, %v414
  %v416 = vpop.f32.mrf.mxu0
  %v417 = vadd.f32 %v398, %v416
  %418 = vmatmul.bf16.gmra.mxu0 %v151
  %v419 = vpop.f32.mrf.mxu0
  %v420 = vadd.f32 %v401, %v419
  %v421 = vpop.f32.mrf.mxu0
  %v422 = vadd.f32 %v403, %v421
  %423 = vdwg.mxu0
  %424 = vmatpush.bf16.msra.mxu0 %v330
  %425 = vmatpush.bf16.msra.mxu0 %v329
  %426 = vmatpush.bf16.msra.mxu0 %v328
  %427 = vmatpush.bf16.msra.mxu0 %v327
  %428 = vmatpush.bf16.msra.mxu0 %v326
  %429 = vmatpush.bf16.msra.mxu0 %v325
  %430 = vmatpush.bf16.msra.mxu0 %v324
  %431 = vmatpush.bf16.msra.mxu0 %v323
  %432 = vmatmul.bf16.gmra.mxu0 %v147
  %v433 = vpop.f32.mrf.mxu0
  %v434 = vadd.f32 %v415, %v433
  %v435 = vpop.f32.mrf.mxu0
  %v436 = vadd.f32 %v417, %v435
  %437 = vmatmul.bf16.gmra.mxu0 %v152
  %v438 = vpop.f32.mrf.mxu0
  %v439 = vadd.f32 %v420, %v438
  %v440 = vpop.f32.mrf.mxu0
  %v441 = vadd.f32 %v422, %v440
  %442 = vdwg.mxu0
  %443 = vmatpush.bf16.msra.mxu0 %v338
  %444 = vmatpush.bf16.msra.mxu0 %v337
  %445 = vmatpush.bf16.msra.mxu0 %v336
  %446 = vmatpush.bf16.msra.mxu0 %v335
  %447 = vmatpush.bf16.msra.mxu0 %v334
  %448 = vmatpush.bf16.msra.mxu0 %v333
  %449 = vmatpush.bf16.msra.mxu0 %v332
  %450 = vmatpush.bf16.msra.mxu0 %v331
  %451 = vmatmul.bf16.gmra.mxu0 %v148
  %v452 = vpop.f32.mrf.mxu0
  %v453 = vadd.f32 %v434, %v452
  %v454 = vpop.f32.mrf.mxu0
  %v455 = vadd.f32 %v436, %v454
  %456 = vmatmul.bf16.gmra.mxu0 %v153
  %v457 = vpop.f32.mrf.mxu0
  %v458 = vadd.f32 %v439, %v457
  %v459 = vpop.f32.mrf.mxu0
  %v460 = vadd.f32 %v441, %v459
  %461 = vdwg.mxu0
  %462 = vmatpush.bf16.msra.mxu0 0
  %463 = vmatpush.bf16.msra.mxu0 0
  %464 = vmatpush.bf16.msra.mxu0 0
  %465 = vmatpush.bf16.msra.mxu0 0
  %466 = vmatpush.bf16.msra.mxu0 %v342
  %467 = vmatpush.bf16.msra.mxu0 %v341
  %468 = vmatpush.bf16.msra.mxu0 %v340
  %469 = vmatpush.bf16.msra.mxu0 %v339
  %470 = vmatmul.bf16.gmra.mxu0 %v381
  %v471 = vpop.f32.mrf.mxu0
  %v472 = vadd.f32 %v453, %v471
  %v473 = vpop.f32.mrf.mxu0
  %v474 = vadd.f32 %v455, %v473
  %475 = vmatmul.bf16.gmra.mxu0 %v384
  %v476 = vpop.f32.mrf.mxu0
  %v477 = vadd.f32 %v458, %v476
  %v478 = vpop.f32.mrf.mxu0
  %v479 = vadd.f32 %v460, %v478
  %480 = vdwg.mxu0
  %v481 = vadd.f32 %v472, %v474
  %v482 = vadd.f32 %v481, %v477
  %v483 = vadd.f32 %v482, %v479
  %v484 = vrot.slane %v483, 4
  %v485 = vadd.f32 %v483, %v484
  %v486 = vrot.slane %v485, 2
  %v487 = vadd.f32 %v485, %v486
  %v488 = vrot.slane %v487, 1
  %v489 = vadd.f32 %v487, %v488
  %v490 = vmul.f32 %v472, %v472
  %v491 = vmul.f32 %v474, %v474
  %v492 = vmul.f32 %v477, %v477
  %v493 = vmul.f32 %v479, %v479
  %v494 = vadd.f32 %v490, %v491
  %v495 = vadd.f32 %v494, %v492
  %v496 = vadd.f32 %v495, %v493
  %v497 = vrot.slane %v496, 4
  %v498 = vadd.f32 %v496, %v497
  %v499 = vrot.slane %v498, 2
  %v500 = vadd.f32 %v498, %v499
  %v501 = vrot.slane %v500, 1
  %v502 = vadd.f32 %v500, %v501
  %v503 = vld [vmem:[%s3] sm:$0xff]
  %v504 = vld [vmem:[%s3 + $0x8] sm:$0xff]
  %v505 = vld [vmem:[%s3 + $0x10] sm:$0xff]
  %v506 = vld [vmem:[%s3 + $0x18] sm:$0xff]
  %v507 = vld [vmem:[%s3 + $0x20] sm:$0xff]
  %v508 = vld [vmem:[%s3 + $0x28] sm:$0xff]
  %v509 = vld [vmem:[%s3 + $0x30] sm:$0xff]
  %v510 = vld [vmem:[%s3 + $0x38] sm:$0xff]
  %v511 = vld [vmem:[%s3 + $0x40] sm:$0xff]
  %v512 = vld [vmem:[%s3 + $0x48] sm:$0xff]
  %v513 = vld [vmem:[%s3 + $0x50] sm:$0xff]
  %v514 = vld [vmem:[%s3 + $0x58] sm:$0xff]
  %v515 = vld [vmem:[%s3 + $0x60] sm:$0xff]
  %v516 = vld [vmem:[%s3 + $0x68] sm:$0xff]
  %v517 = vld [vmem:[%s3 + $0x70] sm:$0xff]
  %v518 = vld [vmem:[%s3 + $0x78] sm:$0xff]
  %519 = vmatpush.msra.mxu0 %v518
  %520 = vmatpush.msra.mxu0 %v517
  %521 = vmatpush.msra.mxu0 %v516
  %522 = vmatpush.msra.mxu0 %v515
  %523 = vmatpush.msra.mxu0 %v514
  %524 = vmatpush.msra.mxu0 %v513
  %525 = vmatpush.msra.mxu0 %v512
  %526 = vmatpush.msra.mxu0 %v511
  %527 = vmatpush.msra.mxu0 %v510
  %528 = vmatpush.msra.mxu0 %v509
  %529 = vmatpush.msra.mxu0 %v508
  %530 = vmatpush.msra.mxu0 %v507
  %531 = vmatpush.msra.mxu0 %v506
  %532 = vmatpush.msra.mxu0 %v505
  %533 = vmatpush.msra.mxu0 %v504
  %534 = vmatpush.msra.mxu0 %v503
  %535 = vmatmul.f32.gmra.mxu0 %v489
  %v536 = vpop.f32.mrf.mxu0
  %v537 = vadd.f32 0.0, %v536
  %538 = vdwg.mxu0
  %539 = vmatpush.msra.mxu0 %v518
  %540 = vmatpush.msra.mxu0 %v517
  %541 = vmatpush.msra.mxu0 %v516
  %542 = vmatpush.msra.mxu0 %v515
  %543 = vmatpush.msra.mxu0 %v514
  %544 = vmatpush.msra.mxu0 %v513
  %545 = vmatpush.msra.mxu0 %v512
  %546 = vmatpush.msra.mxu0 %v511
  %547 = vmatpush.msra.mxu0 %v510
  %548 = vmatpush.msra.mxu0 %v509
  %549 = vmatpush.msra.mxu0 %v508
  %550 = vmatpush.msra.mxu0 %v507
  %551 = vmatpush.msra.mxu0 %v506
  %552 = vmatpush.msra.mxu0 %v505
  %553 = vmatpush.msra.mxu0 %v504
  %554 = vmatpush.msra.mxu0 %v503
  %555 = vmatmul.f32.gmra.mxu0 %v502
  %v556 = vpop.f32.mrf.mxu0
  %v557 = vadd.f32 0.0, %v556
  %558 = vdwg.mxu0
  %v559 = vstv %s28
  %v560 = vmul.f32 %v537, %v559
  %v561 = vmul.f32 %v557, %v559
  %v562 = vmul.f32 %v560, %v560
  %v563 = vsub.f32 %v561, %v562
  %v564 = vmax.f32 %v563, 0.0
  %v565 = vadd.f32 %v564, 1e-05
  %v566 = vrsqrt.pop %v565
  %v567 = vmul.f32 %v566, %v565
  %v568 = vmul.f32 %v567, %v566
  %v569 = vmul.f32 0.5, %v568
  %v570 = vsub.f32 1.5, %v569
  %v571 = vmul.f32 %v566, %v570
  %vm572 = vweird.f32 %v565
  %vm573 = vweird.f32 %v566
  %vm574 = vmor %vm572, %vm573
  %v575 = vsel %vm574, %v566, %v571
  %v576 = vld [vmem:[%s5] sm:$0x1]
  %v577 = vmul.f32 %v575, %v576
  %v578 = vld [vmem:[%s6] sm:$0x1]
  %v579 = vmul.f32 %v560, %v577
  %v580 = vsub.f32 %v578, %v579
  %v581 = vld [vmem:[%s4] sm:$0xff]
  %v582 = vld [vmem:[%s4 + $0x8] sm:$0xff]
  %v583 = vld [vmem:[%s4 + $0x10] sm:$0xff]
  %v584 = vld [vmem:[%s4 + $0x18] sm:$0xff]
  %vm585 = vcmask 261120
  %v587 = vsel %vm585, %v577, 0
  %589 = vmatpush.msra.mxu0 0.0
  %590 = vmatpush.msra.mxu0 0.0
  %591 = vmatpush.msra.mxu0 0.0
  %592 = vmatpush.msra.mxu0 0.0
  %593 = vmatpush.msra.mxu0 0.0
  %594 = vmatpush.msra.mxu0 0.0
  %595 = vmatpush.msra.mxu0 0.0
  %596 = vmatpush.msra.mxu0 0.0
  %597 = vmatpush.msra.mxu0 0.0
  %598 = vmatpush.msra.mxu0 0.0
  %599 = vmatpush.msra.mxu0 0.0
  %600 = vmatpush.msra.mxu0 0.0
  %601 = vmatpush.msra.mxu0 %v584
  %602 = vmatpush.msra.mxu0 %v583
  %603 = vmatpush.msra.mxu0 %v582
  %604 = vmatpush.msra.mxu0 %v581
  %605 = vmatmul.f32.gmra.mxu0 %v587
  %v606 = vpop.f32.mrf.mxu0
  %v607 = vadd.f32 0.0, %v606
  %608 = vdwg.mxu0
  %v610 = vsel %vm585, %v580, 0
  %612 = vmatpush.msra.mxu0 0.0
  %613 = vmatpush.msra.mxu0 0.0
  %614 = vmatpush.msra.mxu0 0.0
  %615 = vmatpush.msra.mxu0 0.0
  %616 = vmatpush.msra.mxu0 0.0
  %617 = vmatpush.msra.mxu0 0.0
  %618 = vmatpush.msra.mxu0 0.0
  %619 = vmatpush.msra.mxu0 0.0
  %620 = vmatpush.msra.mxu0 0.0
  %621 = vmatpush.msra.mxu0 0.0
  %622 = vmatpush.msra.mxu0 0.0
  %623 = vmatpush.msra.mxu0 0.0
  %624 = vmatpush.msra.mxu0 %v584
  %625 = vmatpush.msra.mxu0 %v583
  %626 = vmatpush.msra.mxu0 %v582
  %627 = vmatpush.msra.mxu0 %v581
  %628 = vmatmul.f32.gmra.mxu0 %v610
  %v629 = vpop.f32.mrf.mxu0
  %v630 = vadd.f32 0.0, %v629
  %631 = vdwg.mxu0
  %v632 = vperm.slane %v607, 0
  %v633 = vmul.f32 %v472, %v632
  %v634 = vmul.f32 %v474, %v632
  %v635 = vmul.f32 %v477, %v632
  %v636 = vmul.f32 %v479, %v632
  %v637 = vperm.slane %v630, 0
  %v638 = vadd.f32 %v633, %v637
  %v639 = vadd.f32 %v634, %v637
  %v640 = vadd.f32 %v635, %v637
  %v641 = vadd.f32 %v636, %v637
  %v642 = vmax.f32 %v638, 0.0
  %v643 = vmax.f32 %v639, 0.0
  %v644 = vmax.f32 %v640, 0.0
  %v645 = vmax.f32 %v641, 0.0
  %v646 = vpack.c.bf16 %v642, %v642
  %v647 = vpack.c.bf16 %v643, %v643
  %v648 = vpack.c.bf16 %v644, %v644
  %v649 = vpack.c.bf16 %v645, %v645
  %650 = vst [vmem:[%s7] sm:$0xf] %v646
  %651 = vst [vmem:[%s7 + $0x4] sm:$0xf] %v647
  %652 = vst [vmem:[%s7 + $0x8] sm:$0xf] %v648
  %653 = vst [vmem:[%s7 + $0xc] sm:$0xf] %v649
  // Predicated region
  $region30: #{facegen_gan_forward.5} parent=0 // pred_check
    _
  $region31: #{facegen_gan_forward.5} parent=0 // pred_check_branch
    %655 = sbr.rel (0) target = $region33
  $region32: #{facegen_gan_forward.5} parent=0 // pred_region
    _
  $region33: #{facegen_gan_forward.5} parent=0 // pred_fallthru
    _
  // Predicated region
  $region34: #{facegen_gan_forward.5} parent=0 // pred_check
    _
  $region35: #{facegen_gan_forward.5} parent=0 // pred_check_branch
    %657 = sbr.rel (0) target = $region37
  $region36: #{facegen_gan_forward.5} parent=0 // pred_region
    _
  $region37: #{facegen_gan_forward.5} parent=0 // pred_fallthru
    _

// kernel: facegen_gan_forward.6
$region0: #{facegen_gan_forward.6}
  #allocation0 [shape = 'u32[]', space=smem, size = 0x4, offset = 0x4, fixed_abs, tag = 'smem constant byte address 0x4 - core index']
  #allocation1 [shape = 'u32[72,128]{1,0:T(1,128)}', space=vmem, size = 0x9000, scoped, tag = 'internal scratch']
  #allocation2 [shape = 'f32[1]{0:T(128)S(6)}', space=smem, size = 0x200, scoped, tag = 'scoped memory for facegen_gan_forward.6']
  %s0 = inlined_call_operand.<no memory space> [shape: f32[1], index: 0, kind: input, shape index: {}]
  %s1 = inlined_call_operand.vmem [shape: bf16[128,288], index: 1, kind: input, shape index: {}]
  %s2 = inlined_call_operand.vmem [shape: bf16[288,64], index: 2, kind: input, shape index: {}]
  %s3 = inlined_call_operand.vmem [shape: f32[64,16], index: 3, kind: input, shape index: {}]
  %s4 = inlined_call_operand.vmem [shape: f32[16,64], index: 4, kind: input, shape index: {}]
  %s5 = inlined_call_operand.vmem [shape: f32[1,16], index: 5, kind: input, shape index: {}]
  %s6 = inlined_call_operand.vmem [shape: f32[1,16], index: 6, kind: input, shape index: {}]
  %s7 = inlined_call_operand.vmem [shape: bf16[128,64], index: 7, kind: output, shape index: {}]
  %s8 = sld [smem:[#allocation0]]
  $region38: #{facegen_gan_forward.6} parent=0
    _
  %s10 = ssub.s32 1, %s8
  %s11 = scalar_select 0, %s10, %s8
  %12 = sst [smem:[#allocation2]] %s0
  // Predicated region
  $region2: #{facegen_gan_forward.6} parent=0 // pred_check
    _
  $region3: #{facegen_gan_forward.6} parent=0 // pred_check_branch
    %14 = sbr.rel (0) target = $region5
  $region4: #{facegen_gan_forward.6} parent=0 // pred_region
    _
  $region5: #{facegen_gan_forward.6} parent=0 // pred_fallthru
    _
  // Predicated region
  $region6: #{facegen_gan_forward.6} parent=0 // pred_check
    _
  $region7: #{facegen_gan_forward.6} parent=0 // pred_check_branch
    %16 = sbr.rel (0) target = $region9
  $region8: #{facegen_gan_forward.6} parent=0 // pred_region
    _
  $region9: #{facegen_gan_forward.6} parent=0 // pred_fallthru
    _
  // Predicated region
  $region10: #{facegen_gan_forward.6} parent=0 // pred_check
    _
  $region11: #{facegen_gan_forward.6} parent=0 // pred_check_branch
    %18 = sbr.rel (0) target = $region13
  $region12: #{facegen_gan_forward.6} parent=0 // pred_region
    _
  $region13: #{facegen_gan_forward.6} parent=0 // pred_fallthru
    _
  // Predicated region
  $region14: #{facegen_gan_forward.6} parent=0 // pred_check
    _
  $region15: #{facegen_gan_forward.6} parent=0 // pred_check_branch
    %20 = sbr.rel (0) target = $region17
  $region16: #{facegen_gan_forward.6} parent=0 // pred_region
    _
  $region17: #{facegen_gan_forward.6} parent=0 // pred_fallthru
    _
  // Predicated region
  $region18: #{facegen_gan_forward.6} parent=0 // pred_check
    _
  $region19: #{facegen_gan_forward.6} parent=0 // pred_check_branch
    %22 = sbr.rel (0) target = $region21
  $region20: #{facegen_gan_forward.6} parent=0 // pred_region
    _
  $region21: #{facegen_gan_forward.6} parent=0 // pred_fallthru
    _
  // Predicated region
  $region22: #{facegen_gan_forward.6} parent=0 // pred_check
    _
  $region23: #{facegen_gan_forward.6} parent=0 // pred_check_branch
    %24 = sbr.rel (0) target = $region25
  $region24: #{facegen_gan_forward.6} parent=0 // pred_region
    _
  $region25: #{facegen_gan_forward.6} parent=0 // pred_fallthru
    _
  // Predicated region
  $region26: #{facegen_gan_forward.6} parent=0 // pred_check
    _
  $region27: #{facegen_gan_forward.6} parent=0 // pred_check_branch
    %26 = sbr.rel (0) target = $region29
  $region28: #{facegen_gan_forward.6} parent=0 // pred_region
    _
  $region29: #{facegen_gan_forward.6} parent=0 // pred_fallthru
    _
  %s28 = sld [smem:[#allocation2]]
  %v29 = vld [vmem:[%s1] sm:$0xff]
  %v30 = vld [vmem:[%s1 + $0x8] sm:$0xf]
  %v31 = vld [vmem:[%s1 + $0xc] sm:$0xff]
  %v32 = vld [vmem:[%s1 + $0x14] sm:$0xf]
  %v33 = vld [vmem:[%s1 + $0x18] sm:$0xff]
  %v34 = vld [vmem:[%s1 + $0x20] sm:$0xf]
  %v35 = vld [vmem:[%s1 + $0x24] sm:$0xff]
  %v36 = vld [vmem:[%s1 + $0x2c] sm:$0xf]
  %v37 = vld [vmem:[%s1 + $0x30] sm:$0xff]
  %v38 = vld [vmem:[%s1 + $0x38] sm:$0xf]
  %v39 = vld [vmem:[%s1 + $0x3c] sm:$0xff]
  %v40 = vld [vmem:[%s1 + $0x44] sm:$0xf]
  %v41 = vld [vmem:[%s1 + $0x48] sm:$0xff]
  %v42 = vld [vmem:[%s1 + $0x50] sm:$0xf]
  %v43 = vld [vmem:[%s1 + $0x54] sm:$0xff]
  %v44 = vld [vmem:[%s1 + $0x5c] sm:$0xf]
  %v45 = vld [vmem:[%s1 + $0x60] sm:$0xff]
  %v46 = vld [vmem:[%s1 + $0x68] sm:$0xf]
  %v47 = vld [vmem:[%s1 + $0x6c] sm:$0xff]
  %v48 = vld [vmem:[%s1 + $0x74] sm:$0xf]
  %v49 = vld [vmem:[%s1 + $0x78] sm:$0xff]
  %v50 = vld [vmem:[%s1 + $0x80] sm:$0xf]
  %v51 = vld [vmem:[%s1 + $0x84] sm:$0xff]
  %v52 = vld [vmem:[%s1 + $0x8c] sm:$0xf]
  %v53 = vld [vmem:[%s1 + $0x90] sm:$0xff]
  %v54 = vld [vmem:[%s1 + $0x98] sm:$0xf]
  %v55 = vld [vmem:[%s1 + $0x9c] sm:$0xff]
  %v56 = vld [vmem:[%s1 + $0xa4] sm:$0xf]
  %v57 = vld [vmem:[%s1 + $0xa8] sm:$0xff]
  %v58 = vld [vmem:[%s1 + $0xb0] sm:$0xf]
  %v59 = vld [vmem:[%s1 + $0xb4] sm:$0xff]
  %v60 = vld [vmem:[%s1 + $0xbc] sm:$0xf]
  %v61 = vld [vmem:[%s2] sm:$0xf]
  %v62 = vld [vmem:[%s2 + $0x4] sm:$0xf]
  %v63 = vld [vmem:[%s2 + $0x8] sm:$0xf]
  %v64 = vld [vmem:[%s2 + $0xc] sm:$0xf]
  %v65 = vld [vmem:[%s2 + $0x10] sm:$0xf]
  %v66 = vld [vmem:[%s2 + $0x14] sm:$0xf]
  %v67 = vld [vmem:[%s2 + $0x18] sm:$0xf]
  %v68 = vld [vmem:[%s2 + $0x1c] sm:$0xf]
  %v69 = vld [vmem:[%s2 + $0x20] sm:$0xf]
  %v70 = vld [vmem:[%s2 + $0x24] sm:$0xf]
  %v71 = vld [vmem:[%s2 + $0x28] sm:$0xf]
  %v72 = vld [vmem:[%s2 + $0x2c] sm:$0xf]
  %v73 = vld [vmem:[%s2 + $0x30] sm:$0xf]
  %v74 = vld [vmem:[%s2 + $0x34] sm:$0xf]
  %v75 = vld [vmem:[%s2 + $0x38] sm:$0xf]
  %v76 = vld [vmem:[%s2 + $0x3c] sm:$0xf]
  %v77 = vld [vmem:[%s2 + $0x40] sm:$0xf]
  %v78 = vld [vmem:[%s2 + $0x44] sm:$0xf]
  %v79 = vld [vmem:[%s2 + $0x48] sm:$0xf]
  %v80 = vld [vmem:[%s2 + $0x4c] sm:$0xf]
  %v81 = vld [vmem:[%s2 + $0x50] sm:$0xf]
  %v82 = vld [vmem:[%s2 + $0x54] sm:$0xf]
  %v83 = vld [vmem:[%s2 + $0x58] sm:$0xf]
  %v84 = vld [vmem:[%s2 + $0x5c] sm:$0xf]
  %v85 = vld [vmem:[%s2 + $0x60] sm:$0xf]
  %v86 = vld [vmem:[%s2 + $0x64] sm:$0xf]
  %v87 = vld [vmem:[%s2 + $0x68] sm:$0xf]
  %v88 = vld [vmem:[%s2 + $0x6c] sm:$0xf]
  %v89 = vld [vmem:[%s2 + $0x70] sm:$0xf]
  %v90 = vld [vmem:[%s2 + $0x74] sm:$0xf]
  %v91 = vld [vmem:[%s2 + $0x78] sm:$0xf]
  %v92 = vld [vmem:[%s2 + $0x7c] sm:$0xf]
  %v93 = vld [vmem:[%s2 + $0x80] sm:$0xf]
  %v94 = vld [vmem:[%s2 + $0x84] sm:$0xf]
  %v95 = vld [vmem:[%s2 + $0x88] sm:$0xf]
  %v96 = vld [vmem:[%s2 + $0x8c] sm:$0xf]
  %v129 = vunpack.c.l.b16 %v29
  %v130 = vunpack.c.h.b16 %v29
  %v131 = vunpack.c.l.b16 %v30
  %v132 = vunpack.c.l.b16 %v31
  %v133 = vunpack.c.h.b16 %v31
  %v134 = vunpack.c.l.b16 %v32
  %v135 = vunpack.c.l.b16 %v33
  %v136 = vunpack.c.h.b16 %v33
  %v137 = vunpack.c.l.b16 %v34
  %v138 = vunpack.c.l.b16 %v35
  %v139 = vunpack.c.h.b16 %v35
  %v140 = vunpack.c.l.b16 %v36
  %v141 = vunpack.c.l.b16 %v37
  %v142 = vunpack.c.h.b16 %v37
  %v143 = vunpack.c.l.b16 %v38
  %v144 = vunpack.c.l.b16 %v39
  %v145 = vunpack.c.h.b16 %v39
  %v146 = vunpack.c.l.b16 %v40
  %v147 = vunpack.c.l.b16 %v41
  %v148 = vunpack.c.h.b16 %v41
  %v149 = vunpack.c.l.b16 %v42
  %v150 = vunpack.c.l.b16 %v43
  %v151 = vunpack.c.h.b16 %v43
  %v152 = vunpack.c.l.b16 %v44
  %v153 = vunpack.c.l.b16 %v45
  %v154 = vunpack.c.h.b16 %v45
  %v155 = vunpack.c.l.b16 %v46
  %v156 = vunpack.c.l.b16 %v47
  %v157 = vunpack.c.h.b16 %v47
  %v158 = vunpack.c.l.b16 %v48
  %v159 = vunpack.c.l.b16 %v49
  %v160 = vunpack.c.h.b16 %v49
  %v161 = vunpack.c.l.b16 %v50
  %v162 = vunpack.c.l.b16 %v51
  %v163 = vunpack.c.h.b16 %v51
  %v164 = vunpack.c.l.b16 %v52
  %v165 = vunpack.c.l.b16 %v53
  %v166 = vunpack.c.h.b16 %v53
  %v167 = vunpack.c.l.b16 %v54
  %v168 = vunpack.c.l.b16 %v55
  %v169 = vunpack.c.h.b16 %v55
  %v170 = vunpack.c.l.b16 %v56
  %v171 = vunpack.c.l.b16 %v57
  %v172 = vunpack.c.h.b16 %v57
  %v173 = vunpack.c.l.b16 %v58
  %v174 = vunpack.c.l.b16 %v59
  %v175 = vunpack.c.h.b16 %v59
  %v176 = vunpack.c.l.b16 %v60
  %v177 = vpack.c.b16 %v132, %v129
  %v178 = vpack.c.b16 %v133, %v130
  %v179 = vpack.c.b16 %v134, %v131
  %v180 = vpack.c.b16 %v138, %v135
  %v181 = vpack.c.b16 %v139, %v136
  %v182 = vpack.c.b16 %v140, %v137
  %v183 = vpack.c.b16 %v144, %v141
  %v184 = vpack.c.b16 %v145, %v142
  %v185 = vpack.c.b16 %v146, %v143
  %v186 = vpack.c.b16 %v150, %v147
  %v187 = vpack.c.b16 %v151, %v148
  %v188 = vpack.c.b16 %v152, %v149
  %v189 = vpack.c.b16 %v156, %v153
  %v190 = vpack.c.b16 %v157, %v154
  %v191 = vpack.c.b16 %v158, %v155
  %v192 = vpack.c.b16 %v162, %v159
  %v193 = vpack.c.b16 %v163, %v160
  %v194 = vpack.c.b16 %v164, %v161
  %v195 = vpack.c.b16 %v168, %v165
  %v196 = vpack.c.b16 %v169, %v166
  %v197 = vpack.c.b16 %v170, %v167
  %v198 = vpack.c.b16 %v174, %v171
  %v199 = vpack.c.b16 %v175, %v172
  %v200 = vpack.c.b16 %v176, %v173
  %v253 = vunpack.c.l.b16 %v61
  %v254 = vunpack.c.l.b16 %v62
  %v255 = vunpack.c.l.b16 %v63
  %v256 = vunpack.c.l.b16 %v64
  %v257 = vunpack.c.l.b16 %v65
  %v258 = vunpack.c.l.b16 %v66
  %v259 = vunpack.c.l.b16 %v67
  %v260 = vunpack.c.l.b16 %v68
  %v261 = vunpack.c.l.b16 %v69
  %v262 = vunpack.c.l.b16 %v70
  %v263 = vunpack.c.l.b16 %v71
  %v264 = vunpack.c.l.b16 %v72
  %v265 = vunpack.c.l.b16 %v73
  %v266 = vunpack.c.l.b16 %v74
  %v267 = vunpack.c.l.b16 %v75
  %v268 = vunpack.c.l.b16 %v76
  %v269 = vunpack.c.l.b16 %v77
  %v270 = vunpack.c.l.b16 %v78
  %v271 = vunpack.c.l.b16 %v79
  %v272 = vunpack.c.l.b16 %v80
  %v273 = vunpack.c.l.b16 %v81
  %v274 = vunpack.c.l.b16 %v82
  %v275 = vunpack.c.l.b16 %v83
  %v276 = vunpack.c.l.b16 %v84
  %v277 = vunpack.c.l.b16 %v85
  %v278 = vunpack.c.l.b16 %v86
  %v279 = vunpack.c.l.b16 %v87
  %v280 = vunpack.c.l.b16 %v88
  %v281 = vunpack.c.l.b16 %v89
  %v282 = vunpack.c.l.b16 %v90
  %v283 = vunpack.c.l.b16 %v91
  %v284 = vunpack.c.l.b16 %v92
  %v285 = vunpack.c.l.b16 %v93
  %v286 = vunpack.c.l.b16 %v94
  %v287 = vunpack.c.l.b16 %v95
  %v288 = vunpack.c.l.b16 %v96
  %v289 = vpack.c.b16 %v254, %v253
  %v290 = vpack.c.b16 %v256, %v255
  %v291 = vpack.c.b16 %v258, %v257
  %v292 = vpack.c.b16 %v260, %v259
  %v293 = vpack.c.b16 %v262, %v261
  %v294 = vpack.c.b16 %v264, %v263
  %v295 = vpack.c.b16 %v266, %v265
  %v296 = vpack.c.b16 %v268, %v267
  %v297 = vpack.c.b16 %v270, %v269
  %v298 = vpack.c.b16 %v272, %v271
  %v299 = vpack.c.b16 %v274, %v273
  %v300 = vpack.c.b16 %v276, %v275
  %v301 = vpack.c.b16 %v278, %v277
  %v302 = vpack.c.b16 %v280, %v279
  %v303 = vpack.c.b16 %v282, %v281
  %v304 = vpack.c.b16 %v284, %v283
  %v305 = vpack.c.b16 %v286, %v285
  %v306 = vpack.c.b16 %v288, %v287
  %vm325 = vcmask 261120
  %v327 = vsel %vm325, %v179, 0
  %v330 = vsel %vm325, %v182, 0
  %v333 = vsel %vm325, %v185, 0
  %v336 = vsel %vm325, %v188, 0
  %v339 = vsel %vm325, %v191, 0
  %v342 = vsel %vm325, %v194, 0
  %v345 = vsel %vm325, %v197, 0
  %v348 = vsel %vm325, %v200, 0
  %350 = vmatpush.bf16.msra.mxu0 %v296
  %351 = vmatpush.bf16.msra.mxu0 %v295
  %352 = vmatpush.bf16.msra.mxu0 %v294
  %353 = vmatpush.bf16.msra.mxu0 %v293
  %354 = vmatpush.bf16.msra.mxu0 %v292
  %355 = vmatpush.bf16.msra.mxu0 %v291
  %356 = vmatpush.bf16.msra.mxu0 %v290
  %357 = vmatpush.bf16.msra.mxu0 %v289
  %358 = vmatmul.bf16.gmra.mxu0 %v177
  %v359 = vpop.f32.mrf.mxu0
  %v360 = vadd.f32 0.0, %v359
  %v361 = vpop.f32.mrf.mxu0
  %v362 = vadd.f32 0.0, %v361
  %363 = vmatmul.bf16.gmra.mxu0 %v180
  %v364 = vpop.f32.mrf.mxu0
  %v365 = vadd.f32 0.0, %v364
  %v366 = vpop.f32.mrf.mxu0
  %v367 = vadd.f32 0.0, %v366
  %368 = vmatmul.bf16.gmra.mxu0 %v183
  %v369 = vpop.f32.mrf.mxu0
  %v370 = vadd.f32 0.0, %v369
  %v371 = vpop.f32.mrf.mxu0
  %v372 = vadd.f32 0.0, %v371
  %373 = vmatmul.bf16.gmra.mxu0 %v186
  %v374 = vpop.f32.mrf.mxu0
  %v375 = vadd.f32 0.0, %v374
  %v376 = vpop.f32.mrf.mxu0
  %v377 = vadd.f32 0.0, %v376
  %378 = vmatmul.bf16.gmra.mxu0 %v189
  %v379 = vpop.f32.mrf.mxu0
  %v380 = vadd.f32 0.0, %v379
  %v381 = vpop.f32.mrf.mxu0
  %v382 = vadd.f32 0.0, %v381
  %383 = vmatmul.bf16.gmra.mxu0 %v192
  %v384 = vpop.f32.mrf.mxu0
  %v385 = vadd.f32 0.0, %v384
  %v386 = vpop.f32.mrf.mxu0
  %v387 = vadd.f32 0.0, %v386
  %388 = vmatmul.bf16.gmra.mxu0 %v195
  %v389 = vpop.f32.mrf.mxu0
  %v390 = vadd.f32 0.0, %v389
  %v391 = vpop.f32.mrf.mxu0
  %v392 = vadd.f32 0.0, %v391
  %393 = vmatmul.bf16.gmra.mxu0 %v198
  %v394 = vpop.f32.mrf.mxu0
  %v395 = vadd.f32 0.0, %v394
  %v396 = vpop.f32.mrf.mxu0
  %v397 = vadd.f32 0.0, %v396
  %398 = vdwg.mxu0
  %399 = vmatpush.bf16.msra.mxu0 %v304
  %400 = vmatpush.bf16.msra.mxu0 %v303
  %401 = vmatpush.bf16.msra.mxu0 %v302
  %402 = vmatpush.bf16.msra.mxu0 %v301
  %403 = vmatpush.bf16.msra.mxu0 %v300
  %404 = vmatpush.bf16.msra.mxu0 %v299
  %405 = vmatpush.bf16.msra.mxu0 %v298
  %406 = vmatpush.bf16.msra.mxu0 %v297
  %407 = vmatmul.bf16.gmra.mxu0 %v178
  %v408 = vpop.f32.mrf.mxu0
  %v409 = vadd.f32 %v360, %v408
  %v410 = vpop.f32.mrf.mxu0
  %v411 = vadd.f32 %v362, %v410
  %412 = vmatmul.bf16.gmra.mxu0 %v181
  %v413 = vpop.f32.mrf.mxu0
  %v414 = vadd.f32 %v365, %v413
  %v415 = vpop.f32.mrf.mxu0
  %v416 = vadd.f32 %v367, %v415
  %417 = vmatmul.bf16.gmra.mxu0 %v184
  %v418 = vpop.f32.mrf.mxu0
  %v419 = vadd.f32 %v370, %v418
  %v420 = vpop.f32.mrf.mxu0
  %v421 = vadd.f32 %v372, %v420
  %422 = vmatmul.bf16.gmra.mxu0 %v187
  %v423 = vpop.f32.mrf.mxu0
  %v424 = vadd.f32 %v375, %v423
  %v425 = vpop.f32.mrf.mxu0
  %v426 = vadd.f32 %v377, %v425
  %427 = vmatmul.bf16.gmra.mxu0 %v190
  %v428 = vpop.f32.mrf.mxu0
  %v429 = vadd.f32 %v380, %v428
  %v430 = vpop.f32.mrf.mxu0
  %v431 = vadd.f32 %v382, %v430
  %432 = vmatmul.bf16.gmra.mxu0 %v193
  %v433 = vpop.f32.mrf.mxu0
  %v434 = vadd.f32 %v385, %v433
  %v435 = vpop.f32.mrf.mxu0
  %v436 = vadd.f32 %v387, %v435
  %437 = vmatmul.bf16.gmra.mxu0 %v196
  %v438 = vpop.f32.mrf.mxu0
  %v439 = vadd.f32 %v390, %v438
  %v440 = vpop.f32.mrf.mxu0
  %v441 = vadd.f32 %v392, %v440
  %442 = vmatmul.bf16.gmra.mxu0 %v199
  %v443 = vpop.f32.mrf.mxu0
  %v444 = vadd.f32 %v395, %v443
  %v445 = vpop.f32.mrf.mxu0
  %v446 = vadd.f32 %v397, %v445
  %447 = vdwg.mxu0
  %448 = vmatpush.bf16.msra.mxu0 0
  %449 = vmatpush.bf16.msra.mxu0 0
  %450 = vmatpush.bf16.msra.mxu0 0
  %451 = vmatpush.bf16.msra.mxu0 0
  %452 = vmatpush.bf16.msra.mxu0 0
  %453 = vmatpush.bf16.msra.mxu0 0
  %454 = vmatpush.bf16.msra.mxu0 %v306
  %455 = vmatpush.bf16.msra.mxu0 %v305
  %456 = vmatmul.bf16.gmra.mxu0 %v327
  %v457 = vpop.f32.mrf.mxu0
  %v458 = vadd.f32 %v409, %v457
  %v459 = vpop.f32.mrf.mxu0
  %v460 = vadd.f32 %v411, %v459
  %461 = vmatmul.bf16.gmra.mxu0 %v330
  %v462 = vpop.f32.mrf.mxu0
  %v463 = vadd.f32 %v414, %v462
  %v464 = vpop.f32.mrf.mxu0
  %v465 = vadd.f32 %v416, %v464
  %466 = vmatmul.bf16.gmra.mxu0 %v333
  %v467 = vpop.f32.mrf.mxu0
  %v468 = vadd.f32 %v419, %v467
  %v469 = vpop.f32.mrf.mxu0
  %v470 = vadd.f32 %v421, %v469
  %471 = vmatmul.bf16.gmra.mxu0 %v336
  %v472 = vpop.f32.mrf.mxu0
  %v473 = vadd.f32 %v424, %v472
  %v474 = vpop.f32.mrf.mxu0
  %v475 = vadd.f32 %v426, %v474
  %476 = vmatmul.bf16.gmra.mxu0 %v339
  %v477 = vpop.f32.mrf.mxu0
  %v478 = vadd.f32 %v429, %v477
  %v479 = vpop.f32.mrf.mxu0
  %v480 = vadd.f32 %v431, %v479
  %481 = vmatmul.bf16.gmra.mxu0 %v342
  %v482 = vpop.f32.mrf.mxu0
  %v483 = vadd.f32 %v434, %v482
  %v484 = vpop.f32.mrf.mxu0
  %v485 = vadd.f32 %v436, %v484
  %486 = vmatmul.bf16.gmra.mxu0 %v345
  %v487 = vpop.f32.mrf.mxu0
  %v488 = vadd.f32 %v439, %v487
  %v489 = vpop.f32.mrf.mxu0
  %v490 = vadd.f32 %v441, %v489
  %491 = vmatmul.bf16.gmra.mxu0 %v348
  %v492 = vpop.f32.mrf.mxu0
  %v493 = vadd.f32 %v444, %v492
  %v494 = vpop.f32.mrf.mxu0
  %v495 = vadd.f32 %v446, %v494
  %496 = vdwg.mxu0
  %vm497 = vcmask 523264
  %v498 = vsel %vm497, %v458, 0.0
  %v499 = vsel %vm497, %v460, 0.0
  %v500 = vadd.f32 %v498, %v499
  %v501 = vsel %vm497, %v463, 0.0
  %v502 = vadd.f32 %v500, %v501
  %v503 = vsel %vm497, %v465, 0.0
  %v504 = vadd.f32 %v502, %v503
  %v505 = vsel %vm497, %v468, 0.0
  %v506 = vadd.f32 %v504, %v505
  %v507 = vsel %vm497, %v470, 0.0
  %v508 = vadd.f32 %v506, %v507
  %v509 = vsel %vm497, %v473, 0.0
  %v510 = vadd.f32 %v508, %v509
  %v511 = vsel %vm497, %v475, 0.0
  %v512 = vadd.f32 %v510, %v511
  %v513 = vsel %vm497, %v478, 0.0
  %v514 = vadd.f32 %v512, %v513
  %v515 = vsel %vm497, %v480, 0.0
  %v516 = vadd.f32 %v514, %v515
  %v517 = vsel %vm497, %v483, 0.0
  %v518 = vadd.f32 %v516, %v517
  %v519 = vsel %vm497, %v485, 0.0
  %v520 = vadd.f32 %v518, %v519
  %v521 = vsel %vm497, %v488, 0.0
  %v522 = vadd.f32 %v520, %v521
  %v523 = vsel %vm497, %v490, 0.0
  %v524 = vadd.f32 %v522, %v523
  %v525 = vsel %vm497, %v493, 0.0
  %v526 = vadd.f32 %v524, %v525
  %v527 = vsel %vm497, %v495, 0.0
  %v528 = vadd.f32 %v526, %v527
  %v529 = vrot.slane %v528, 4
  %v530 = vadd.f32 %v528, %v529
  %v531 = vrot.slane %v530, 2
  %v532 = vadd.f32 %v530, %v531
  %v533 = vrot.slane %v532, 1
  %v534 = vadd.f32 %v532, %v533
  %v535 = vmul.f32 %v458, %v458
  %v536 = vmul.f32 %v460, %v460
  %v537 = vmul.f32 %v463, %v463
  %v538 = vmul.f32 %v465, %v465
  %v539 = vmul.f32 %v468, %v468
  %v540 = vmul.f32 %v470, %v470
  %v541 = vmul.f32 %v473, %v473
  %v542 = vmul.f32 %v475, %v475
  %v543 = vmul.f32 %v478, %v478
  %v544 = vmul.f32 %v480, %v480
  %v545 = vmul.f32 %v483, %v483
  %v546 = vmul.f32 %v485, %v485
  %v547 = vmul.f32 %v488, %v488
  %v548 = vmul.f32 %v490, %v490
  %v549 = vmul.f32 %v493, %v493
  %v550 = vmul.f32 %v495, %v495
  %v551 = vsel %vm497, %v535, 0.0
  %v552 = vsel %vm497, %v536, 0.0
  %v553 = vadd.f32 %v551, %v552
  %v554 = vsel %vm497, %v537, 0.0
  %v555 = vadd.f32 %v553, %v554
  %v556 = vsel %vm497, %v538, 0.0
  %v557 = vadd.f32 %v555, %v556
  %v558 = vsel %vm497, %v539, 0.0
  %v559 = vadd.f32 %v557, %v558
  %v560 = vsel %vm497, %v540, 0.0
  %v561 = vadd.f32 %v559, %v560
  %v562 = vsel %vm497, %v541, 0.0
  %v563 = vadd.f32 %v561, %v562
  %v564 = vsel %vm497, %v542, 0.0
  %v565 = vadd.f32 %v563, %v564
  %v566 = vsel %vm497, %v543, 0.0
  %v567 = vadd.f32 %v565, %v566
  %v568 = vsel %vm497, %v544, 0.0
  %v569 = vadd.f32 %v567, %v568
  %v570 = vsel %vm497, %v545, 0.0
  %v571 = vadd.f32 %v569, %v570
  %v572 = vsel %vm497, %v546, 0.0
  %v573 = vadd.f32 %v571, %v572
  %v574 = vsel %vm497, %v547, 0.0
  %v575 = vadd.f32 %v573, %v574
  %v576 = vsel %vm497, %v548, 0.0
  %v577 = vadd.f32 %v575, %v576
  %v578 = vsel %vm497, %v549, 0.0
  %v579 = vadd.f32 %v577, %v578
  %v580 = vsel %vm497, %v550, 0.0
  %v581 = vadd.f32 %v579, %v580
  %v582 = vrot.slane %v581, 4
  %v583 = vadd.f32 %v581, %v582
  %v584 = vrot.slane %v583, 2
  %v585 = vadd.f32 %v583, %v584
  %v586 = vrot.slane %v585, 1
  %v587 = vadd.f32 %v585, %v586
  %v588 = vld [vmem:[%s3] sm:$0xff]
  %v589 = vld [vmem:[%s3 + $0x8] sm:$0xff]
  %v590 = vld [vmem:[%s3 + $0x10] sm:$0xff]
  %v591 = vld [vmem:[%s3 + $0x18] sm:$0xff]
  %v592 = vld [vmem:[%s3 + $0x20] sm:$0xff]
  %v593 = vld [vmem:[%s3 + $0x28] sm:$0xff]
  %v594 = vld [vmem:[%s3 + $0x30] sm:$0xff]
  %v595 = vld [vmem:[%s3 + $0x38] sm:$0xff]
  %v597 = vsel %vm497, %v534, 0
  %599 = vmatpush.msra.mxu0 0.0
  %600 = vmatpush.msra.mxu0 0.0
  %601 = vmatpush.msra.mxu0 0.0
  %602 = vmatpush.msra.mxu0 0.0
  %603 = vmatpush.msra.mxu0 0.0
  %604 = vmatpush.msra.mxu0 0.0
  %605 = vmatpush.msra.mxu0 0.0
  %606 = vmatpush.msra.mxu0 0.0
  %607 = vmatpush.msra.mxu0 %v595
  %608 = vmatpush.msra.mxu0 %v594
  %609 = vmatpush.msra.mxu0 %v593
  %610 = vmatpush.msra.mxu0 %v592
  %611 = vmatpush.msra.mxu0 %v591
  %612 = vmatpush.msra.mxu0 %v590
  %613 = vmatpush.msra.mxu0 %v589
  %614 = vmatpush.msra.mxu0 %v588
  %615 = vmatmul.f32.gmra.mxu0 %v597
  %v616 = vpop.f32.mrf.mxu0
  %v617 = vadd.f32 0.0, %v616
  %618 = vdwg.mxu0
  %v620 = vsel %vm497, %v587, 0
  %622 = vmatpush.msra.mxu0 0.0
  %623 = vmatpush.msra.mxu0 0.0
  %624 = vmatpush.msra.mxu0 0.0
  %625 = vmatpush.msra.mxu0 0.0
  %626 = vmatpush.msra.mxu0 0.0
  %627 = vmatpush.msra.mxu0 0.0
  %628 = vmatpush.msra.mxu0 0.0
  %629 = vmatpush.msra.mxu0 0.0
  %630 = vmatpush.msra.mxu0 %v595
  %631 = vmatpush.msra.mxu0 %v594
  %632 = vmatpush.msra.mxu0 %v593
  %633 = vmatpush.msra.mxu0 %v592
  %634 = vmatpush.msra.mxu0 %v591
  %635 = vmatpush.msra.mxu0 %v590
  %636 = vmatpush.msra.mxu0 %v589
  %637 = vmatpush.msra.mxu0 %v588
  %638 = vmatmul.f32.gmra.mxu0 %v620
  %v639 = vpop.f32.mrf.mxu0
  %v640 = vadd.f32 0.0, %v639
  %641 = vdwg.mxu0
  %v642 = vstv %s28
  %v643 = vmul.f32 %v617, %v642
  %v644 = vmul.f32 %v640, %v642
  %v645 = vmul.f32 %v643, %v643
  %v646 = vsub.f32 %v644, %v645
  %v647 = vmax.f32 %v646, 0.0
  %v648 = vadd.f32 %v647, 1e-05
  %v649 = vrsqrt.pop %v648
  %v650 = vmul.f32 %v649, %v648
  %v651 = vmul.f32 %v650, %v649
  %v652 = vmul.f32 0.5, %v651
  %v653 = vsub.f32 1.5, %v652
  %v654 = vmul.f32 %v649, %v653
  %vm655 = vweird.f32 %v648
  %vm656 = vweird.f32 %v649
  %vm657 = vmor %vm655, %vm656
  %v658 = vsel %vm657, %v649, %v654
  %v659 = vld [vmem:[%s5] sm:$0x1]
  %v660 = vmul.f32 %v658, %v659
  %v661 = vld [vmem:[%s6] sm:$0x1]
  %v662 = vmul.f32 %v643, %v660
  %v663 = vsub.f32 %v661, %v662
  %v664 = vld [vmem:[%s4] sm:$0xff]
  %v665 = vld [vmem:[%s4 + $0x8] sm:$0xff]
  %vm666 = vcmask 130048
  %v668 = vsel %vm666, %v660, 0
  %670 = vmatpush.msra.mxu0 0.0
  %671 = vmatpush.msra.mxu0 0.0
  %672 = vmatpush.msra.mxu0 0.0
  %673 = vmatpush.msra.mxu0 0.0
  %674 = vmatpush.msra.mxu0 0.0
  %675 = vmatpush.msra.mxu0 0.0
  %676 = vmatpush.msra.mxu0 0.0
  %677 = vmatpush.msra.mxu0 0.0
  %678 = vmatpush.msra.mxu0 0.0
  %679 = vmatpush.msra.mxu0 0.0
  %680 = vmatpush.msra.mxu0 0.0
  %681 = vmatpush.msra.mxu0 0.0
  %682 = vmatpush.msra.mxu0 0.0
  %683 = vmatpush.msra.mxu0 0.0
  %684 = vmatpush.msra.mxu0 %v665
  %685 = vmatpush.msra.mxu0 %v664
  %686 = vmatmul.f32.gmra.mxu0 %v668
  %v687 = vpop.f32.mrf.mxu0
  %v688 = vadd.f32 0.0, %v687
  %689 = vdwg.mxu0
  %v691 = vsel %vm666, %v663, 0
  %693 = vmatpush.msra.mxu0 0.0
  %694 = vmatpush.msra.mxu0 0.0
  %695 = vmatpush.msra.mxu0 0.0
  %696 = vmatpush.msra.mxu0 0.0
  %697 = vmatpush.msra.mxu0 0.0
  %698 = vmatpush.msra.mxu0 0.0
  %699 = vmatpush.msra.mxu0 0.0
  %700 = vmatpush.msra.mxu0 0.0
  %701 = vmatpush.msra.mxu0 0.0
  %702 = vmatpush.msra.mxu0 0.0
  %703 = vmatpush.msra.mxu0 0.0
  %704 = vmatpush.msra.mxu0 0.0
  %705 = vmatpush.msra.mxu0 0.0
  %706 = vmatpush.msra.mxu0 0.0
  %707 = vmatpush.msra.mxu0 %v665
  %708 = vmatpush.msra.mxu0 %v664
  %709 = vmatmul.f32.gmra.mxu0 %v691
  %v710 = vpop.f32.mrf.mxu0
  %v711 = vadd.f32 0.0, %v710
  %712 = vdwg.mxu0
  %v713 = vperm.slane %v688, 0
  %v714 = vmul.f32 %v458, %v713
  %v715 = vmul.f32 %v460, %v713
  %v716 = vmul.f32 %v463, %v713
  %v717 = vmul.f32 %v465, %v713
  %v718 = vmul.f32 %v468, %v713
  %v719 = vmul.f32 %v470, %v713
  %v720 = vmul.f32 %v473, %v713
  %v721 = vmul.f32 %v475, %v713
  %v722 = vmul.f32 %v478, %v713
  %v723 = vmul.f32 %v480, %v713
  %v724 = vmul.f32 %v483, %v713
  %v725 = vmul.f32 %v485, %v713
  %v726 = vmul.f32 %v488, %v713
  %v727 = vmul.f32 %v490, %v713
  %v728 = vmul.f32 %v493, %v713
  %v729 = vmul.f32 %v495, %v713
  %v730 = vperm.slane %v711, 0
  %v731 = vadd.f32 %v714, %v730
  %v732 = vadd.f32 %v715, %v730
  %v733 = vadd.f32 %v716, %v730
  %v734 = vadd.f32 %v717, %v730
  %v735 = vadd.f32 %v718, %v730
  %v736 = vadd.f32 %v719, %v730
  %v737 = vadd.f32 %v720, %v730
  %v738 = vadd.f32 %v721, %v730
  %v739 = vadd.f32 %v722, %v730
  %v740 = vadd.f32 %v723, %v730
  %v741 = vadd.f32 %v724, %v730
  %v742 = vadd.f32 %v725, %v730
  %v743 = vadd.f32 %v726, %v730
  %v744 = vadd.f32 %v727, %v730
  %v745 = vadd.f32 %v728, %v730
  %v746 = vadd.f32 %v729, %v730
  %v747 = vmax.f32 %v731, 0.0
  %v748 = vmax.f32 %v732, 0.0
  %v749 = vmax.f32 %v733, 0.0
  %v750 = vmax.f32 %v734, 0.0
  %v751 = vmax.f32 %v735, 0.0
  %v752 = vmax.f32 %v736, 0.0
  %v753 = vmax.f32 %v737, 0.0
  %v754 = vmax.f32 %v738, 0.0
  %v755 = vmax.f32 %v739, 0.0
  %v756 = vmax.f32 %v740, 0.0
  %v757 = vmax.f32 %v741, 0.0
  %v758 = vmax.f32 %v742, 0.0
  %v759 = vmax.f32 %v743, 0.0
  %v760 = vmax.f32 %v744, 0.0
  %v761 = vmax.f32 %v745, 0.0
  %v762 = vmax.f32 %v746, 0.0
  %v763 = vpack.c.bf16 %v747, %v747
  %v764 = vpack.c.bf16 %v748, %v748
  %v765 = vpack.c.bf16 %v749, %v749
  %v766 = vpack.c.bf16 %v750, %v750
  %v767 = vpack.c.bf16 %v751, %v751
  %v768 = vpack.c.bf16 %v752, %v752
  %v769 = vpack.c.bf16 %v753, %v753
  %v770 = vpack.c.bf16 %v754, %v754
  %v771 = vpack.c.bf16 %v755, %v755
  %v772 = vpack.c.bf16 %v756, %v756
  %v773 = vpack.c.bf16 %v757, %v757
  %v774 = vpack.c.bf16 %v758, %v758
  %v775 = vpack.c.bf16 %v759, %v759
  %v776 = vpack.c.bf16 %v760, %v760
  %v777 = vpack.c.bf16 %v761, %v761
  %v778 = vpack.c.bf16 %v762, %v762
  %vm779 = vcmask 519168
  %780 = vst.msk [vmem:[%s7] sm:$0xf] %vm779, %v763
  %781 = vst.msk [vmem:[%s7 + $0x4] sm:$0xf] %vm779, %v764
  %782 = vst.msk [vmem:[%s7 + $0x8] sm:$0xf] %vm779, %v765
  %783 = vst.msk [vmem:[%s7 + $0xc] sm:$0xf] %vm779, %v766
  %784 = vst.msk [vmem:[%s7 + $0x10] sm:$0xf] %vm779, %v767
  %785 = vst.msk [vmem:[%s7 + $0x14] sm:$0xf] %vm779, %v768
  %786 = vst.msk [vmem:[%s7 + $0x18] sm:$0xf] %vm779, %v769
  %787 = vst.msk [vmem:[%s7 + $0x1c] sm:$0xf] %vm779, %v770
  %788 = vst.msk [vmem:[%s7 + $0x20] sm:$0xf] %vm779, %v771
  %789 = vst.msk [vmem:[%s7 + $0x24] sm:$0xf] %vm779, %v772
  %790 = vst.msk [vmem:[%s7 + $0x28] sm:$0xf] %vm779, %v773
  %791 = vst.msk [vmem:[%s7 + $0x2c] sm:$0xf] %vm779, %v774
  %792 = vst.msk [vmem:[%s7 + $0x30] sm:$0xf] %vm779, %v775
  %793 = vst.msk [vmem:[%s7 + $0x34] sm:$0xf] %vm779, %v776
  %794 = vst.msk [vmem:[%s7 + $0x38] sm:$0xf] %vm779, %v777
  %795 = vst.msk [vmem:[%s7 + $0x3c] sm:$0xf] %vm779, %v778
  // Predicated region
  $region30: #{facegen_gan_forward.6} parent=0 // pred_check
    _
  $region31: #{facegen_gan_forward.6} parent=0 // pred_check_branch
    %797 = sbr.rel (0) target = $region33
  $region32: #{facegen_gan_forward.6} parent=0 // pred_region
    _
  $region33: #{facegen_gan_forward.6} parent=0 // pred_fallthru
    _
  // Predicated region
  $region34: #{facegen_gan_forward.6} parent=0 // pred_check
    _
  $region35: #{facegen_gan_forward.6} parent=0 // pred_check_branch
    %799 = sbr.rel (0) target = $region37
  $region36: #{facegen_gan_forward.6} parent=0 // pred_region
    _
  $region37: #{facegen_gan_forward.6} parent=0 // pred_fallthru
    _

// kernel: facegen_gan_forward.7
$region0: #{facegen_gan_forward.7}
  #allocation0 [shape = 'u32[]', space=smem, size = 0x4, offset = 0x4, fixed_abs, tag = 'smem constant byte address 0x4 - core index']
  #allocation1 [shape = 'u32[72,128]{1,0:T(1,128)}', space=vmem, size = 0x9000, scoped, tag = 'internal scratch']
  %s0 = inlined_call_operand.vmem [shape: bf16[8,144], index: 0, kind: input, shape index: {}]
  %s1 = inlined_call_operand.vmem [shape: bf16[144,512], index: 1, kind: input, shape index: {}]
  %s2 = inlined_call_operand.vmem [shape: f32[8,512], index: 2, kind: output, shape index: {}]
  %s3 = sld [smem:[#allocation0]]
  $region79: #{facegen_gan_forward.7} parent=0
    _
  %s5 = ssub.s32 1, %s3
  %s6 = scalar_select 0, %s5, %s3
  $region1: #{facegen_gan_forward.7} parent=0
    #allocation2 [shape = 'u8[147456]{0}', space=vmem, size = 0x24000, scoped, tag = 'input window, operand 1']
    loop: start=0, step=1, limit=4
    $region2: #{facegen_gan_forward.7} parent=1 // loop_pre_header
      _
    $region3: #{facegen_gan_forward.7} parent=1 // loop_header
      %s8 = sphi 0, %s12
      %p9 = scmp.ge.s32.totalorder %s8, 4
      %s16 = sphi 0, %s16
      %s18 = sphi 0, %s16
      %s19 = sphi 0, %s18
      %s33 = sphi 0, %s19
      %s39 = sphi 0, %s41
      %s42 = sphi 0, %s39
      %s43 = sphi 0, %s42
      %s59 = sphi 0, %s43
      %s65 = sphi 0, %s67
      %s68 = sphi 0, %s65
      %s69 = sphi 0, %s68
      %s85 = sphi 0, %s69
    $region4: #{facegen_gan_forward.7} parent=1 // loop_header_branch
      %11 = sbr.rel (%p9) target = $region8
    $region5: #{facegen_gan_forward.7} parent=1 // loop_body
      %s13 = ssub.s32 %s8, 1
      %s14 = ssub.s32 %s8, 2
      %s15 = sadd.s32 %s8, 1
      %s17 = sadd.s32 %s16, 1
      %p20 = scmp.eq.s32.totalorder %s8, 1
      %p21 = scmp.ne.s32.totalorder %s16, %s18
      %p22 = scmp.eq.s32.totalorder %s8, 0
      %p23 = por %p21, %p22
      %p24 = scmp.ne.s32.totalorder %s16, %s18
      %p25 = scmp.eq.s32.totalorder %s13, 1
      %p26 = por %p24, %p25
      %p27 = scmp.ne.s32.totalorder %s18, %s19
      %p28 = scmp.eq.s32.totalorder %s13, 0
      %p29 = por %p27, %p28
      %p30 = scmp.ne.s32.totalorder %s18, %s19
      %p31 = scmp.eq.s32.totalorder %s14, 1
      %p32 = por %p30, %p31
      %p34 = scmp.ne.s32.totalorder %s19, %s33
      %p35 = scmp.eq.s32.totalorder %s14, 0
      %p36 = por %p34, %p35
      %s37 = ssub.s32 %s8, %s15
      %p38 = scmp.eq.s32.totalorder %s37, 0
      %s40 = sadd.s32 %s39, 1
      %s41 = scalar_select %p38, %s39, %s40
      %p44 = pneg %p38
      %p45 = scmp.eq.s32.totalorder %s8, 1
      %p46 = por %p44, %p45
      %p47 = scmp.ne.s32.totalorder %s39, %s42
      %p48 = scmp.eq.s32.totalorder %s8, 0
      %p49 = por %p47, %p48
      %p50 = scmp.ne.s32.totalorder %s39, %s42
      %p51 = scmp.eq.s32.totalorder %s13, 1
      %p52 = por %p50, %p51
      %p53 = scmp.ne.s32.totalorder %s42, %s43
      %p54 = scmp.eq.s32.totalorder %s13, 0
      %p55 = por %p53, %p54
      %p56 = scmp.ne.s32.totalorder %s42, %s43
      %p57 = scmp.eq.s32.totalorder %s14, 1
      %p58 = por %p56, %p57
      %p60 = scmp.ne.s32.totalorder %s43, %s59
      %p61 = scmp.eq.s32.totalorder %s14, 0
      %p62 = por %p60, %p61
      %s63 = ssub.s32 %s8, %s15
      %p64 = scmp.eq.s32.totalorder %s63, 0
      %s66 = sadd.s32 %s65, 1
      %s67 = scalar_select %p64, %s65, %s66
      %p70 = pneg %p64
      %p71 = scmp.eq.s32.totalorder %s8, 1
      %p72 = por %p70, %p71
      %p73 = scmp.ne.s32.totalorder %s65, %s68
      %p74 = scmp.eq.s32.totalorder %s8, 0
      %p75 = por %p73, %p74
      %p76 = scmp.ne.s32.totalorder %s65, %s68
      %p77 = scmp.eq.s32.totalorder %s13, 1
      %p78 = por %p76, %p77
      %p79 = scmp.ne.s32.totalorder %s68, %s69
      %p80 = scmp.eq.s32.totalorder %s13, 0
      %p81 = por %p79, %p80
      %p82 = scmp.ne.s32.totalorder %s68, %s69
      %p83 = scmp.eq.s32.totalorder %s14, 1
      %p84 = por %p82, %p83
      %p86 = scmp.ne.s32.totalorder %s69, %s85
      %p87 = scmp.eq.s32.totalorder %s14, 0
      %p88 = por %p86, %p87
      %p89 = scmp.le.s32.totalorder 1, %s8
      %p90 = scmp.lt.s32.totalorder %s8, 3
      %p91 = pnand %p89, %p90
      %p92 = pneg %p91
      // Predicated region
      $region9: #{facegen_gan_forward.7} parent=5 // pred_check
        _
      $region10: #{facegen_gan_forward.7} parent=5 // pred_check_branch
        %94 = sbr.rel (%p91) target = $region12
      $region11: #{facegen_gan_forward.7} parent=5 // pred_region
        %s95 = ssub.s32 %s8, 1
        // Predicated region
        $region13: #{facegen_gan_forward.7} parent=11 // pred_check
          %p96 = pneg %p29
        $region14: #{facegen_gan_forward.7} parent=11 // pred_check_branch
          %98 = sbr.rel (%p96) target = $region16
        $region15: #{facegen_gan_forward.7} parent=11 // pred_region
          _
        $region16: #{facegen_gan_forward.7} parent=11 // pred_fallthru
          _
      $region12: #{facegen_gan_forward.7} parent=5 // pred_fallthru
        _
      %p99 = scmp.lt.s32.totalorder %s8, 2
      // Predicated region
      $region17: #{facegen_gan_forward.7} parent=5 // pred_check
        %p100 = pneg %p99
      $region18: #{facegen_gan_forward.7} parent=5 // pred_check_branch
        %102 = sbr.rel (%p100) target = $region20
      $region19: #{facegen_gan_forward.7} parent=5 // pred_region
        // Predicated region
        $region21: #{facegen_gan_forward.7} parent=19 // pred_check
          %p103 = pneg %p49
        $region22: #{facegen_gan_forward.7} parent=19 // pred_check_branch
          %105 = sbr.rel (%p103) target = $region24
        $region23: #{facegen_gan_forward.7} parent=19 // pred_region
          %s106 = sand.u32 %s39, 1
          %s107 = sand.u32 %s39, 1
          %s108 = smul.addr %s107, 144
          %s109 = scalar_lea.vmem [#allocation2], %s108
          %s110 = smul.u32 2, %s8
          %s111 = smul.addr %s110, 4
          %s112 = scalar_lea.vmem %s1, %s111
          // Predicated region
          $region25: #{facegen_gan_forward.7} parent=23 // pred_check
            _
          $region26: #{facegen_gan_forward.7} parent=23 // pred_check_branch
            %114 = sbr.rel (0) target = $region28
          $region27: #{facegen_gan_forward.7} parent=23 // pred_region
            // Predicated region
            $region29: #{facegen_gan_forward.7} parent=27 // pred_check
              _
            $region30: #{facegen_gan_forward.7} parent=27 // pred_check_branch
              %116 = sbr.rel (0) target = $region32
            $region31: #{facegen_gan_forward.7} parent=27 // pred_region
              // Predicated region
              $region44: #{facegen_gan_forward.7} parent=31 // pred_check
                _
              $region45: #{facegen_gan_forward.7} parent=31 // pred_check_branch
                %166 = sbr.rel (0) target = $region47
              $region46: #{facegen_gan_forward.7} parent=31 // pred_region
                loop: start=0, step=1, limit=1
                $region48: #{facegen_gan_forward.7} parent=46 // loop_pre_header
                  _
                $region49: #{facegen_gan_forward.7} parent=46 // loop_header
                  %s168 = sphi 0, %s172
                  %p169 = scmp.ge.s32.totalorder %s168, 1
                  %s173 = sphi %s112, %s112
                  %s174 = sphi %s109, %s109
                $region50: #{facegen_gan_forward.7} parent=46 // loop_header_branch
                  %171 = sbr.rel (%p169) target = $region54
                $region51: #{facegen_gan_forward.7} parent=46 // loop_body
                  %v175 = vld [vmem:[%s173] sm:$0xff]
                  %176 = vst [vmem:[%s174] sm:$0xff] %v175
                  %v177 = vld [vmem:[%s173 + $0x10] sm:$0xff]
                  %178 = vst [vmem:[%s174 + $0x8] sm:$0xff] %v177
                  %v179 = vld [vmem:[%s173 + $0x20] sm:$0xff]
                  %180 = vst [vmem:[%s174 + $0x10] sm:$0xff] %v179
                  %v181 = vld [vmem:[%s173 + $0x30] sm:$0xff]
                  %182 = vst [vmem:[%s174 + $0x18] sm:$0xff] %v181
                  %v183 = vld [vmem:[%s173 + $0x40] sm:$0xff]
                  %184 = vst [vmem:[%s174 + $0x20] sm:$0xff] %v183
                  %v185 = vld [vmem:[%s173 + $0x50] sm:$0xff]
                  %186 = vst [vmem:[%s174 + $0x28] sm:$0xff] %v185
                  %v187 = vld [vmem:[%s173 + $0x60] sm:$0xff]
                  %188 = vst [vmem:[%s174 + $0x30] sm:$0xff] %v187
                  %v189 = vld [vmem:[%s173 + $0x70] sm:$0xff]
                  %190 = vst [vmem:[%s174 + $0x38] sm:$0xff] %v189
                  %v191 = vld [vmem:[%s173 + $0x80] sm:$0xff]
                  %192 = vst [vmem:[%s174 + $0x40] sm:$0xff] %v191
                  %v193 = vld [vmem:[%s173 + $0x90] sm:$0xff]
                  %194 = vst [vmem:[%s174 + $0x48] sm:$0xff] %v193
                  %v195 = vld [vmem:[%s173 + $0xa0] sm:$0xff]
                  %196 = vst [vmem:[%s174 + $0x50] sm:$0xff] %v195
                  %v197 = vld [vmem:[%s173 + $0xb0] sm:$0xff]
                  %198 = vst [vmem:[%s174 + $0x58] sm:$0xff] %v197
                  %v199 = vld [vmem:[%s173 + $0xc0] sm:$0xff]
                  %200 = vst [vmem:[%s174 + $0x60] sm:$0xff] %v199
                  %v201 = vld [vmem:[%s173 + $0xd0] sm:$0xff]
                  %202 = vst [vmem:[%s174 + $0x68] sm:$0xff] %v201
                  %v203 = vld [vmem:[%s173 + $0xe0] sm:$0xff]
                  %204 = vst [vmem:[%s174 + $0x70] sm:$0xff] %v203
                  %v205 = vld [vmem:[%s173 + $0xf0] sm:$0xff]
                  %206 = vst [vmem:[%s174 + $0x78] sm:$0xff] %v205
                  %v207 = vld [vmem:[%s173 + $0x100] sm:$0xff]
                  %208 = vst [vmem:[%s174 + $0x80] sm:$0xff] %v207
                  %v209 = vld [vmem:[%s173 + $0x110] sm:$0xff]
                  %210 = vst [vmem:[%s174 + $0x88] sm:$0xff] %v209
                $region52: #{facegen_gan_forward.7} parent=46 // loop_footer
                  %s172 = sadd.s32 1, %s168
                $region53: #{facegen_gan_forward.7} parent=46 // loop_footer_branch
                  %167 = sbr.rel target = $region49
                $region54: #{facegen_gan_forward.7} parent=46 // loop_exit
                  _
              $region47: #{facegen_gan_forward.7} parent=31 // pred_fallthru
                _
              // Predicated region
              $region55: #{facegen_gan_forward.7} parent=31 // pred_check
                _
              $region56: #{facegen_gan_forward.7} parent=31 // pred_check_branch
                %212 = sbr.rel target = $region58
              $region57: #{facegen_gan_forward.7} parent=31 // pred_region
                _
              $region58: #{facegen_gan_forward.7} parent=31 // pred_fallthru
                _
            $region32: #{facegen_gan_forward.7} parent=27 // pred_fallthru
              _
            // Predicated region
            $region33: #{facegen_gan_forward.7} parent=27 // pred_check
              _
            $region34: #{facegen_gan_forward.7} parent=27 // pred_check_branch
              %118 = sbr.rel target = $region36
            $region35: #{facegen_gan_forward.7} parent=27 // pred_region
              %s120 = ssub.s32 256, 1
              loop: start=0, step=1, limit=1
              $region37: #{facegen_gan_forward.7} parent=35 // loop_pre_header
                _
              $region38: #{facegen_gan_forward.7} parent=35 // loop_header
                %s122 = sphi 0, %s126
                %p123 = scmp.ge.s32.totalorder %s122, 1
                %s127 = sphi %s112, %s112
                %s128 = sphi %s109, %s109
              $region39: #{facegen_gan_forward.7} parent=35 // loop_header_branch
                %125 = sbr.rel (%p123) target = $region43
              $region40: #{facegen_gan_forward.7} parent=35 // loop_body
                %v129 = vld [vmem:[%s127] sm:%s120]
                %130 = vst [vmem:[%s128] sm:%s120] %v129
                %v131 = vld [vmem:[%s127 + $0x10] sm:%s120]
                %132 = vst [vmem:[%s128 + $0x8] sm:%s120] %v131
                %v133 = vld [vmem:[%s127 + $0x20] sm:%s120]
                %134 = vst [vmem:[%s128 + $0x10] sm:%s120] %v133
                %v135 = vld [vmem:[%s127 + $0x30] sm:%s120]
                %136 = vst [vmem:[%s128 + $0x18] sm:%s120] %v135
                %v137 = vld [vmem:[%s127 + $0x40] sm:%s120]
                %138 = vst [vmem:[%s128 + $0x20] sm:%s120] %v137
                %v139 = vld [vmem:[%s127 + $0x50] sm:%s120]
                %140 = vst [vmem:[%s128 + $0x28] sm:%s120] %v139
                %v141 = vld [vmem:[%s127 + $0x60] sm:%s120]
                %142 = vst [vmem:[%s128 + $0x30] sm:%s120] %v141
                %v143 = vld [vmem:[%s127 + $0x70] sm:%s120]
                %144 = vst [vmem:[%s128 + $0x38] sm:%s120] %v143
                %v145 = vld [vmem:[%s127 + $0x80] sm:%s120]
                %146 = vst [vmem:[%s128 + $0x40] sm:%s120] %v145
                %v147 = vld [vmem:[%s127 + $0x90] sm:%s120]
                %148 = vst [vmem:[%s128 + $0x48] sm:%s120] %v147
                %v149 = vld [vmem:[%s127 + $0xa0] sm:%s120]
                %150 = vst [vmem:[%s128 + $0x50] sm:%s120] %v149
                %v151 = vld [vmem:[%s127 + $0xb0] sm:%s120]
                %152 = vst [vmem:[%s128 + $0x58] sm:%s120] %v151
                %v153 = vld [vmem:[%s127 + $0xc0] sm:%s120]
                %154 = vst [vmem:[%s128 + $0x60] sm:%s120] %v153
                %v155 = vld [vmem:[%s127 + $0xd0] sm:%s120]
                %156 = vst [vmem:[%s128 + $0x68] sm:%s120] %v155
                %v157 = vld [vmem:[%s127 + $0xe0] sm:%s120]
                %158 = vst [vmem:[%s128 + $0x70] sm:%s120] %v157
                %v159 = vld [vmem:[%s127 + $0xf0] sm:%s120]
                %160 = vst [vmem:[%s128 + $0x78] sm:%s120] %v159
                %v161 = vld [vmem:[%s127 + $0x100] sm:%s120]
                %162 = vst [vmem:[%s128 + $0x80] sm:%s120] %v161
                %v163 = vld [vmem:[%s127 + $0x110] sm:%s120]
                %164 = vst [vmem:[%s128 + $0x88] sm:%s120] %v163
              $region41: #{facegen_gan_forward.7} parent=35 // loop_footer
                %s126 = sadd.s32 1, %s122
              $region42: #{facegen_gan_forward.7} parent=35 // loop_footer_branch
                %121 = sbr.rel target = $region38
              $region43: #{facegen_gan_forward.7} parent=35 // loop_exit
                _
            $region36: #{facegen_gan_forward.7} parent=27 // pred_fallthru
              _
          $region28: #{facegen_gan_forward.7} parent=23 // pred_fallthru
            _
          %213 = vnop
        $region24: #{facegen_gan_forward.7} parent=19 // pred_fallthru
          _
      $region20: #{facegen_gan_forward.7} parent=5 // pred_fallthru
        _
      %p214 = scmp.le.s32.totalorder 1, %s8
      %p215 = scmp.lt.s32.totalorder %s8, 3
      %p216 = pnand %p214, %p215
      %p217 = pneg %p216
      // Predicated region
      $region59: #{facegen_gan_forward.7} parent=5 // pred_check
        _
      $region60: #{facegen_gan_forward.7} parent=5 // pred_check_branch
        %219 = sbr.rel (%p216) target = $region62
      $region61: #{facegen_gan_forward.7} parent=5 // pred_region
        %s220 = ssub.s32 %s8, 1
        %s221 = sand.u32 %s42, 1
        %s222 = sand.u32 %s42, 1
        %s223 = smul.addr %s222, 144
        %s224 = scalar_lea.vmem [#allocation2], %s223
        // Predicated region
        $region63: #{facegen_gan_forward.7} parent=61 // pred_check
          %p225 = pneg %p55
        $region64: #{facegen_gan_forward.7} parent=61 // pred_check_branch
          %227 = sbr.rel (%p225) target = $region66
        $region65: #{facegen_gan_forward.7} parent=61 // pred_region
          _
        $region66: #{facegen_gan_forward.7} parent=61 // pred_fallthru
          _
        %p228 = pneg %p29
        %p229 = pneg %p26
        %s230 = sand.u32 %s42, 1
        %s231 = sand.u32 %s42, 1
        %s232 = smul.addr %s231, 144
        %s233 = scalar_lea.vmem [#allocation2], %s232
        %p234 = pneg %p55
        %p235 = pneg %p52
        %p236 = pneg %p81
        %p237 = pneg %p78
        %s238 = smul.u32 2, %s13
        %p239 = scmp.lt.s32.totalorder %s238, 3
        %s240 = scalar_select %p239, %s238, 3
        %s241 = smul.addr %s240, 8
        %s242 = scalar_lea.vmem %s2, %s241
        %s243 = smul.u32 2, %s13
        %s244 = smul.u32 2, %s13
        %p245 = scmp.lt.s32.totalorder %s244, 3
        %s246 = scalar_select %p245, %s244, 3
        %s247 = smul.addr %s246, 8
        %s248 = scalar_lea.vmem %s2, %s247
        %s249 = smul.u32 2, %s13
        %v251 = vld [vmem:[%s0] sm:$0xff]
        %v252 = vld [vmem:[%s224] sm:$0xff]
        %v253 = vld [vmem:[%s224 + $0x8] sm:$0xff]
        %v254 = vld [vmem:[%s224 + $0x10] sm:$0xff]
        %v255 = vld [vmem:[%s224 + $0x18] sm:$0xff]
        %v256 = vld [vmem:[%s224 + $0x20] sm:$0xff]
        %v257 = vld [vmem:[%s224 + $0x28] sm:$0xff]
        %v258 = vld [vmem:[%s224 + $0x30] sm:$0xff]
        %v259 = vld [vmem:[%s224 + $0x38] sm:$0xff]
        %v260 = vld [vmem:[%s224 + $0x40] sm:$0xff]
        %v261 = vld [vmem:[%s224 + $0x48] sm:$0xff]
        %v262 = vld [vmem:[%s224 + $0x50] sm:$0xff]
        %v263 = vld [vmem:[%s224 + $0x58] sm:$0xff]
        %v264 = vld [vmem:[%s224 + $0x60] sm:$0xff]
        %v265 = vld [vmem:[%s224 + $0x68] sm:$0xff]
        %v266 = vld [vmem:[%s224 + $0x70] sm:$0xff]
        %v267 = vld [vmem:[%s224 + $0x78] sm:$0xff]
        %v268 = vld [vmem:[%s224 + $0x80] sm:$0xff]
        %v269 = vld [vmem:[%s224 + $0x88] sm:$0xff]
        %v271 = vunpack.c.l.b16 %v251
        %v272 = vunpack.c.h.b16 %v251
        %v273 = vpack.c.b16 %v271, %v271
        %v274 = vpack.c.b16 %v272, %v272
        %v294 = vunpack.c.l.b16 %v252
        %v295 = vunpack.c.h.b16 %v252
        %v296 = vunpack.c.l.b16 %v253
        %v297 = vunpack.c.h.b16 %v253
        %v298 = vunpack.c.l.b16 %v254
        %v299 = vunpack.c.h.b16 %v254
        %v300 = vunpack.c.l.b16 %v255
        %v301 = vunpack.c.h.b16 %v255
        %v302 = vunpack.c.l.b16 %v256
        %v303 = vunpack.c.h.b16 %v256
        %v304 = vunpack.c.l.b16 %v257
        %v305 = vunpack.c.h.b16 %v257
        %v306 = vunpack.c.l.b16 %v258
        %v307 = vunpack.c.h.b16 %v258
        %v308 = vunpack.c.l.b16 %v259
        %v309 = vunpack.c.h.b16 %v259
        %v310 = vunpack.c.l.b16 %v260
        %v311 = vunpack.c.h.b16 %v260
        %v312 = vunpack.c.l.b16 %v261
        %v313 = vunpack.c.h.b16 %v261
        %v314 = vunpack.c.l.b16 %v262
        %v315 = vunpack.c.h.b16 %v262
        %v316 = vunpack.c.l.b16 %v263
        %v317 = vunpack.c.h.b16 %v263
        %v318 = vunpack.c.l.b16 %v264
        %v319 = vunpack.c.h.b16 %v264
        %v320 = vunpack.c.l.b16 %v265
        %v321 = vunpack.c.h.b16 %v265
        %v322 = vunpack.c.l.b16 %v266
        %v323 = vunpack.c.h.b16 %v266
        %v324 = vunpack.c.l.b16 %v267
        %v325 = vunpack.c.h.b16 %v267
        %v326 = vunpack.c.l.b16 %v268
        %v327 = vunpack.c.h.b16 %v268
        %v328 = vunpack.c.l.b16 %v269
        %v329 = vunpack.c.h.b16 %v269
        %v330 = vpack.c.b16 %v296, %v294
        %v331 = vpack.c.b16 %v297, %v295
        %v332 = vpack.c.b16 %v300, %v298
        %v333 = vpack.c.b16 %v301, %v299
        %v334 = vpack.c.b16 %v304, %v302
        %v335 = vpack.c.b16 %v305, %v303
        %v336 = vpack.c.b16 %v308, %v306
        %v337 = vpack.c.b16 %v309, %v307
        %v338 = vpack.c.b16 %v312, %v310
        %v339 = vpack.c.b16 %v313, %v311
        %v340 = vpack.c.b16 %v316, %v314
        %v341 = vpack.c.b16 %v317, %v315
        %v342 = vpack.c.b16 %v320, %v318
        %v343 = vpack.c.b16 %v321, %v319
        %v344 = vpack.c.b16 %v324, %v322
        %v345 = vpack.c.b16 %v325, %v323
        %v346 = vpack.c.b16 %v328, %v326
        %v347 = vpack.c.b16 %v329, %v327
        %vm366 = vcmask 130048
        %v368 = vsel %vm366, %v274, 0
        %370 = vmatpush.bf16.msra.mxu0 %v344
        %371 = vmatpush.bf16.msra.mxu0 %v342
        %372 = vmatpush.bf16.msra.mxu0 %v340
        %373 = vmatpush.bf16.msra.mxu0 %v338
        %374 = vmatpush.bf16.msra.mxu0 %v336
        %375 = vmatpush.bf16.msra.mxu0 %v334
        %376 = vmatpush.bf16.msra.mxu0 %v332
        %377 = vmatpush.bf16.msra.mxu0 %v330
        %378 = vmatmul.bf16.gmra.mxu0 %v273
        %v379 = vpop.f32.mrf.mxu0
        %v380 = vadd.f32 0.0, %v379
        %v381 = vpop.f32.mrf.mxu0
        %382 = vdwg.mxu0
        %383 = vmatpush.bf16.msra.mxu0 0
        %384 = vmatpush.bf16.msra.mxu0 0
        %385 = vmatpush.bf16.msra.mxu0 0
        %386 = vmatpush.bf16.msra.mxu0 0
        %387 = vmatpush.bf16.msra.mxu0 0
        %388 = vmatpush.bf16.msra.mxu0 0
        %389 = vmatpush.bf16.msra.mxu0 0
        %390 = vmatpush.bf16.msra.mxu0 %v346
        %391 = vmatmul.bf16.gmra.mxu0 %v368
        %v392 = vpop.f32.mrf.mxu0
        %v393 = vadd.f32 %v380, %v392
        %v394 = vpop.f32.mrf.mxu0
        %395 = vdwg.mxu0
        %396 = vmatpush.bf16.msra.mxu0 %v345
        %397 = vmatpush.bf16.msra.mxu0 %v343
        %398 = vmatpush.bf16.msra.mxu0 %v341
        %399 = vmatpush.bf16.msra.mxu0 %v339
        %400 = vmatpush.bf16.msra.mxu0 %v337
        %401 = vmatpush.bf16.msra.mxu0 %v335
        %402 = vmatpush.bf16.msra.mxu0 %v333
        %403 = vmatpush.bf16.msra.mxu0 %v331
        %404 = vmatmul.bf16.gmra.mxu0 %v273
        %v405 = vpop.f32.mrf.mxu0
        %v406 = vadd.f32 0.0, %v405
        %v407 = vpop.f32.mrf.mxu0
        %408 = vdwg.mxu0
        %409 = vmatpush.bf16.msra.mxu0 0
        %410 = vmatpush.bf16.msra.mxu0 0
        %411 = vmatpush.bf16.msra.mxu0 0
        %412 = vmatpush.bf16.msra.mxu0 0
        %413 = vmatpush.bf16.msra.mxu0 0
        %414 = vmatpush.bf16.msra.mxu0 0
        %415 = vmatpush.bf16.msra.mxu0 0
        %416 = vmatpush.bf16.msra.mxu0 %v347
        %417 = vmatmul.bf16.gmra.mxu0 %v368
        %v418 = vpop.f32.mrf.mxu0
        %v419 = vadd.f32 %v406, %v418
        %v420 = vpop.f32.mrf.mxu0
        %421 = vdwg.mxu0
        %v422 = vtanh.pop %v393
        %v423 = vtanh.pop %v419
        %424 = vst [vmem:[%s248] sm:$0xff] %v422
        %425 = vst [vmem:[%s248 + $0x8] sm:$0xff] %v423
        %s426 = smul.u32 2, %s13
        %p427 = scmp.lt.s32.totalorder %s426, 3
        %s428 = scalar_select %p427, %s426, 3
        %s429 = smul.addr %s428, 8
        %s430 = scalar_lea.vmem %s2, %s429
        // Predicated region
        $region67: #{facegen_gan_forward.7} parent=61 // pred_check
          %p431 = pneg %p78
        $region68: #{facegen_gan_forward.7} parent=61 // pred_check_branch
          %433 = sbr.rel (%p431) target = $region70
        $region69: #{facegen_gan_forward.7} parent=61 // pred_region
          %s434 = smul.u32 2, %s13
        $region70: #{facegen_gan_forward.7} parent=61 // pred_fallthru
          _
      $region62: #{facegen_gan_forward.7} parent=5 // pred_fallthru
        _
      %p435 = scmp.le.s32.totalorder 2, %s8
      // Predicated region
      $region71: #{facegen_gan_forward.7} parent=5 // pred_check
        %p436 = pneg %p435
      $region72: #{facegen_gan_forward.7} parent=5 // pred_check_branch
        %438 = sbr.rel (%p436) target = $region74
      $region73: #{facegen_gan_forward.7} parent=5 // pred_region
        %s439 = ssub.s32 %s8, 2
        // Predicated region
        $region75: #{facegen_gan_forward.7} parent=73 // pred_check
          %p440 = pneg %p84
        $region76: #{facegen_gan_forward.7} parent=73 // pred_check_branch
          %442 = sbr.rel (%p440) target = $region78
        $region77: #{facegen_gan_forward.7} parent=73 // pred_region
          %s443 = smul.u32 2, %s14
          %p444 = scmp.lt.s32.totalorder %s443, 3
          %s445 = scalar_select %p444, %s443, 3
          %s446 = smul.addr %s445, 8
          %s447 = scalar_lea.vmem %s2, %s446
        $region78: #{facegen_gan_forward.7} parent=73 // pred_fallthru
          _
      $region74: #{facegen_gan_forward.7} parent=5 // pred_fallthru
        _
    $region6: #{facegen_gan_forward.7} parent=1 // loop_footer
      %s12 = sadd.s32 1, %s8
    $region7: #{facegen_gan_forward.7} parent=1 // loop_footer_branch
      %7 = sbr.rel target = $region3
    $region8: #{facegen_gan_forward.7} parent=1 // loop_exit
      _

</llo_original>
